<compile_context>
chip_gen: v6e
topology: v6e:2x2x1
jax: 0.10.0
libtpu: 0.0.40
codegen_flags: <defaults>
</compile_context>

<pallas_src>
import jax
import jax.numpy as jnp
from jax import lax
from jax.experimental import pallas as pl
from jax.experimental.pallas import tpu as pltpu

ALPHABET = 26
V = 27            # alphabet_size + blank_token
T = 20            # input_len
E = 32            # embedding_dim
H = 64            # lstm_hidden
G4 = 4 * H        # 256  (i, f, g, o)
FC1 = 64
OUT_PAD = 128     # lane-dense padded head width (>= ALPHABET)
IN_FEATURES = T * V + ALPHABET   # 566


# ----------------------------- Pallas kernel ------------------------------ #
def hangman_kernel(word_ref,      # (T, BB, V)   f32  one-hot-ish word encoding
                   guessed_ref,   # (BB, 26)     f32
                   af_ref,        # (V, 4H)      f32  emb @ W_ih_fwd.T + b_fwd
                   ar_ref,        # (V, 4H)      f32  emb @ W_ih_rev.T + b_rev
                   whh_f_ref,     # (H, 4H)      f32  forward W_hh.T
                   w1t_ref,       # (2H+26, 64)  f32  fc1 weight.T
                   b1_ref,        # (1, 64)      f32
                   w2p_ref,       # (64, 128)    f32  fc2 weight.T, lane-padded
                   b2p_ref,       # (1, 128)     f32  lane-padded
                   out_ref):      # (BB, 128)    f32
    BB = guessed_ref.shape[0]

    # --- argmax -> one-hot for all T*BB rows at once (hoisted out of loop) ---
    # torch.argmax ties break to the first maximum (min index over equal-max).
    w_all = word_ref[...].reshape(T * BB, V)                    # BB % 8 == 0
    col = lax.broadcasted_iota(jnp.int32, (T * BB, V), 1)
    row_max = jnp.max(w_all, axis=1, keepdims=True)
    idx = jnp.min(jnp.where(w_all == row_max, col, V), axis=1, keepdims=True)
    onehot = (col == idx).astype(jnp.float32)                   # (T*BB, V)

    # --- input-gate projections for both directions, off the serial path ---
    # LSTM biases are already folded into af/ar (one-hot rows sum to 1).
    gxf = jnp.dot(onehot, af_ref[...],
                  preferred_element_type=jnp.float32)           # (T*BB, 4H)
    gxr = jnp.dot(onehot[(T - 1) * BB:, :], ar_ref[...],
                  preferred_element_type=jnp.float32)           # (BB, 4H)

    whh = whh_f_ref[...]

    # --- forward recurrence: per-step critical path = h @ W_hh + activations ---
    h = None
    c = None
    for t in range(T):                       # static unroll, tiny carried state
        g_t = gxf[t * BB:(t + 1) * BB, :]
        if t == 0:
            gates = g_t                      # h0 == 0  ->  skip h @ W_hh
        else:
            gates = g_t + jnp.dot(h, whh, preferred_element_type=jnp.float32)
        i = jax.nn.sigmoid(gates[:, 0 * H:1 * H])
        f = jax.nn.sigmoid(gates[:, 1 * H:2 * H])
        g = jnp.tanh(gates[:, 2 * H:3 * H])
        o = jax.nn.sigmoid(gates[:, 3 * H:4 * H])
        c = i * g if t == 0 else f * c + i * g
        h = o * jnp.tanh(c)
    h_fwd = h

    # --- reverse direction: lstm_out[:, -1, H:] is the reverse cell after its
    #     FIRST step (input x_{T-1}, zero initial state -> W_hh_rev drops out).
    ir = jax.nn.sigmoid(gxr[:, 0 * H:1 * H])
    gr = jnp.tanh(gxr[:, 2 * H:3 * H])
    og = jax.nn.sigmoid(gxr[:, 3 * H:4 * H])
    h_bwd = og * jnp.tanh(ir * gr)

    # --- head: concat([h_fwd, h_bwd, guessed]) folded into partial matmuls ---
    z = (jnp.dot(h_fwd, w1t_ref[0:H, :], preferred_element_type=jnp.float32)
         + jnp.dot(h_bwd, w1t_ref[H:2 * H, :], preferred_element_type=jnp.float32)
         + jnp.dot(guessed_ref[...], w1t_ref[2 * H:2 * H + ALPHABET, :],
                   preferred_element_type=jnp.float32)
         + b1_ref[...])
    z = jnp.maximum(z, 0.0)
    out_ref[...] = (jnp.dot(z, w2p_ref[...], preferred_element_type=jnp.float32)
                    + b2p_ref[...])


# ------------------------------ wrapper ----------------------------------- #
def _round_up(x, m):
    return (x + m - 1) // m * m


def prepare_params(p):
    """One-time parameter repack: fused input-projection tables (bias folded),
    pre-transposed weights, lane-padded head."""
    f32 = jnp.float32
    hp = lax.Precision.HIGHEST     # tiny one-time fusion, keep it accurate
    af = (jnp.dot(p["emb"], p["wih_f"].T, precision=hp)
          + (p["bih_f"] + p["bhh_f"])[None, :]).astype(f32)      # (V, 4H)
    ar = (jnp.dot(p["emb"], p["wih_r"].T, precision=hp)
          + (p["bih_r"] + p["bhh_r"])[None, :]).astype(f32)      # (V, 4H)
    w2p = jnp.zeros((FC1, OUT_PAD), f32).at[:, :ALPHABET].set(p["w2"].T)
    b2p = jnp.zeros((1, OUT_PAD), f32).at[:, :ALPHABET].set(p["b2"][None, :])
    return dict(
        af=af, ar=ar,
        whh_f=p["whh_f"].T.astype(f32),          # (H, 4H)
        w1t=p["w1"].T.astype(f32),               # (2H+26, FC1)
        b1=p["b1"][None, :].astype(f32),         # (1, FC1)
        w2p=w2p, b2p=b2p,
    )


def hangman_policy_pallas(x, p, *, block_b=256):
    """x: (B, 566) f32.  block_b: batch rows per grid step (kept modest so the
    per-block gate_x / word footprint stays well inside v7x's smaller VMEM)."""
    B = x.shape[0]
    pp = prepare_params(p)

    # Pad batch to a sublane multiple and pick a batch block.
    bb = min(_round_up(block_b, 8), _round_up(B, 8))
    Bp = _round_up(B, bb)
    n_blocks = Bp // bb

    word = x[:, :T * V].reshape(B, T, V)
    guessed = x[:, T * V:]
    word_tbv = jnp.transpose(word, (1, 0, 2))                    # (T, B, V)
    if Bp != B:
        word_tbv = jnp.pad(word_tbv, ((0, 0), (0, Bp - B), (0, 0)))
        guessed = jnp.pad(guessed, ((0, Bp - B), (0, 0)))

    full = lambda i: (0, 0)    # weights stay resident across the batch grid
    in_specs = [
        pl.BlockSpec((T, bb, V), lambda i: (0, i, 0)),           # word
        pl.BlockSpec((bb, ALPHABET), lambda i: (i, 0)),          # guessed
        pl.BlockSpec((V, G4), full),                             # af
        pl.BlockSpec((V, G4), full),                             # ar
        pl.BlockSpec((H, G4), full),                             # whh_f
        pl.BlockSpec((2 * H + ALPHABET, FC1), full),             # w1t
        pl.BlockSpec((1, FC1), full),                            # b1
        pl.BlockSpec((FC1, OUT_PAD), full),                      # w2p
        pl.BlockSpec((1, OUT_PAD), full),                        # b2p
    ]
    out_padded = pl.pallas_call(
        hangman_kernel,
        out_shape=jax.ShapeDtypeStruct((Bp, OUT_PAD), jnp.float32),
        grid=(n_blocks,),
        in_specs=in_specs,
        out_specs=pl.BlockSpec((bb, OUT_PAD), lambda i: (i, 0)),
        compiler_params=pltpu.CompilerParams(
            dimension_semantics=("parallel",)),
    )(word_tbv, guessed, pp["af"], pp["ar"], pp["whh_f"],
      pp["w1t"], pp["b1"], pp["w2p"], pp["b2p"])
    return out_padded[:B, :ALPHABET]


# ------------------------- deterministic params ---------------------------- #
def make_params(key):
    ks = jax.random.split(key, 14)

    def u(k, shape, scale=0.1):
        return jax.random.uniform(k, shape, jnp.float32, -1.0, 1.0) * scale

    return dict(
        emb=u(ks[0], (V, E), 1.0),            # nn.Embedding(27, 32)
        wih_f=u(ks[1], (4 * H, E)),           # lstm.weight_ih_l0
        whh_f=u(ks[2], (4 * H, H)),           # lstm.weight_hh_l0
        bih_f=u(ks[3], (4 * H,)),
        bhh_f=u(ks[4], (4 * H,)),
        wih_r=u(ks[5], (4 * H, E)),           # lstm.weight_ih_l0_reverse
        whh_r=u(ks[6], (4 * H, H)),           # used only by the reference
        bih_r=u(ks[7], (4 * H,)),
        bhh_r=u(ks[8], (4 * H,)),
        w1=u(ks[9], (FC1, 2 * H + ALPHABET)), # fc1.weight
        b1=u(ks[10], (FC1,)),
        w2=u(ks[11], (ALPHABET, FC1)),        # fc2.weight
        b2=u(ks[12], (ALPHABET,)),
    )


# ---------------------------- pure-JAX reference --------------------------- #
def hangman_policy_ref(x, p):
    B = x.shape[0]
    word = x[:, :T * V].reshape(B, T, V)
    guessed = x[:, T * V:]
    idx = jnp.argmax(word, axis=2)
    embeds = p["emb"][idx]                                # (B, T, E)
    xs = jnp.transpose(embeds, (1, 0, 2))                 # (T, B, E)

    def make_step(wih, whh, bih, bhh):
        def step(carry, x_t):
            h, c = carry
            gates = x_t @ wih.T + bih + h @ whh.T + bhh
            i, f, g, o = jnp.split(gates, 4, axis=1)
            i, f, o = jax.nn.sigmoid(i), jax.nn.sigmoid(f), jax.nn.sigmoid(o)
            g = jnp.tanh(g)
            c = f * c + i * g
            h = o * jnp.tanh(c)
            return (h, c), h
        return step

    h0 = jnp.zeros((B, H), jnp.float32)
    c0 = jnp.zeros((B, H), jnp.float32)
    _, hs_f = lax.scan(make_step(p["wih_f"], p["whh_f"], p["bih_f"], p["bhh_f"]),
                       (h0, c0), xs)
    _, hs_b_rev = lax.scan(make_step(p["wih_r"], p["whh_r"], p["bih_r"], p["bhh_r"]),
                           (h0, c0), xs[::-1])
    hs_b = hs_b_rev[::-1]
    last_hidden = jnp.concatenate([hs_f[-1], hs_b[-1]], axis=1)   # (B, 128)
    combined = jnp.concatenate([last_hidden, guessed], axis=1)    # (B, 154)
    z = jnp.maximum(combined @ p["w1"].T + p["b1"], 0.0)
    return z @ p["w2"].T + p["b2"]


# --------------------------------- main ------------------------------------ #
if __name__ == "__main__":
    key = jax.random.PRNGKey(0)
    k_x, k_g, k_p = jax.random.split(key, 3)

    B = 4
    word_part = jax.random.uniform(k_x, (B, T * V), jnp.float32)      # (4, 540)
    guessed_part = jax.random.bernoulli(k_g, 0.3, (B, ALPHABET)).astype(jnp.float32)
    x = jnp.concatenate([word_part, guessed_part], axis=1)            # (4, 566)

    params = make_params(k_p)

    out = jax.block_until_ready(hangman_policy_pallas(x, params))
    ref = jax.block_until_ready(hangman_policy_ref(x, params))

    assert out.shape == (B, ALPHABET)
    assert jnp.allclose(out, ref, rtol=2e-2, atol=2e-2), (
        f"max abs diff = {jnp.max(jnp.abs(out - ref))}")

    print("KERNEL_OK")
</pallas_src>

<mosaic_0001>
module attributes {stable_mosaic.version = 11 : i64} {
  func.func @hangman_kernel(%arg0: i32, %arg1: memref<20x8x27xf32, #tpu.memory_space<vmem>>, %arg2: memref<8x26xf32, #tpu.memory_space<vmem>>, %arg3: memref<27x256xf32, #tpu.memory_space<vmem>>, %arg4: memref<27x256xf32, #tpu.memory_space<vmem>>, %arg5: memref<64x256xf32, #tpu.memory_space<vmem>>, %arg6: memref<154x64xf32, #tpu.memory_space<vmem>>, %arg7: memref<1x64xf32, #tpu.memory_space<vmem>>, %arg8: memref<64x128xf32, #tpu.memory_space<vmem>>, %arg9: memref<1x128xf32, #tpu.memory_space<vmem>>, %arg10: memref<8x128xf32, #tpu.memory_space<vmem>>) attributes {dimension_semantics = [#tpu.dimension_semantics<parallel>], iteration_bounds = array<i64: 1>, scalar_prefetch = 0 : i64, scratch_operands = 0 : i64, tpu.core_type = #tpu.core_type<tc>, window_params = [{transform_indices = @transform_0, window_bounds = array<i64: 20, 8, 27>}, {transform_indices = @transform_1, window_bounds = array<i64: 8, 26>}, {pipeline_mode = #tpu.pipeline_mode<synchronous>, transform_indices = @transform_2, window_bounds = array<i64: 27, 256>}, {pipeline_mode = #tpu.pipeline_mode<synchronous>, transform_indices = @transform_3, window_bounds = array<i64: 27, 256>}, {pipeline_mode = #tpu.pipeline_mode<synchronous>, transform_indices = @transform_4, window_bounds = array<i64: 64, 256>}, {pipeline_mode = #tpu.pipeline_mode<synchronous>, transform_indices = @transform_5, window_bounds = array<i64: 154, 64>}, {pipeline_mode = #tpu.pipeline_mode<synchronous>, transform_indices = @transform_6, window_bounds = array<i64: 1, 64>}, {pipeline_mode = #tpu.pipeline_mode<synchronous>, transform_indices = @transform_7, window_bounds = array<i64: 64, 128>}, {pipeline_mode = #tpu.pipeline_mode<synchronous>, transform_indices = @transform_8, window_bounds = array<i64: 1, 128>}, {transform_indices = @transform_9, window_bounds = array<i64: 8, 128>}]} {
    %c0 = arith.constant 0 : index
    %c0_0 = arith.constant 0 : index
    %c0_1 = arith.constant 0 : index
    %0 = vector.load %arg1[%c0, %c0_0, %c0_1] : memref<20x8x27xf32, #tpu.memory_space<vmem>>, vector<20x8x27xf32>
    %1 = vector.shape_cast %0 : vector<20x8x27xf32> to vector<160x27xf32>
    %2 = tpu.iota {dimensions = array<i32: 1>} : vector<160x27xi32>
    %cst = arith.constant dense<0xFF800000> : vector<160xf32>
    %3 = vector.multi_reduction <maximumf>, %1, %cst [1] : vector<160x27xf32> to vector<160xf32>
    %4 = vector.shape_cast %3 : vector<160xf32> to vector<160x1xf32>
    %5 = vector.broadcast %4 : vector<160x1xf32> to vector<160x27xf32>
    %6 = arith.cmpf oeq, %1, %5 : vector<160x27xf32>
    %c27_i32 = arith.constant 27 : i32
    %7 = vector.broadcast %c27_i32 : i32 to vector<160x27xi32>
    %8 = arith.select %6, %2, %7 : vector<160x27xi1>, vector<160x27xi32>
    %cst_2 = arith.constant dense<2147483647> : vector<160xi32>
    %9 = vector.multi_reduction <minsi>, %8, %cst_2 [1] : vector<160x27xi32> to vector<160xi32>
    %10 = vector.shape_cast %9 : vector<160xi32> to vector<160x1xi32>
    %11 = vector.broadcast %10 : vector<160x1xi32> to vector<160x27xi32>
    %12 = arith.cmpi eq, %2, %11 : vector<160x27xi32>
    %13 = arith.extui %12 : vector<160x27xi1> to vector<160x27xi32>
    %14 = arith.sitofp %13 : vector<160x27xi32> to vector<160x27xf32>
    %c0_3 = arith.constant 0 : index
    %c0_4 = arith.constant 0 : index
    %15 = vector.load %arg3[%c0_3, %c0_4] : memref<27x256xf32, #tpu.memory_space<vmem>>, vector<27x256xf32>
    %cst_5 = arith.constant dense<0.000000e+00> : vector<160x256xf32>
    %16 = tpu.matmul %14, %15, %cst_5 {dimension_numbers = #tpu.dot_dimension_numbers<[1], [0], [0], [1], [0, 0, 1, 1], [], []>} : vector<160x27xf32>, vector<27x256xf32>, vector<160x256xf32> -> vector<160x256xf32>
    %17 = vector.extract_strided_slice %14 {offsets = [152, 0], sizes = [8, 27], strides = [1, 1]} : vector<160x27xf32> to vector<8x27xf32>
    %c0_6 = arith.constant 0 : index
    %c0_7 = arith.constant 0 : index
    %18 = vector.load %arg4[%c0_6, %c0_7] : memref<27x256xf32, #tpu.memory_space<vmem>>, vector<27x256xf32>
    %cst_8 = arith.constant dense<0.000000e+00> : vector<8x256xf32>
    %19 = tpu.matmul %17, %18, %cst_8 {dimension_numbers = #tpu.dot_dimension_numbers<[1], [0], [0], [1], [0, 0, 1, 1], [], []>} : vector<8x27xf32>, vector<27x256xf32>, vector<8x256xf32> -> vector<8x256xf32>
    %c0_9 = arith.constant 0 : index
    %c0_10 = arith.constant 0 : index
    %20 = vector.load %arg5[%c0_9, %c0_10] : memref<64x256xf32, #tpu.memory_space<vmem>>, vector<64x256xf32>
    %21 = vector.extract_strided_slice %16 {offsets = [0, 0], sizes = [8, 256], strides = [1, 1]} : vector<160x256xf32> to vector<8x256xf32>
    %22 = vector.extract_strided_slice %21 {offsets = [0, 0], sizes = [8, 64], strides = [1, 1]} : vector<8x256xf32> to vector<8x64xf32>
    %23 = arith.negf %22 : vector<8x64xf32>
    %24 = math.exp %23 : vector<8x64xf32>
    %cst_11 = arith.constant 1.000000e+00 : f32
    %25 = vector.broadcast %cst_11 : f32 to vector<8x64xf32>
    %26 = arith.addf %25, %24 : vector<8x64xf32>
    %27 = arith.divf %25, %26 : vector<8x64xf32>
    %28 = vector.extract_strided_slice %21 {offsets = [0, 128], sizes = [8, 64], strides = [1, 1]} : vector<8x256xf32> to vector<8x64xf32>
    %29 = math.tanh %28 : vector<8x64xf32>
    %30 = vector.extract_strided_slice %21 {offsets = [0, 192], sizes = [8, 64], strides = [1, 1]} : vector<8x256xf32> to vector<8x64xf32>
    %31 = arith.negf %30 : vector<8x64xf32>
    %32 = math.exp %31 : vector<8x64xf32>
    %cst_12 = arith.constant 1.000000e+00 : f32
    %33 = vector.broadcast %cst_12 : f32 to vector<8x64xf32>
    %34 = arith.addf %33, %32 : vector<8x64xf32>
    %35 = arith.divf %33, %34 : vector<8x64xf32>
    %36 = arith.mulf %27, %29 : vector<8x64xf32>
    %37 = math.tanh %36 : vector<8x64xf32>
    %38 = arith.mulf %35, %37 : vector<8x64xf32>
    %39 = vector.extract_strided_slice %16 {offsets = [8, 0], sizes = [8, 256], strides = [1, 1]} : vector<160x256xf32> to vector<8x256xf32>
    %cst_13 = arith.constant dense<0.000000e+00> : vector<8x256xf32>
    %40 = tpu.matmul %38, %20, %cst_13 {dimension_numbers = #tpu.dot_dimension_numbers<[1], [0], [0], [1], [0, 0, 1, 1], [], []>} : vector<8x64xf32>, vector<64x256xf32>, vector<8x256xf32> -> vector<8x256xf32>
    %41 = arith.addf %39, %40 : vector<8x256xf32>
    %42 = vector.extract_strided_slice %41 {offsets = [0, 0], sizes = [8, 64], strides = [1, 1]} : vector<8x256xf32> to vector<8x64xf32>
    %43 = arith.negf %42 : vector<8x64xf32>
    %44 = math.exp %43 : vector<8x64xf32>
    %cst_14 = arith.constant 1.000000e+00 : f32
    %45 = vector.broadcast %cst_14 : f32 to vector<8x64xf32>
    %46 = arith.addf %45, %44 : vector<8x64xf32>
    %47 = arith.divf %45, %46 : vector<8x64xf32>
    %48 = vector.extract_strided_slice %41 {offsets = [0, 64], sizes = [8, 64], strides = [1, 1]} : vector<8x256xf32> to vector<8x64xf32>
    %49 = arith.negf %48 : vector<8x64xf32>
    %50 = math.exp %49 : vector<8x64xf32>
    %cst_15 = arith.constant 1.000000e+00 : f32
    %51 = vector.broadcast %cst_15 : f32 to vector<8x64xf32>
    %52 = arith.addf %51, %50 : vector<8x64xf32>
    %53 = arith.divf %51, %52 : vector<8x64xf32>
    %54 = vector.extract_strided_slice %41 {offsets = [0, 128], sizes = [8, 64], strides = [1, 1]} : vector<8x256xf32> to vector<8x64xf32>
    %55 = math.tanh %54 : vector<8x64xf32>
    %56 = vector.extract_strided_slice %41 {offsets = [0, 192], sizes = [8, 64], strides = [1, 1]} : vector<8x256xf32> to vector<8x64xf32>
    %57 = arith.negf %56 : vector<8x64xf32>
    %58 = math.exp %57 : vector<8x64xf32>
    %cst_16 = arith.constant 1.000000e+00 : f32
    %59 = vector.broadcast %cst_16 : f32 to vector<8x64xf32>
    %60 = arith.addf %59, %58 : vector<8x64xf32>
    %61 = arith.divf %59, %60 : vector<8x64xf32>
    %62 = arith.mulf %53, %36 : vector<8x64xf32>
    %63 = arith.mulf %47, %55 : vector<8x64xf32>
    %64 = arith.addf %62, %63 : vector<8x64xf32>
    %65 = math.tanh %64 : vector<8x64xf32>
    %66 = arith.mulf %61, %65 : vector<8x64xf32>
    %67 = vector.extract_strided_slice %16 {offsets = [16, 0], sizes = [8, 256], strides = [1, 1]} : vector<160x256xf32> to vector<8x256xf32>
    %cst_17 = arith.constant dense<0.000000e+00> : vector<8x256xf32>
    %68 = tpu.matmul %66, %20, %cst_17 {dimension_numbers = #tpu.dot_dimension_numbers<[1], [0], [0], [1], [0, 0, 1, 1], [], []>} : vector<8x64xf32>, vector<64x256xf32>, vector<8x256xf32> -> vector<8x256xf32>
    %69 = arith.addf %67, %68 : vector<8x256xf32>
    %70 = vector.extract_strided_slice %69 {offsets = [0, 0], sizes = [8, 64], strides = [1, 1]} : vector<8x256xf32> to vector<8x64xf32>
    %71 = arith.negf %70 : vector<8x64xf32>
    %72 = math.exp %71 : vector<8x64xf32>
    %cst_18 = arith.constant 1.000000e+00 : f32
    %73 = vector.broadcast %cst_18 : f32 to vector<8x64xf32>
    %74 = arith.addf %73, %72 : vector<8x64xf32>
    %75 = arith.divf %73, %74 : vector<8x64xf32>
    %76 = vector.extract_strided_slice %69 {offsets = [0, 64], sizes = [8, 64], strides = [1, 1]} : vector<8x256xf32> to vector<8x64xf32>
    %77 = arith.negf %76 : vector<8x64xf32>
    %78 = math.exp %77 : vector<8x64xf32>
    %cst_19 = arith.constant 1.000000e+00 : f32
    %79 = vector.broadcast %cst_19 : f32 to vector<8x64xf32>
    %80 = arith.addf %79, %78 : vector<8x64xf32>
    %81 = arith.divf %79, %80 : vector<8x64xf32>
    %82 = vector.extract_strided_slice %69 {offsets = [0, 128], sizes = [8, 64], strides = [1, 1]} : vector<8x256xf32> to vector<8x64xf32>
    %83 = math.tanh %82 : vector<8x64xf32>
    %84 = vector.extract_strided_slice %69 {offsets = [0, 192], sizes = [8, 64], strides = [1, 1]} : vector<8x256xf32> to vector<8x64xf32>
    %85 = arith.negf %84 : vector<8x64xf32>
    %86 = math.exp %85 : vector<8x64xf32>
    %cst_20 = arith.constant 1.000000e+00 : f32
    %87 = vector.broadcast %cst_20 : f32 to vector<8x64xf32>
    %88 = arith.addf %87, %86 : vector<8x64xf32>
    %89 = arith.divf %87, %88 : vector<8x64xf32>
    %90 = arith.mulf %81, %64 : vector<8x64xf32>
    %91 = arith.mulf %75, %83 : vector<8x64xf32>
    %92 = arith.addf %90, %91 : vector<8x64xf32>
    %93 = math.tanh %92 : vector<8x64xf32>
    %94 = arith.mulf %89, %93 : vector<8x64xf32>
    %95 = vector.extract_strided_slice %16 {offsets = [24, 0], sizes = [8, 256], strides = [1, 1]} : vector<160x256xf32> to vector<8x256xf32>
    %cst_21 = arith.constant dense<0.000000e+00> : vector<8x256xf32>
    %96 = tpu.matmul %94, %20, %cst_21 {dimension_numbers = #tpu.dot_dimension_numbers<[1], [0], [0], [1], [0, 0, 1, 1], [], []>} : vector<8x64xf32>, vector<64x256xf32>, vector<8x256xf32> -> vector<8x256xf32>
    %97 = arith.addf %95, %96 : vector<8x256xf32>
    %98 = vector.extract_strided_slice %97 {offsets = [0, 0], sizes = [8, 64], strides = [1, 1]} : vector<8x256xf32> to vector<8x64xf32>
    %99 = arith.negf %98 : vector<8x64xf32>
    %100 = math.exp %99 : vector<8x64xf32>
    %cst_22 = arith.constant 1.000000e+00 : f32
    %101 = vector.broadcast %cst_22 : f32 to vector<8x64xf32>
    %102 = arith.addf %101, %100 : vector<8x64xf32>
    %103 = arith.divf %101, %102 : vector<8x64xf32>
    %104 = vector.extract_strided_slice %97 {offsets = [0, 64], sizes = [8, 64], strides = [1, 1]} : vector<8x256xf32> to vector<8x64xf32>
    %105 = arith.negf %104 : vector<8x64xf32>
    %106 = math.exp %105 : vector<8x64xf32>
    %cst_23 = arith.constant 1.000000e+00 : f32
    %107 = vector.broadcast %cst_23 : f32 to vector<8x64xf32>
    %108 = arith.addf %107, %106 : vector<8x64xf32>
    %109 = arith.divf %107, %108 : vector<8x64xf32>
    %110 = vector.extract_strided_slice %97 {offsets = [0, 128], sizes = [8, 64], strides = [1, 1]} : vector<8x256xf32> to vector<8x64xf32>
    %111 = math.tanh %110 : vector<8x64xf32>
    %112 = vector.extract_strided_slice %97 {offsets = [0, 192], sizes = [8, 64], strides = [1, 1]} : vector<8x256xf32> to vector<8x64xf32>
    %113 = arith.negf %112 : vector<8x64xf32>
    %114 = math.exp %113 : vector<8x64xf32>
    %cst_24 = arith.constant 1.000000e+00 : f32
    %115 = vector.broadcast %cst_24 : f32 to vector<8x64xf32>
    %116 = arith.addf %115, %114 : vector<8x64xf32>
    %117 = arith.divf %115, %116 : vector<8x64xf32>
    %118 = arith.mulf %109, %92 : vector<8x64xf32>
    %119 = arith.mulf %103, %111 : vector<8x64xf32>
    %120 = arith.addf %118, %119 : vector<8x64xf32>
    %121 = math.tanh %120 : vector<8x64xf32>
    %122 = arith.mulf %117, %121 : vector<8x64xf32>
    %123 = vector.extract_strided_slice %16 {offsets = [32, 0], sizes = [8, 256], strides = [1, 1]} : vector<160x256xf32> to vector<8x256xf32>
    %cst_25 = arith.constant dense<0.000000e+00> : vector<8x256xf32>
    %124 = tpu.matmul %122, %20, %cst_25 {dimension_numbers = #tpu.dot_dimension_numbers<[1], [0], [0], [1], [0, 0, 1, 1], [], []>} : vector<8x64xf32>, vector<64x256xf32>, vector<8x256xf32> -> vector<8x256xf32>
    %125 = arith.addf %123, %124 : vector<8x256xf32>
    %126 = vector.extract_strided_slice %125 {offsets = [0, 0], sizes = [8, 64], strides = [1, 1]} : vector<8x256xf32> to vector<8x64xf32>
    %127 = arith.negf %126 : vector<8x64xf32>
    %128 = math.exp %127 : vector<8x64xf32>
    %cst_26 = arith.constant 1.000000e+00 : f32
    %129 = vector.broadcast %cst_26 : f32 to vector<8x64xf32>
    %130 = arith.addf %129, %128 : vector<8x64xf32>
    %131 = arith.divf %129, %130 : vector<8x64xf32>
    %132 = vector.extract_strided_slice %125 {offsets = [0, 64], sizes = [8, 64], strides = [1, 1]} : vector<8x256xf32> to vector<8x64xf32>
    %133 = arith.negf %132 : vector<8x64xf32>
    %134 = math.exp %133 : vector<8x64xf32>
    %cst_27 = arith.constant 1.000000e+00 : f32
    %135 = vector.broadcast %cst_27 : f32 to vector<8x64xf32>
    %136 = arith.addf %135, %134 : vector<8x64xf32>
    %137 = arith.divf %135, %136 : vector<8x64xf32>
    %138 = vector.extract_strided_slice %125 {offsets = [0, 128], sizes = [8, 64], strides = [1, 1]} : vector<8x256xf32> to vector<8x64xf32>
    %139 = math.tanh %138 : vector<8x64xf32>
    %140 = vector.extract_strided_slice %125 {offsets = [0, 192], sizes = [8, 64], strides = [1, 1]} : vector<8x256xf32> to vector<8x64xf32>
    %141 = arith.negf %140 : vector<8x64xf32>
    %142 = math.exp %141 : vector<8x64xf32>
    %cst_28 = arith.constant 1.000000e+00 : f32
    %143 = vector.broadcast %cst_28 : f32 to vector<8x64xf32>
    %144 = arith.addf %143, %142 : vector<8x64xf32>
    %145 = arith.divf %143, %144 : vector<8x64xf32>
    %146 = arith.mulf %137, %120 : vector<8x64xf32>
    %147 = arith.mulf %131, %139 : vector<8x64xf32>
    %148 = arith.addf %146, %147 : vector<8x64xf32>
    %149 = math.tanh %148 : vector<8x64xf32>
    %150 = arith.mulf %145, %149 : vector<8x64xf32>
    %151 = vector.extract_strided_slice %16 {offsets = [40, 0], sizes = [8, 256], strides = [1, 1]} : vector<160x256xf32> to vector<8x256xf32>
    %cst_29 = arith.constant dense<0.000000e+00> : vector<8x256xf32>
    %152 = tpu.matmul %150, %20, %cst_29 {dimension_numbers = #tpu.dot_dimension_numbers<[1], [0], [0], [1], [0, 0, 1, 1], [], []>} : vector<8x64xf32>, vector<64x256xf32>, vector<8x256xf32> -> vector<8x256xf32>
    %153 = arith.addf %151, %152 : vector<8x256xf32>
    %154 = vector.extract_strided_slice %153 {offsets = [0, 0], sizes = [8, 64], strides = [1, 1]} : vector<8x256xf32> to vector<8x64xf32>
    %155 = arith.negf %154 : vector<8x64xf32>
    %156 = math.exp %155 : vector<8x64xf32>
    %cst_30 = arith.constant 1.000000e+00 : f32
    %157 = vector.broadcast %cst_30 : f32 to vector<8x64xf32>
    %158 = arith.addf %157, %156 : vector<8x64xf32>
    %159 = arith.divf %157, %158 : vector<8x64xf32>
    %160 = vector.extract_strided_slice %153 {offsets = [0, 64], sizes = [8, 64], strides = [1, 1]} : vector<8x256xf32> to vector<8x64xf32>
    %161 = arith.negf %160 : vector<8x64xf32>
    %162 = math.exp %161 : vector<8x64xf32>
    %cst_31 = arith.constant 1.000000e+00 : f32
    %163 = vector.broadcast %cst_31 : f32 to vector<8x64xf32>
    %164 = arith.addf %163, %162 : vector<8x64xf32>
    %165 = arith.divf %163, %164 : vector<8x64xf32>
    %166 = vector.extract_strided_slice %153 {offsets = [0, 128], sizes = [8, 64], strides = [1, 1]} : vector<8x256xf32> to vector<8x64xf32>
    %167 = math.tanh %166 : vector<8x64xf32>
    %168 = vector.extract_strided_slice %153 {offsets = [0, 192], sizes = [8, 64], strides = [1, 1]} : vector<8x256xf32> to vector<8x64xf32>
    %169 = arith.negf %168 : vector<8x64xf32>
    %170 = math.exp %169 : vector<8x64xf32>
    %cst_32 = arith.constant 1.000000e+00 : f32
    %171 = vector.broadcast %cst_32 : f32 to vector<8x64xf32>
    %172 = arith.addf %171, %170 : vector<8x64xf32>
    %173 = arith.divf %171, %172 : vector<8x64xf32>
    %174 = arith.mulf %165, %148 : vector<8x64xf32>
    %175 = arith.mulf %159, %167 : vector<8x64xf32>
    %176 = arith.addf %174, %175 : vector<8x64xf32>
    %177 = math.tanh %176 : vector<8x64xf32>
    %178 = arith.mulf %173, %177 : vector<8x64xf32>
    %179 = vector.extract_strided_slice %16 {offsets = [48, 0], sizes = [8, 256], strides = [1, 1]} : vector<160x256xf32> to vector<8x256xf32>
    %cst_33 = arith.constant dense<0.000000e+00> : vector<8x256xf32>
    %180 = tpu.matmul %178, %20, %cst_33 {dimension_numbers = #tpu.dot_dimension_numbers<[1], [0], [0], [1], [0, 0, 1, 1], [], []>} : vector<8x64xf32>, vector<64x256xf32>, vector<8x256xf32> -> vector<8x256xf32>
    %181 = arith.addf %179, %180 : vector<8x256xf32>
    %182 = vector.extract_strided_slice %181 {offsets = [0, 0], sizes = [8, 64], strides = [1, 1]} : vector<8x256xf32> to vector<8x64xf32>
    %183 = arith.negf %182 : vector<8x64xf32>
    %184 = math.exp %183 : vector<8x64xf32>
    %cst_34 = arith.constant 1.000000e+00 : f32
    %185 = vector.broadcast %cst_34 : f32 to vector<8x64xf32>
    %186 = arith.addf %185, %184 : vector<8x64xf32>
    %187 = arith.divf %185, %186 : vector<8x64xf32>
    %188 = vector.extract_strided_slice %181 {offsets = [0, 64], sizes = [8, 64], strides = [1, 1]} : vector<8x256xf32> to vector<8x64xf32>
    %189 = arith.negf %188 : vector<8x64xf32>
    %190 = math.exp %189 : vector<8x64xf32>
    %cst_35 = arith.constant 1.000000e+00 : f32
    %191 = vector.broadcast %cst_35 : f32 to vector<8x64xf32>
    %192 = arith.addf %191, %190 : vector<8x64xf32>
    %193 = arith.divf %191, %192 : vector<8x64xf32>
    %194 = vector.extract_strided_slice %181 {offsets = [0, 128], sizes = [8, 64], strides = [1, 1]} : vector<8x256xf32> to vector<8x64xf32>
    %195 = math.tanh %194 : vector<8x64xf32>
    %196 = vector.extract_strided_slice %181 {offsets = [0, 192], sizes = [8, 64], strides = [1, 1]} : vector<8x256xf32> to vector<8x64xf32>
    %197 = arith.negf %196 : vector<8x64xf32>
    %198 = math.exp %197 : vector<8x64xf32>
    %cst_36 = arith.constant 1.000000e+00 : f32
    %199 = vector.broadcast %cst_36 : f32 to vector<8x64xf32>
    %200 = arith.addf %199, %198 : vector<8x64xf32>
    %201 = arith.divf %199, %200 : vector<8x64xf32>
    %202 = arith.mulf %193, %176 : vector<8x64xf32>
    %203 = arith.mulf %187, %195 : vector<8x64xf32>
    %204 = arith.addf %202, %203 : vector<8x64xf32>
    %205 = math.tanh %204 : vector<8x64xf32>
    %206 = arith.mulf %201, %205 : vector<8x64xf32>
    %207 = vector.extract_strided_slice %16 {offsets = [56, 0], sizes = [8, 256], strides = [1, 1]} : vector<160x256xf32> to vector<8x256xf32>
    %cst_37 = arith.constant dense<0.000000e+00> : vector<8x256xf32>
    %208 = tpu.matmul %206, %20, %cst_37 {dimension_numbers = #tpu.dot_dimension_numbers<[1], [0], [0], [1], [0, 0, 1, 1], [], []>} : vector<8x64xf32>, vector<64x256xf32>, vector<8x256xf32> -> vector<8x256xf32>
    %209 = arith.addf %207, %208 : vector<8x256xf32>
    %210 = vector.extract_strided_slice %209 {offsets = [0, 0], sizes = [8, 64], strides = [1, 1]} : vector<8x256xf32> to vector<8x64xf32>
    %211 = arith.negf %210 : vector<8x64xf32>
    %212 = math.exp %211 : vector<8x64xf32>
    %cst_38 = arith.constant 1.000000e+00 : f32
    %213 = vector.broadcast %cst_38 : f32 to vector<8x64xf32>
    %214 = arith.addf %213, %212 : vector<8x64xf32>
    %215 = arith.divf %213, %214 : vector<8x64xf32>
    %216 = vector.extract_strided_slice %209 {offsets = [0, 64], sizes = [8, 64], strides = [1, 1]} : vector<8x256xf32> to vector<8x64xf32>
    %217 = arith.negf %216 : vector<8x64xf32>
    %218 = math.exp %217 : vector<8x64xf32>
    %cst_39 = arith.constant 1.000000e+00 : f32
    %219 = vector.broadcast %cst_39 : f32 to vector<8x64xf32>
    %220 = arith.addf %219, %218 : vector<8x64xf32>
    %221 = arith.divf %219, %220 : vector<8x64xf32>
    %222 = vector.extract_strided_slice %209 {offsets = [0, 128], sizes = [8, 64], strides = [1, 1]} : vector<8x256xf32> to vector<8x64xf32>
    %223 = math.tanh %222 : vector<8x64xf32>
    %224 = vector.extract_strided_slice %209 {offsets = [0, 192], sizes = [8, 64], strides = [1, 1]} : vector<8x256xf32> to vector<8x64xf32>
    %225 = arith.negf %224 : vector<8x64xf32>
    %226 = math.exp %225 : vector<8x64xf32>
    %cst_40 = arith.constant 1.000000e+00 : f32
    %227 = vector.broadcast %cst_40 : f32 to vector<8x64xf32>
    %228 = arith.addf %227, %226 : vector<8x64xf32>
    %229 = arith.divf %227, %228 : vector<8x64xf32>
    %230 = arith.mulf %221, %204 : vector<8x64xf32>
    %231 = arith.mulf %215, %223 : vector<8x64xf32>
    %232 = arith.addf %230, %231 : vector<8x64xf32>
    %233 = math.tanh %232 : vector<8x64xf32>
    %234 = arith.mulf %229, %233 : vector<8x64xf32>
    %235 = vector.extract_strided_slice %16 {offsets = [64, 0], sizes = [8, 256], strides = [1, 1]} : vector<160x256xf32> to vector<8x256xf32>
    %cst_41 = arith.constant dense<0.000000e+00> : vector<8x256xf32>
    %236 = tpu.matmul %234, %20, %cst_41 {dimension_numbers = #tpu.dot_dimension_numbers<[1], [0], [0], [1], [0, 0, 1, 1], [], []>} : vector<8x64xf32>, vector<64x256xf32>, vector<8x256xf32> -> vector<8x256xf32>
    %237 = arith.addf %235, %236 : vector<8x256xf32>
    %238 = vector.extract_strided_slice %237 {offsets = [0, 0], sizes = [8, 64], strides = [1, 1]} : vector<8x256xf32> to vector<8x64xf32>
    %239 = arith.negf %238 : vector<8x64xf32>
    %240 = math.exp %239 : vector<8x64xf32>
    %cst_42 = arith.constant 1.000000e+00 : f32
    %241 = vector.broadcast %cst_42 : f32 to vector<8x64xf32>
    %242 = arith.addf %241, %240 : vector<8x64xf32>
    %243 = arith.divf %241, %242 : vector<8x64xf32>
    %244 = vector.extract_strided_slice %237 {offsets = [0, 64], sizes = [8, 64], strides = [1, 1]} : vector<8x256xf32> to vector<8x64xf32>
    %245 = arith.negf %244 : vector<8x64xf32>
    %246 = math.exp %245 : vector<8x64xf32>
    %cst_43 = arith.constant 1.000000e+00 : f32
    %247 = vector.broadcast %cst_43 : f32 to vector<8x64xf32>
    %248 = arith.addf %247, %246 : vector<8x64xf32>
    %249 = arith.divf %247, %248 : vector<8x64xf32>
    %250 = vector.extract_strided_slice %237 {offsets = [0, 128], sizes = [8, 64], strides = [1, 1]} : vector<8x256xf32> to vector<8x64xf32>
    %251 = math.tanh %250 : vector<8x64xf32>
    %252 = vector.extract_strided_slice %237 {offsets = [0, 192], sizes = [8, 64], strides = [1, 1]} : vector<8x256xf32> to vector<8x64xf32>
    %253 = arith.negf %252 : vector<8x64xf32>
    %254 = math.exp %253 : vector<8x64xf32>
    %cst_44 = arith.constant 1.000000e+00 : f32
    %255 = vector.broadcast %cst_44 : f32 to vector<8x64xf32>
    %256 = arith.addf %255, %254 : vector<8x64xf32>
    %257 = arith.divf %255, %256 : vector<8x64xf32>
    %258 = arith.mulf %249, %232 : vector<8x64xf32>
    %259 = arith.mulf %243, %251 : vector<8x64xf32>
    %260 = arith.addf %258, %259 : vector<8x64xf32>
    %261 = math.tanh %260 : vector<8x64xf32>
    %262 = arith.mulf %257, %261 : vector<8x64xf32>
    %263 = vector.extract_strided_slice %16 {offsets = [72, 0], sizes = [8, 256], strides = [1, 1]} : vector<160x256xf32> to vector<8x256xf32>
    %cst_45 = arith.constant dense<0.000000e+00> : vector<8x256xf32>
    %264 = tpu.matmul %262, %20, %cst_45 {dimension_numbers = #tpu.dot_dimension_numbers<[1], [0], [0], [1], [0, 0, 1, 1], [], []>} : vector<8x64xf32>, vector<64x256xf32>, vector<8x256xf32> -> vector<8x256xf32>
    %265 = arith.addf %263, %264 : vector<8x256xf32>
    %266 = vector.extract_strided_slice %265 {offsets = [0, 0], sizes = [8, 64], strides = [1, 1]} : vector<8x256xf32> to vector<8x64xf32>
    %267 = arith.negf %266 : vector<8x64xf32>
    %268 = math.exp %267 : vector<8x64xf32>
    %cst_46 = arith.constant 1.000000e+00 : f32
    %269 = vector.broadcast %cst_46 : f32 to vector<8x64xf32>
    %270 = arith.addf %269, %268 : vector<8x64xf32>
    %271 = arith.divf %269, %270 : vector<8x64xf32>
    %272 = vector.extract_strided_slice %265 {offsets = [0, 64], sizes = [8, 64], strides = [1, 1]} : vector<8x256xf32> to vector<8x64xf32>
    %273 = arith.negf %272 : vector<8x64xf32>
    %274 = math.exp %273 : vector<8x64xf32>
    %cst_47 = arith.constant 1.000000e+00 : f32
    %275 = vector.broadcast %cst_47 : f32 to vector<8x64xf32>
    %276 = arith.addf %275, %274 : vector<8x64xf32>
    %277 = arith.divf %275, %276 : vector<8x64xf32>
    %278 = vector.extract_strided_slice %265 {offsets = [0, 128], sizes = [8, 64], strides = [1, 1]} : vector<8x256xf32> to vector<8x64xf32>
    %279 = math.tanh %278 : vector<8x64xf32>
    %280 = vector.extract_strided_slice %265 {offsets = [0, 192], sizes = [8, 64], strides = [1, 1]} : vector<8x256xf32> to vector<8x64xf32>
    %281 = arith.negf %280 : vector<8x64xf32>
    %282 = math.exp %281 : vector<8x64xf32>
    %cst_48 = arith.constant 1.000000e+00 : f32
    %283 = vector.broadcast %cst_48 : f32 to vector<8x64xf32>
    %284 = arith.addf %283, %282 : vector<8x64xf32>
    %285 = arith.divf %283, %284 : vector<8x64xf32>
    %286 = arith.mulf %277, %260 : vector<8x64xf32>
    %287 = arith.mulf %271, %279 : vector<8x64xf32>
    %288 = arith.addf %286, %287 : vector<8x64xf32>
    %289 = math.tanh %288 : vector<8x64xf32>
    %290 = arith.mulf %285, %289 : vector<8x64xf32>
    %291 = vector.extract_strided_slice %16 {offsets = [80, 0], sizes = [8, 256], strides = [1, 1]} : vector<160x256xf32> to vector<8x256xf32>
    %cst_49 = arith.constant dense<0.000000e+00> : vector<8x256xf32>
    %292 = tpu.matmul %290, %20, %cst_49 {dimension_numbers = #tpu.dot_dimension_numbers<[1], [0], [0], [1], [0, 0, 1, 1], [], []>} : vector<8x64xf32>, vector<64x256xf32>, vector<8x256xf32> -> vector<8x256xf32>
    %293 = arith.addf %291, %292 : vector<8x256xf32>
    %294 = vector.extract_strided_slice %293 {offsets = [0, 0], sizes = [8, 64], strides = [1, 1]} : vector<8x256xf32> to vector<8x64xf32>
    %295 = arith.negf %294 : vector<8x64xf32>
    %296 = math.exp %295 : vector<8x64xf32>
    %cst_50 = arith.constant 1.000000e+00 : f32
    %297 = vector.broadcast %cst_50 : f32 to vector<8x64xf32>
    %298 = arith.addf %297, %296 : vector<8x64xf32>
    %299 = arith.divf %297, %298 : vector<8x64xf32>
    %300 = vector.extract_strided_slice %293 {offsets = [0, 64], sizes = [8, 64], strides = [1, 1]} : vector<8x256xf32> to vector<8x64xf32>
    %301 = arith.negf %300 : vector<8x64xf32>
    %302 = math.exp %301 : vector<8x64xf32>
    %cst_51 = arith.constant 1.000000e+00 : f32
    %303 = vector.broadcast %cst_51 : f32 to vector<8x64xf32>
    %304 = arith.addf %303, %302 : vector<8x64xf32>
    %305 = arith.divf %303, %304 : vector<8x64xf32>
    %306 = vector.extract_strided_slice %293 {offsets = [0, 128], sizes = [8, 64], strides = [1, 1]} : vector<8x256xf32> to vector<8x64xf32>
    %307 = math.tanh %306 : vector<8x64xf32>
    %308 = vector.extract_strided_slice %293 {offsets = [0, 192], sizes = [8, 64], strides = [1, 1]} : vector<8x256xf32> to vector<8x64xf32>
    %309 = arith.negf %308 : vector<8x64xf32>
    %310 = math.exp %309 : vector<8x64xf32>
    %cst_52 = arith.constant 1.000000e+00 : f32
    %311 = vector.broadcast %cst_52 : f32 to vector<8x64xf32>
    %312 = arith.addf %311, %310 : vector<8x64xf32>
    %313 = arith.divf %311, %312 : vector<8x64xf32>
    %314 = arith.mulf %305, %288 : vector<8x64xf32>
    %315 = arith.mulf %299, %307 : vector<8x64xf32>
    %316 = arith.addf %314, %315 : vector<8x64xf32>
    %317 = math.tanh %316 : vector<8x64xf32>
    %318 = arith.mulf %313, %317 : vector<8x64xf32>
    %319 = vector.extract_strided_slice %16 {offsets = [88, 0], sizes = [8, 256], strides = [1, 1]} : vector<160x256xf32> to vector<8x256xf32>
    %cst_53 = arith.constant dense<0.000000e+00> : vector<8x256xf32>
    %320 = tpu.matmul %318, %20, %cst_53 {dimension_numbers = #tpu.dot_dimension_numbers<[1], [0], [0], [1], [0, 0, 1, 1], [], []>} : vector<8x64xf32>, vector<64x256xf32>, vector<8x256xf32> -> vector<8x256xf32>
    %321 = arith.addf %319, %320 : vector<8x256xf32>
    %322 = vector.extract_strided_slice %321 {offsets = [0, 0], sizes = [8, 64], strides = [1, 1]} : vector<8x256xf32> to vector<8x64xf32>
    %323 = arith.negf %322 : vector<8x64xf32>
    %324 = math.exp %323 : vector<8x64xf32>
    %cst_54 = arith.constant 1.000000e+00 : f32
    %325 = vector.broadcast %cst_54 : f32 to vector<8x64xf32>
    %326 = arith.addf %325, %324 : vector<8x64xf32>
    %327 = arith.divf %325, %326 : vector<8x64xf32>
    %328 = vector.extract_strided_slice %321 {offsets = [0, 64], sizes = [8, 64], strides = [1, 1]} : vector<8x256xf32> to vector<8x64xf32>
    %329 = arith.negf %328 : vector<8x64xf32>
    %330 = math.exp %329 : vector<8x64xf32>
    %cst_55 = arith.constant 1.000000e+00 : f32
    %331 = vector.broadcast %cst_55 : f32 to vector<8x64xf32>
    %332 = arith.addf %331, %330 : vector<8x64xf32>
    %333 = arith.divf %331, %332 : vector<8x64xf32>
    %334 = vector.extract_strided_slice %321 {offsets = [0, 128], sizes = [8, 64], strides = [1, 1]} : vector<8x256xf32> to vector<8x64xf32>
    %335 = math.tanh %334 : vector<8x64xf32>
    %336 = vector.extract_strided_slice %321 {offsets = [0, 192], sizes = [8, 64], strides = [1, 1]} : vector<8x256xf32> to vector<8x64xf32>
    %337 = arith.negf %336 : vector<8x64xf32>
    %338 = math.exp %337 : vector<8x64xf32>
    %cst_56 = arith.constant 1.000000e+00 : f32
    %339 = vector.broadcast %cst_56 : f32 to vector<8x64xf32>
    %340 = arith.addf %339, %338 : vector<8x64xf32>
    %341 = arith.divf %339, %340 : vector<8x64xf32>
    %342 = arith.mulf %333, %316 : vector<8x64xf32>
    %343 = arith.mulf %327, %335 : vector<8x64xf32>
    %344 = arith.addf %342, %343 : vector<8x64xf32>
    %345 = math.tanh %344 : vector<8x64xf32>
    %346 = arith.mulf %341, %345 : vector<8x64xf32>
    %347 = vector.extract_strided_slice %16 {offsets = [96, 0], sizes = [8, 256], strides = [1, 1]} : vector<160x256xf32> to vector<8x256xf32>
    %cst_57 = arith.constant dense<0.000000e+00> : vector<8x256xf32>
    %348 = tpu.matmul %346, %20, %cst_57 {dimension_numbers = #tpu.dot_dimension_numbers<[1], [0], [0], [1], [0, 0, 1, 1], [], []>} : vector<8x64xf32>, vector<64x256xf32>, vector<8x256xf32> -> vector<8x256xf32>
    %349 = arith.addf %347, %348 : vector<8x256xf32>
    %350 = vector.extract_strided_slice %349 {offsets = [0, 0], sizes = [8, 64], strides = [1, 1]} : vector<8x256xf32> to vector<8x64xf32>
    %351 = arith.negf %350 : vector<8x64xf32>
    %352 = math.exp %351 : vector<8x64xf32>
    %cst_58 = arith.constant 1.000000e+00 : f32
    %353 = vector.broadcast %cst_58 : f32 to vector<8x64xf32>
    %354 = arith.addf %353, %352 : vector<8x64xf32>
    %355 = arith.divf %353, %354 : vector<8x64xf32>
    %356 = vector.extract_strided_slice %349 {offsets = [0, 64], sizes = [8, 64], strides = [1, 1]} : vector<8x256xf32> to vector<8x64xf32>
    %357 = arith.negf %356 : vector<8x64xf32>
    %358 = math.exp %357 : vector<8x64xf32>
    %cst_59 = arith.constant 1.000000e+00 : f32
    %359 = vector.broadcast %cst_59 : f32 to vector<8x64xf32>
    %360 = arith.addf %359, %358 : vector<8x64xf32>
    %361 = arith.divf %359, %360 : vector<8x64xf32>
    %362 = vector.extract_strided_slice %349 {offsets = [0, 128], sizes = [8, 64], strides = [1, 1]} : vector<8x256xf32> to vector<8x64xf32>
    %363 = math.tanh %362 : vector<8x64xf32>
    %364 = vector.extract_strided_slice %349 {offsets = [0, 192], sizes = [8, 64], strides = [1, 1]} : vector<8x256xf32> to vector<8x64xf32>
    %365 = arith.negf %364 : vector<8x64xf32>
    %366 = math.exp %365 : vector<8x64xf32>
    %cst_60 = arith.constant 1.000000e+00 : f32
    %367 = vector.broadcast %cst_60 : f32 to vector<8x64xf32>
    %368 = arith.addf %367, %366 : vector<8x64xf32>
    %369 = arith.divf %367, %368 : vector<8x64xf32>
    %370 = arith.mulf %361, %344 : vector<8x64xf32>
    %371 = arith.mulf %355, %363 : vector<8x64xf32>
    %372 = arith.addf %370, %371 : vector<8x64xf32>
    %373 = math.tanh %372 : vector<8x64xf32>
    %374 = arith.mulf %369, %373 : vector<8x64xf32>
    %375 = vector.extract_strided_slice %16 {offsets = [104, 0], sizes = [8, 256], strides = [1, 1]} : vector<160x256xf32> to vector<8x256xf32>
    %cst_61 = arith.constant dense<0.000000e+00> : vector<8x256xf32>
    %376 = tpu.matmul %374, %20, %cst_61 {dimension_numbers = #tpu.dot_dimension_numbers<[1], [0], [0], [1], [0, 0, 1, 1], [], []>} : vector<8x64xf32>, vector<64x256xf32>, vector<8x256xf32> -> vector<8x256xf32>
    %377 = arith.addf %375, %376 : vector<8x256xf32>
    %378 = vector.extract_strided_slice %377 {offsets = [0, 0], sizes = [8, 64], strides = [1, 1]} : vector<8x256xf32> to vector<8x64xf32>
    %379 = arith.negf %378 : vector<8x64xf32>
    %380 = math.exp %379 : vector<8x64xf32>
    %cst_62 = arith.constant 1.000000e+00 : f32
    %381 = vector.broadcast %cst_62 : f32 to vector<8x64xf32>
    %382 = arith.addf %381, %380 : vector<8x64xf32>
    %383 = arith.divf %381, %382 : vector<8x64xf32>
    %384 = vector.extract_strided_slice %377 {offsets = [0, 64], sizes = [8, 64], strides = [1, 1]} : vector<8x256xf32> to vector<8x64xf32>
    %385 = arith.negf %384 : vector<8x64xf32>
    %386 = math.exp %385 : vector<8x64xf32>
    %cst_63 = arith.constant 1.000000e+00 : f32
    %387 = vector.broadcast %cst_63 : f32 to vector<8x64xf32>
    %388 = arith.addf %387, %386 : vector<8x64xf32>
    %389 = arith.divf %387, %388 : vector<8x64xf32>
    %390 = vector.extract_strided_slice %377 {offsets = [0, 128], sizes = [8, 64], strides = [1, 1]} : vector<8x256xf32> to vector<8x64xf32>
    %391 = math.tanh %390 : vector<8x64xf32>
    %392 = vector.extract_strided_slice %377 {offsets = [0, 192], sizes = [8, 64], strides = [1, 1]} : vector<8x256xf32> to vector<8x64xf32>
    %393 = arith.negf %392 : vector<8x64xf32>
    %394 = math.exp %393 : vector<8x64xf32>
    %cst_64 = arith.constant 1.000000e+00 : f32
    %395 = vector.broadcast %cst_64 : f32 to vector<8x64xf32>
    %396 = arith.addf %395, %394 : vector<8x64xf32>
    %397 = arith.divf %395, %396 : vector<8x64xf32>
    %398 = arith.mulf %389, %372 : vector<8x64xf32>
    %399 = arith.mulf %383, %391 : vector<8x64xf32>
    %400 = arith.addf %398, %399 : vector<8x64xf32>
    %401 = math.tanh %400 : vector<8x64xf32>
    %402 = arith.mulf %397, %401 : vector<8x64xf32>
    %403 = vector.extract_strided_slice %16 {offsets = [112, 0], sizes = [8, 256], strides = [1, 1]} : vector<160x256xf32> to vector<8x256xf32>
    %cst_65 = arith.constant dense<0.000000e+00> : vector<8x256xf32>
    %404 = tpu.matmul %402, %20, %cst_65 {dimension_numbers = #tpu.dot_dimension_numbers<[1], [0], [0], [1], [0, 0, 1, 1], [], []>} : vector<8x64xf32>, vector<64x256xf32>, vector<8x256xf32> -> vector<8x256xf32>
    %405 = arith.addf %403, %404 : vector<8x256xf32>
    %406 = vector.extract_strided_slice %405 {offsets = [0, 0], sizes = [8, 64], strides = [1, 1]} : vector<8x256xf32> to vector<8x64xf32>
    %407 = arith.negf %406 : vector<8x64xf32>
    %408 = math.exp %407 : vector<8x64xf32>
    %cst_66 = arith.constant 1.000000e+00 : f32
    %409 = vector.broadcast %cst_66 : f32 to vector<8x64xf32>
    %410 = arith.addf %409, %408 : vector<8x64xf32>
    %411 = arith.divf %409, %410 : vector<8x64xf32>
    %412 = vector.extract_strided_slice %405 {offsets = [0, 64], sizes = [8, 64], strides = [1, 1]} : vector<8x256xf32> to vector<8x64xf32>
    %413 = arith.negf %412 : vector<8x64xf32>
    %414 = math.exp %413 : vector<8x64xf32>
    %cst_67 = arith.constant 1.000000e+00 : f32
    %415 = vector.broadcast %cst_67 : f32 to vector<8x64xf32>
    %416 = arith.addf %415, %414 : vector<8x64xf32>
    %417 = arith.divf %415, %416 : vector<8x64xf32>
    %418 = vector.extract_strided_slice %405 {offsets = [0, 128], sizes = [8, 64], strides = [1, 1]} : vector<8x256xf32> to vector<8x64xf32>
    %419 = math.tanh %418 : vector<8x64xf32>
    %420 = vector.extract_strided_slice %405 {offsets = [0, 192], sizes = [8, 64], strides = [1, 1]} : vector<8x256xf32> to vector<8x64xf32>
    %421 = arith.negf %420 : vector<8x64xf32>
    %422 = math.exp %421 : vector<8x64xf32>
    %cst_68 = arith.constant 1.000000e+00 : f32
    %423 = vector.broadcast %cst_68 : f32 to vector<8x64xf32>
    %424 = arith.addf %423, %422 : vector<8x64xf32>
    %425 = arith.divf %423, %424 : vector<8x64xf32>
    %426 = arith.mulf %417, %400 : vector<8x64xf32>
    %427 = arith.mulf %411, %419 : vector<8x64xf32>
    %428 = arith.addf %426, %427 : vector<8x64xf32>
    %429 = math.tanh %428 : vector<8x64xf32>
    %430 = arith.mulf %425, %429 : vector<8x64xf32>
    %431 = vector.extract_strided_slice %16 {offsets = [120, 0], sizes = [8, 256], strides = [1, 1]} : vector<160x256xf32> to vector<8x256xf32>
    %cst_69 = arith.constant dense<0.000000e+00> : vector<8x256xf32>
    %432 = tpu.matmul %430, %20, %cst_69 {dimension_numbers = #tpu.dot_dimension_numbers<[1], [0], [0], [1], [0, 0, 1, 1], [], []>} : vector<8x64xf32>, vector<64x256xf32>, vector<8x256xf32> -> vector<8x256xf32>
    %433 = arith.addf %431, %432 : vector<8x256xf32>
    %434 = vector.extract_strided_slice %433 {offsets = [0, 0], sizes = [8, 64], strides = [1, 1]} : vector<8x256xf32> to vector<8x64xf32>
    %435 = arith.negf %434 : vector<8x64xf32>
    %436 = math.exp %435 : vector<8x64xf32>
    %cst_70 = arith.constant 1.000000e+00 : f32
    %437 = vector.broadcast %cst_70 : f32 to vector<8x64xf32>
    %438 = arith.addf %437, %436 : vector<8x64xf32>
    %439 = arith.divf %437, %438 : vector<8x64xf32>
    %440 = vector.extract_strided_slice %433 {offsets = [0, 64], sizes = [8, 64], strides = [1, 1]} : vector<8x256xf32> to vector<8x64xf32>
    %441 = arith.negf %440 : vector<8x64xf32>
    %442 = math.exp %441 : vector<8x64xf32>
    %cst_71 = arith.constant 1.000000e+00 : f32
    %443 = vector.broadcast %cst_71 : f32 to vector<8x64xf32>
    %444 = arith.addf %443, %442 : vector<8x64xf32>
    %445 = arith.divf %443, %444 : vector<8x64xf32>
    %446 = vector.extract_strided_slice %433 {offsets = [0, 128], sizes = [8, 64], strides = [1, 1]} : vector<8x256xf32> to vector<8x64xf32>
    %447 = math.tanh %446 : vector<8x64xf32>
    %448 = vector.extract_strided_slice %433 {offsets = [0, 192], sizes = [8, 64], strides = [1, 1]} : vector<8x256xf32> to vector<8x64xf32>
    %449 = arith.negf %448 : vector<8x64xf32>
    %450 = math.exp %449 : vector<8x64xf32>
    %cst_72 = arith.constant 1.000000e+00 : f32
    %451 = vector.broadcast %cst_72 : f32 to vector<8x64xf32>
    %452 = arith.addf %451, %450 : vector<8x64xf32>
    %453 = arith.divf %451, %452 : vector<8x64xf32>
    %454 = arith.mulf %445, %428 : vector<8x64xf32>
    %455 = arith.mulf %439, %447 : vector<8x64xf32>
    %456 = arith.addf %454, %455 : vector<8x64xf32>
    %457 = math.tanh %456 : vector<8x64xf32>
    %458 = arith.mulf %453, %457 : vector<8x64xf32>
    %459 = vector.extract_strided_slice %16 {offsets = [128, 0], sizes = [8, 256], strides = [1, 1]} : vector<160x256xf32> to vector<8x256xf32>
    %cst_73 = arith.constant dense<0.000000e+00> : vector<8x256xf32>
    %460 = tpu.matmul %458, %20, %cst_73 {dimension_numbers = #tpu.dot_dimension_numbers<[1], [0], [0], [1], [0, 0, 1, 1], [], []>} : vector<8x64xf32>, vector<64x256xf32>, vector<8x256xf32> -> vector<8x256xf32>
    %461 = arith.addf %459, %460 : vector<8x256xf32>
    %462 = vector.extract_strided_slice %461 {offsets = [0, 0], sizes = [8, 64], strides = [1, 1]} : vector<8x256xf32> to vector<8x64xf32>
    %463 = arith.negf %462 : vector<8x64xf32>
    %464 = math.exp %463 : vector<8x64xf32>
    %cst_74 = arith.constant 1.000000e+00 : f32
    %465 = vector.broadcast %cst_74 : f32 to vector<8x64xf32>
    %466 = arith.addf %465, %464 : vector<8x64xf32>
    %467 = arith.divf %465, %466 : vector<8x64xf32>
    %468 = vector.extract_strided_slice %461 {offsets = [0, 64], sizes = [8, 64], strides = [1, 1]} : vector<8x256xf32> to vector<8x64xf32>
    %469 = arith.negf %468 : vector<8x64xf32>
    %470 = math.exp %469 : vector<8x64xf32>
    %cst_75 = arith.constant 1.000000e+00 : f32
    %471 = vector.broadcast %cst_75 : f32 to vector<8x64xf32>
    %472 = arith.addf %471, %470 : vector<8x64xf32>
    %473 = arith.divf %471, %472 : vector<8x64xf32>
    %474 = vector.extract_strided_slice %461 {offsets = [0, 128], sizes = [8, 64], strides = [1, 1]} : vector<8x256xf32> to vector<8x64xf32>
    %475 = math.tanh %474 : vector<8x64xf32>
    %476 = vector.extract_strided_slice %461 {offsets = [0, 192], sizes = [8, 64], strides = [1, 1]} : vector<8x256xf32> to vector<8x64xf32>
    %477 = arith.negf %476 : vector<8x64xf32>
    %478 = math.exp %477 : vector<8x64xf32>
    %cst_76 = arith.constant 1.000000e+00 : f32
    %479 = vector.broadcast %cst_76 : f32 to vector<8x64xf32>
    %480 = arith.addf %479, %478 : vector<8x64xf32>
    %481 = arith.divf %479, %480 : vector<8x64xf32>
    %482 = arith.mulf %473, %456 : vector<8x64xf32>
    %483 = arith.mulf %467, %475 : vector<8x64xf32>
    %484 = arith.addf %482, %483 : vector<8x64xf32>
    %485 = math.tanh %484 : vector<8x64xf32>
    %486 = arith.mulf %481, %485 : vector<8x64xf32>
    %487 = vector.extract_strided_slice %16 {offsets = [136, 0], sizes = [8, 256], strides = [1, 1]} : vector<160x256xf32> to vector<8x256xf32>
    %cst_77 = arith.constant dense<0.000000e+00> : vector<8x256xf32>
    %488 = tpu.matmul %486, %20, %cst_77 {dimension_numbers = #tpu.dot_dimension_numbers<[1], [0], [0], [1], [0, 0, 1, 1], [], []>} : vector<8x64xf32>, vector<64x256xf32>, vector<8x256xf32> -> vector<8x256xf32>
    %489 = arith.addf %487, %488 : vector<8x256xf32>
    %490 = vector.extract_strided_slice %489 {offsets = [0, 0], sizes = [8, 64], strides = [1, 1]} : vector<8x256xf32> to vector<8x64xf32>
    %491 = arith.negf %490 : vector<8x64xf32>
    %492 = math.exp %491 : vector<8x64xf32>
    %cst_78 = arith.constant 1.000000e+00 : f32
    %493 = vector.broadcast %cst_78 : f32 to vector<8x64xf32>
    %494 = arith.addf %493, %492 : vector<8x64xf32>
    %495 = arith.divf %493, %494 : vector<8x64xf32>
    %496 = vector.extract_strided_slice %489 {offsets = [0, 64], sizes = [8, 64], strides = [1, 1]} : vector<8x256xf32> to vector<8x64xf32>
    %497 = arith.negf %496 : vector<8x64xf32>
    %498 = math.exp %497 : vector<8x64xf32>
    %cst_79 = arith.constant 1.000000e+00 : f32
    %499 = vector.broadcast %cst_79 : f32 to vector<8x64xf32>
    %500 = arith.addf %499, %498 : vector<8x64xf32>
    %501 = arith.divf %499, %500 : vector<8x64xf32>
    %502 = vector.extract_strided_slice %489 {offsets = [0, 128], sizes = [8, 64], strides = [1, 1]} : vector<8x256xf32> to vector<8x64xf32>
    %503 = math.tanh %502 : vector<8x64xf32>
    %504 = vector.extract_strided_slice %489 {offsets = [0, 192], sizes = [8, 64], strides = [1, 1]} : vector<8x256xf32> to vector<8x64xf32>
    %505 = arith.negf %504 : vector<8x64xf32>
    %506 = math.exp %505 : vector<8x64xf32>
    %cst_80 = arith.constant 1.000000e+00 : f32
    %507 = vector.broadcast %cst_80 : f32 to vector<8x64xf32>
    %508 = arith.addf %507, %506 : vector<8x64xf32>
    %509 = arith.divf %507, %508 : vector<8x64xf32>
    %510 = arith.mulf %501, %484 : vector<8x64xf32>
    %511 = arith.mulf %495, %503 : vector<8x64xf32>
    %512 = arith.addf %510, %511 : vector<8x64xf32>
    %513 = math.tanh %512 : vector<8x64xf32>
    %514 = arith.mulf %509, %513 : vector<8x64xf32>
    %515 = vector.extract_strided_slice %16 {offsets = [144, 0], sizes = [8, 256], strides = [1, 1]} : vector<160x256xf32> to vector<8x256xf32>
    %cst_81 = arith.constant dense<0.000000e+00> : vector<8x256xf32>
    %516 = tpu.matmul %514, %20, %cst_81 {dimension_numbers = #tpu.dot_dimension_numbers<[1], [0], [0], [1], [0, 0, 1, 1], [], []>} : vector<8x64xf32>, vector<64x256xf32>, vector<8x256xf32> -> vector<8x256xf32>
    %517 = arith.addf %515, %516 : vector<8x256xf32>
    %518 = vector.extract_strided_slice %517 {offsets = [0, 0], sizes = [8, 64], strides = [1, 1]} : vector<8x256xf32> to vector<8x64xf32>
    %519 = arith.negf %518 : vector<8x64xf32>
    %520 = math.exp %519 : vector<8x64xf32>
    %cst_82 = arith.constant 1.000000e+00 : f32
    %521 = vector.broadcast %cst_82 : f32 to vector<8x64xf32>
    %522 = arith.addf %521, %520 : vector<8x64xf32>
    %523 = arith.divf %521, %522 : vector<8x64xf32>
    %524 = vector.extract_strided_slice %517 {offsets = [0, 64], sizes = [8, 64], strides = [1, 1]} : vector<8x256xf32> to vector<8x64xf32>
    %525 = arith.negf %524 : vector<8x64xf32>
    %526 = math.exp %525 : vector<8x64xf32>
    %cst_83 = arith.constant 1.000000e+00 : f32
    %527 = vector.broadcast %cst_83 : f32 to vector<8x64xf32>
    %528 = arith.addf %527, %526 : vector<8x64xf32>
    %529 = arith.divf %527, %528 : vector<8x64xf32>
    %530 = vector.extract_strided_slice %517 {offsets = [0, 128], sizes = [8, 64], strides = [1, 1]} : vector<8x256xf32> to vector<8x64xf32>
    %531 = math.tanh %530 : vector<8x64xf32>
    %532 = vector.extract_strided_slice %517 {offsets = [0, 192], sizes = [8, 64], strides = [1, 1]} : vector<8x256xf32> to vector<8x64xf32>
    %533 = arith.negf %532 : vector<8x64xf32>
    %534 = math.exp %533 : vector<8x64xf32>
    %cst_84 = arith.constant 1.000000e+00 : f32
    %535 = vector.broadcast %cst_84 : f32 to vector<8x64xf32>
    %536 = arith.addf %535, %534 : vector<8x64xf32>
    %537 = arith.divf %535, %536 : vector<8x64xf32>
    %538 = arith.mulf %529, %512 : vector<8x64xf32>
    %539 = arith.mulf %523, %531 : vector<8x64xf32>
    %540 = arith.addf %538, %539 : vector<8x64xf32>
    %541 = math.tanh %540 : vector<8x64xf32>
    %542 = arith.mulf %537, %541 : vector<8x64xf32>
    %543 = vector.extract_strided_slice %16 {offsets = [152, 0], sizes = [8, 256], strides = [1, 1]} : vector<160x256xf32> to vector<8x256xf32>
    %cst_85 = arith.constant dense<0.000000e+00> : vector<8x256xf32>
    %544 = tpu.matmul %542, %20, %cst_85 {dimension_numbers = #tpu.dot_dimension_numbers<[1], [0], [0], [1], [0, 0, 1, 1], [], []>} : vector<8x64xf32>, vector<64x256xf32>, vector<8x256xf32> -> vector<8x256xf32>
    %545 = arith.addf %543, %544 : vector<8x256xf32>
    %546 = vector.extract_strided_slice %545 {offsets = [0, 0], sizes = [8, 64], strides = [1, 1]} : vector<8x256xf32> to vector<8x64xf32>
    %547 = arith.negf %546 : vector<8x64xf32>
    %548 = math.exp %547 : vector<8x64xf32>
    %cst_86 = arith.constant 1.000000e+00 : f32
    %549 = vector.broadcast %cst_86 : f32 to vector<8x64xf32>
    %550 = arith.addf %549, %548 : vector<8x64xf32>
    %551 = arith.divf %549, %550 : vector<8x64xf32>
    %552 = vector.extract_strided_slice %545 {offsets = [0, 64], sizes = [8, 64], strides = [1, 1]} : vector<8x256xf32> to vector<8x64xf32>
    %553 = arith.negf %552 : vector<8x64xf32>
    %554 = math.exp %553 : vector<8x64xf32>
    %cst_87 = arith.constant 1.000000e+00 : f32
    %555 = vector.broadcast %cst_87 : f32 to vector<8x64xf32>
    %556 = arith.addf %555, %554 : vector<8x64xf32>
    %557 = arith.divf %555, %556 : vector<8x64xf32>
    %558 = vector.extract_strided_slice %545 {offsets = [0, 128], sizes = [8, 64], strides = [1, 1]} : vector<8x256xf32> to vector<8x64xf32>
    %559 = math.tanh %558 : vector<8x64xf32>
    %560 = vector.extract_strided_slice %545 {offsets = [0, 192], sizes = [8, 64], strides = [1, 1]} : vector<8x256xf32> to vector<8x64xf32>
    %561 = arith.negf %560 : vector<8x64xf32>
    %562 = math.exp %561 : vector<8x64xf32>
    %cst_88 = arith.constant 1.000000e+00 : f32
    %563 = vector.broadcast %cst_88 : f32 to vector<8x64xf32>
    %564 = arith.addf %563, %562 : vector<8x64xf32>
    %565 = arith.divf %563, %564 : vector<8x64xf32>
    %566 = arith.mulf %557, %540 : vector<8x64xf32>
    %567 = arith.mulf %551, %559 : vector<8x64xf32>
    %568 = arith.addf %566, %567 : vector<8x64xf32>
    %569 = math.tanh %568 : vector<8x64xf32>
    %570 = arith.mulf %565, %569 : vector<8x64xf32>
    %571 = vector.extract_strided_slice %19 {offsets = [0, 0], sizes = [8, 64], strides = [1, 1]} : vector<8x256xf32> to vector<8x64xf32>
    %572 = arith.negf %571 : vector<8x64xf32>
    %573 = math.exp %572 : vector<8x64xf32>
    %cst_89 = arith.constant 1.000000e+00 : f32
    %574 = vector.broadcast %cst_89 : f32 to vector<8x64xf32>
    %575 = arith.addf %574, %573 : vector<8x64xf32>
    %576 = arith.divf %574, %575 : vector<8x64xf32>
    %577 = vector.extract_strided_slice %19 {offsets = [0, 128], sizes = [8, 64], strides = [1, 1]} : vector<8x256xf32> to vector<8x64xf32>
    %578 = math.tanh %577 : vector<8x64xf32>
    %579 = vector.extract_strided_slice %19 {offsets = [0, 192], sizes = [8, 64], strides = [1, 1]} : vector<8x256xf32> to vector<8x64xf32>
    %580 = arith.negf %579 : vector<8x64xf32>
    %581 = math.exp %580 : vector<8x64xf32>
    %cst_90 = arith.constant 1.000000e+00 : f32
    %582 = vector.broadcast %cst_90 : f32 to vector<8x64xf32>
    %583 = arith.addf %582, %581 : vector<8x64xf32>
    %584 = arith.divf %582, %583 : vector<8x64xf32>
    %585 = arith.mulf %576, %578 : vector<8x64xf32>
    %586 = math.tanh %585 : vector<8x64xf32>
    %587 = arith.mulf %584, %586 : vector<8x64xf32>
    %c0_91 = arith.constant 0 : index
    %c0_92 = arith.constant 0 : index
    %588 = vector.load %arg6[%c0_91, %c0_92] : memref<154x64xf32, #tpu.memory_space<vmem>>, vector<64x64xf32>
    %cst_93 = arith.constant dense<0.000000e+00> : vector<8x64xf32>
    %589 = tpu.matmul %570, %588, %cst_93 {dimension_numbers = #tpu.dot_dimension_numbers<[1], [0], [0], [1], [0, 0, 1, 1], [], []>} : vector<8x64xf32>, vector<64x64xf32>, vector<8x64xf32> -> vector<8x64xf32>
    %c64 = arith.constant 64 : index
    %c0_94 = arith.constant 0 : index
    %590 = vector.load %arg6[%c64, %c0_94] : memref<154x64xf32, #tpu.memory_space<vmem>>, vector<64x64xf32>
    %cst_95 = arith.constant dense<0.000000e+00> : vector<8x64xf32>
    %591 = tpu.matmul %587, %590, %cst_95 {dimension_numbers = #tpu.dot_dimension_numbers<[1], [0], [0], [1], [0, 0, 1, 1], [], []>} : vector<8x64xf32>, vector<64x64xf32>, vector<8x64xf32> -> vector<8x64xf32>
    %592 = arith.addf %589, %591 : vector<8x64xf32>
    %c0_96 = arith.constant 0 : index
    %c0_97 = arith.constant 0 : index
    %593 = vector.load %arg2[%c0_96, %c0_97] : memref<8x26xf32, #tpu.memory_space<vmem>>, vector<8x26xf32>
    %c128 = arith.constant 128 : index
    %c0_98 = arith.constant 0 : index
    %594 = vector.load %arg6[%c128, %c0_98] : memref<154x64xf32, #tpu.memory_space<vmem>>, vector<26x64xf32>
    %cst_99 = arith.constant dense<0.000000e+00> : vector<8x64xf32>
    %595 = tpu.matmul %593, %594, %cst_99 {dimension_numbers = #tpu.dot_dimension_numbers<[1], [0], [0], [1], [0, 0, 1, 1], [], []>} : vector<8x26xf32>, vector<26x64xf32>, vector<8x64xf32> -> vector<8x64xf32>
    %596 = arith.addf %592, %595 : vector<8x64xf32>
    %c0_100 = arith.constant 0 : index
    %c0_101 = arith.constant 0 : index
    %597 = vector.load %arg7[%c0_100, %c0_101] : memref<1x64xf32, #tpu.memory_space<vmem>>, vector<1x64xf32>
    %598 = vector.broadcast %597 : vector<1x64xf32> to vector<8x64xf32>
    %599 = arith.addf %596, %598 : vector<8x64xf32>
    %cst_102 = arith.constant 0.000000e+00 : f32
    %600 = vector.broadcast %cst_102 : f32 to vector<8x64xf32>
    %601 = arith.maximumf %599, %600 : vector<8x64xf32>
    %c0_103 = arith.constant 0 : index
    %c0_104 = arith.constant 0 : index
    %602 = vector.load %arg8[%c0_103, %c0_104] : memref<64x128xf32, #tpu.memory_space<vmem>>, vector<64x128xf32>
    %cst_105 = arith.constant dense<0.000000e+00> : vector<8x128xf32>
    %603 = tpu.matmul %601, %602, %cst_105 {dimension_numbers = #tpu.dot_dimension_numbers<[1], [0], [0], [1], [0, 0, 1, 1], [], []>} : vector<8x64xf32>, vector<64x128xf32>, vector<8x128xf32> -> vector<8x128xf32>
    %c0_106 = arith.constant 0 : index
    %c0_107 = arith.constant 0 : index
    %604 = vector.load %arg9[%c0_106, %c0_107] : memref<1x128xf32, #tpu.memory_space<vmem>>, vector<1x128xf32>
    %605 = vector.broadcast %604 : vector<1x128xf32> to vector<8x128xf32>
    %606 = arith.addf %603, %605 : vector<8x128xf32>
    %c0_108 = arith.constant 0 : index
    %c0_109 = arith.constant 0 : index
    %607 = vector.load %arg10[%c0_108, %c0_109] : memref<8x128xf32, #tpu.memory_space<vmem>>, vector<8x128xf32>
    tpu.vector_store %arg10[%c0_108, %c0_109], %606 {strides = array<i32>} : memref<8x128xf32, #tpu.memory_space<vmem>>, vector<8x128xf32>,
    return
  }
  func.func @transform_0(%arg0: i32) -> (i32, i32, i32) {
    %c0_i32 = arith.constant 0 : i32
    %c0_i32_0 = arith.constant 0 : i32
    %c0_i32_1 = arith.constant 0 : i32
    return %c0_i32, %arg0, %c0_i32_0 : i32, i32, i32
  }
  func.func @transform_1(%arg0: i32) -> (i32, i32) {
    %c0_i32 = arith.constant 0 : i32
    %c0_i32_0 = arith.constant 0 : i32
    return %arg0, %c0_i32 : i32, i32
  }
  func.func @transform_2(%arg0: i32) -> (i32, i32) {
    %c0_i32 = arith.constant 0 : i32
    %c0_i32_0 = arith.constant 0 : i32
    %c0_i32_1 = arith.constant 0 : i32
    return %c0_i32, %c0_i32_0 : i32, i32
  }
  func.func @transform_3(%arg0: i32) -> (i32, i32) {
    %c0_i32 = arith.constant 0 : i32
    %c0_i32_0 = arith.constant 0 : i32
    %c0_i32_1 = arith.constant 0 : i32
    return %c0_i32, %c0_i32_0 : i32, i32
  }
  func.func @transform_4(%arg0: i32) -> (i32, i32) {
    %c0_i32 = arith.constant 0 : i32
    %c0_i32_0 = arith.constant 0 : i32
    %c0_i32_1 = arith.constant 0 : i32
    return %c0_i32, %c0_i32_0 : i32, i32
  }
  func.func @transform_5(%arg0: i32) -> (i32, i32) {
    %c0_i32 = arith.constant 0 : i32
    %c0_i32_0 = arith.constant 0 : i32
    %c0_i32_1 = arith.constant 0 : i32
    return %c0_i32, %c0_i32_0 : i32, i32
  }
  func.func @transform_6(%arg0: i32) -> (i32, i32) {
    %c0_i32 = arith.constant 0 : i32
    %c0_i32_0 = arith.constant 0 : i32
    %c0_i32_1 = arith.constant 0 : i32
    return %c0_i32, %c0_i32_0 : i32, i32
  }
  func.func @transform_7(%arg0: i32) -> (i32, i32) {
    %c0_i32 = arith.constant 0 : i32
    %c0_i32_0 = arith.constant 0 : i32
    %c0_i32_1 = arith.constant 0 : i32
    return %c0_i32, %c0_i32_0 : i32, i32
  }
  func.func @transform_8(%arg0: i32) -> (i32, i32) {
    %c0_i32 = arith.constant 0 : i32
    %c0_i32_0 = arith.constant 0 : i32
    %c0_i32_1 = arith.constant 0 : i32
    return %c0_i32, %c0_i32_0 : i32, i32
  }
  func.func @transform_9(%arg0: i32) -> (i32, i32) {
    %c0_i32 = arith.constant 0 : i32
    %c0_i32_0 = arith.constant 0 : i32
    return %arg0, %c0_i32 : i32, i32
  }
}

</mosaic_0001>

<llo_original>
// kernel: tpu_custom_call.1
$region0: #{tpu_custom_call.1}
  #allocation0 [shape = 'u32[]', space=smem, size = 0x4, offset = 0x4, fixed_abs, tag = 'smem constant byte address 0x4 - core index']
  #allocation1 [shape = 'u32[144,128]{1,0:T(1,128)}', space=vmem, size = 0x12000, scoped, tag = 'internal scratch']
  %s0 = inlined_call_operand.vmem [shape: f32[20,8,27], index: 0, kind: input, shape index: {}]
  %s1 = inlined_call_operand.hbm [shape: f32[8,26], index: 1, kind: input, shape index: {}]
  %s2 = inlined_call_operand.hbm [shape: f32[27,256], index: 2, kind: input, shape index: {}]
  %s3 = inlined_call_operand.hbm [shape: f32[27,256], index: 3, kind: input, shape index: {}]
  %s4 = inlined_call_operand.vmem [shape: f32[64,256], index: 4, kind: input, shape index: {}]
  %s5 = inlined_call_operand.vmem [shape: f32[154,64], index: 5, kind: input, shape index: {}]
  %s6 = inlined_call_operand.vmem [shape: f32[1,64], index: 6, kind: input, shape index: {}]
  %s7 = inlined_call_operand.hbm [shape: f32[64,128], index: 7, kind: input, shape index: {}]
  %s8 = inlined_call_operand.vmem [shape: f32[1,128], index: 8, kind: input, shape index: {}]
  %s9 = inlined_call_operand.hbm [shape: f32[8,128], index: 9, kind: output, shape index: {}]
  %s10 = sld [smem:[#allocation0]]
  $region62: #{tpu_custom_call.1} parent=0
    _
  %s12 = ssub.s32 1, %s10
  %s13 = scalar_select 0, %s12, %s10
  $region1: #{tpu_custom_call.1} parent=0
    #allocation2 [shape = 'u8[4096]{0}', space=vmem, size = 0x1000, scoped, tag = 'input window, operand 1, single buffered']
    #allocation3 [shape = 's32[1]{0}', space=sflag, size = 0x4, scoped, tag = 'scoped memory for tpu_custom_call.1']
    #allocation4 [shape = 's32[1]{0}', space=sflag, size = 0x4, scoped, tag = 'scoped memory for tpu_custom_call.1']
    #allocation5 [shape = 'u8[32768]{0}', space=vmem, size = 0x8000, scoped, tag = 'input window, operand 2, single buffered']
    #allocation6 [shape = 's32[1]{0}', space=sflag, size = 0x4, scoped, tag = 'scoped memory for tpu_custom_call.1']
    #allocation7 [shape = 'u8[32768]{0}', space=vmem, size = 0x8000, scoped, tag = 'input window, operand 3, single buffered']
    #allocation8 [shape = 'u8[32768]{0}', space=vmem, size = 0x8000, scoped, tag = 'input window, operand 7, single buffered']
    #allocation9 [shape = 's32[1]{0}', space=sflag, size = 0x4, scoped, tag = 'scoped memory for tpu_custom_call.1']
    #allocation10 [shape = 'u8[4096]{0}', space=vmem, size = 0x1000, scoped, tag = 'output window, operand 0, single buffered']
    %14 = vsyncpa [#allocation3], 0
    %15 = vsyncpa [#allocation6], 0
    %16 = vsyncpa [#allocation9], 0
    %17 = vsyncpa [#allocation4], 0
    // Predicated region
    $region2: #{tpu_custom_call.1} parent=1 // pred_check
      _
    $region3: #{tpu_custom_call.1} parent=1 // pred_check_branch
      %19 = sbr.rel (0) target = $region5
    $region4: #{tpu_custom_call.1} parent=1 // pred_region
      _
    $region5: #{tpu_custom_call.1} parent=1 // pred_fallthru
      _
    // Predicated region
    $region6: #{tpu_custom_call.1} parent=1 // pred_check
      _
    $region7: #{tpu_custom_call.1} parent=1 // pred_check_branch
      %21 = sbr.rel (0) target = $region9
    $region8: #{tpu_custom_call.1} parent=1 // pred_region
      %s23 = ssub.s32 128, 128
      %24 = vsyncadd [#allocation3], %s23
      %s26 = sshll.u32 [#allocation2], 4
      %s27 = int_to_ptr.vmem [resolvable:$true] %s26
      %29 = dma.hbm_to_vmem [thread:$0]  %s1, 128, %s27, [#allocation3]
    $region9: #{tpu_custom_call.1} parent=1 // pred_fallthru
      _
    // Predicated region
    $region10: #{tpu_custom_call.1} parent=1 // pred_check
      _
    $region11: #{tpu_custom_call.1} parent=1 // pred_check_branch
      %31 = sbr.rel (0) target = $region13
    $region12: #{tpu_custom_call.1} parent=1 // pred_region
      %s33 = ssub.s32 1024, 1024
      %34 = vsyncadd [#allocation6], %s33
      %s35 = sshll.u32 [#allocation5], 4
      %s36 = int_to_ptr.vmem [resolvable:$true] %s35
      %41 = dma.hbm_to_vmem [thread:$0]  %s2, 1024, %s36, [#allocation6], 256, 256, 16
    $region13: #{tpu_custom_call.1} parent=1 // pred_fallthru
      _
    // Predicated region
    $region14: #{tpu_custom_call.1} parent=1 // pred_check
      _
    $region15: #{tpu_custom_call.1} parent=1 // pred_check_branch
      %43 = sbr.rel (0) target = $region17
    $region16: #{tpu_custom_call.1} parent=1 // pred_region
      %s45 = ssub.s32 1024, 1024
      %46 = vsyncadd [#allocation6], %s45
      %s47 = sshll.u32 [#allocation7], 4
      %s48 = int_to_ptr.vmem [resolvable:$true] %s47
      %53 = dma.hbm_to_vmem [thread:$0]  %s3, 1024, %s48, [#allocation6], 256, 256, 16
    $region17: #{tpu_custom_call.1} parent=1 // pred_fallthru
      _
    // Predicated region
    $region18: #{tpu_custom_call.1} parent=1 // pred_check
      _
    $region19: #{tpu_custom_call.1} parent=1 // pred_check_branch
      %55 = sbr.rel (0) target = $region21
    $region20: #{tpu_custom_call.1} parent=1 // pred_region
      _
    $region21: #{tpu_custom_call.1} parent=1 // pred_fallthru
      _
    // Predicated region
    $region22: #{tpu_custom_call.1} parent=1 // pred_check
      _
    $region23: #{tpu_custom_call.1} parent=1 // pred_check_branch
      %57 = sbr.rel (0) target = $region25
    $region24: #{tpu_custom_call.1} parent=1 // pred_region
      _
    $region25: #{tpu_custom_call.1} parent=1 // pred_fallthru
      _
    // Predicated region
    $region26: #{tpu_custom_call.1} parent=1 // pred_check
      _
    $region27: #{tpu_custom_call.1} parent=1 // pred_check_branch
      %59 = sbr.rel (0) target = $region29
    $region28: #{tpu_custom_call.1} parent=1 // pred_region
      _
    $region29: #{tpu_custom_call.1} parent=1 // pred_fallthru
      _
    // Predicated region
    $region30: #{tpu_custom_call.1} parent=1 // pred_check
      _
    $region31: #{tpu_custom_call.1} parent=1 // pred_check_branch
      %61 = sbr.rel (0) target = $region33
    $region32: #{tpu_custom_call.1} parent=1 // pred_region
      %s63 = ssub.s32 1024, 1024
      %64 = vsyncadd [#allocation9], %s63
      %s65 = sshll.u32 [#allocation8], 4
      %s66 = int_to_ptr.vmem [resolvable:$true] %s65
      %71 = dma.hbm_to_vmem [thread:$0]  %s7, 1024, %s66, [#allocation9], 128, 128, 8
    $region33: #{tpu_custom_call.1} parent=1 // pred_fallthru
      _
    // Predicated region
    $region34: #{tpu_custom_call.1} parent=1 // pred_check
      _
    $region35: #{tpu_custom_call.1} parent=1 // pred_check_branch
      %73 = sbr.rel (0) target = $region37
    $region36: #{tpu_custom_call.1} parent=1 // pred_region
      _
    $region37: #{tpu_custom_call.1} parent=1 // pred_fallthru
      _
    // Predicated region
    $region38: #{tpu_custom_call.1} parent=1 // pred_check
      _
    $region39: #{tpu_custom_call.1} parent=1 // pred_check_branch
      %75 = sbr.rel (0) target = $region41
    $region40: #{tpu_custom_call.1} parent=1 // pred_region
      %76 = dma.done [#allocation3], 128
    $region41: #{tpu_custom_call.1} parent=1 // pred_fallthru
      _
    // Predicated region
    $region42: #{tpu_custom_call.1} parent=1 // pred_check
      _
    $region43: #{tpu_custom_call.1} parent=1 // pred_check_branch
      %78 = sbr.rel (0) target = $region45
    $region44: #{tpu_custom_call.1} parent=1 // pred_region
      %79 = dma.done [#allocation6], 1024
    $region45: #{tpu_custom_call.1} parent=1 // pred_fallthru
      _
    // Predicated region
    $region46: #{tpu_custom_call.1} parent=1 // pred_check
      _
    $region47: #{tpu_custom_call.1} parent=1 // pred_check_branch
      %81 = sbr.rel (0) target = $region49
    $region48: #{tpu_custom_call.1} parent=1 // pred_region
      %82 = dma.done [#allocation6], 1024
    $region49: #{tpu_custom_call.1} parent=1 // pred_fallthru
      _
    // Predicated region
    $region50: #{tpu_custom_call.1} parent=1 // pred_check
      _
    $region51: #{tpu_custom_call.1} parent=1 // pred_check_branch
      %84 = sbr.rel (0) target = $region53
    $region52: #{tpu_custom_call.1} parent=1 // pred_region
      %85 = dma.done [#allocation9], 1024
    $region53: #{tpu_custom_call.1} parent=1 // pred_fallthru
      _
    %v86 = vld [vmem:[%s0] sm:$0xff]
    %v87 = vld [vmem:[%s0 + $0x8] sm:$0xff]
    %v88 = vld [vmem:[%s0 + $0x10] sm:$0xff]
    %v89 = vld [vmem:[%s0 + $0x18] sm:$0xff]
    %v90 = vld [vmem:[%s0 + $0x20] sm:$0xff]
    %v91 = vld [vmem:[%s0 + $0x28] sm:$0xff]
    %v92 = vld [vmem:[%s0 + $0x30] sm:$0xff]
    %v93 = vld [vmem:[%s0 + $0x38] sm:$0xff]
    %v94 = vld [vmem:[%s0 + $0x40] sm:$0xff]
    %v95 = vld [vmem:[%s0 + $0x48] sm:$0xff]
    %v96 = vld [vmem:[%s0 + $0x50] sm:$0xff]
    %v97 = vld [vmem:[%s0 + $0x58] sm:$0xff]
    %v98 = vld [vmem:[%s0 + $0x60] sm:$0xff]
    %v99 = vld [vmem:[%s0 + $0x68] sm:$0xff]
    %v100 = vld [vmem:[%s0 + $0x70] sm:$0xff]
    %v101 = vld [vmem:[%s0 + $0x78] sm:$0xff]
    %v102 = vld [vmem:[%s0 + $0x80] sm:$0xff]
    %v103 = vld [vmem:[%s0 + $0x88] sm:$0xff]
    %v104 = vld [vmem:[%s0 + $0x90] sm:$0xff]
    %v105 = vld [vmem:[%s0 + $0x98] sm:$0xff]
    %v106 = vlaneseq
    %v107 = vand.u32 %v106, 127
    %vm108 = vcmask 220160
    %v109 = vsel %vm108, %v86, -inf
    %110 = vmax.xlane.f32.xlu0 %v109
    %v111 = vpop.xlane.xlu0 %110
    %v112 = vsel %vm108, %v87, -inf
    %113 = vmax.xlane.f32.xlu0 %v112
    %v114 = vpop.xlane.xlu0 %113
    %v115 = vsel %vm108, %v88, -inf
    %116 = vmax.xlane.f32.xlu0 %v115
    %v117 = vpop.xlane.xlu0 %116
    %v118 = vsel %vm108, %v89, -inf
    %119 = vmax.xlane.f32.xlu0 %v118
    %v120 = vpop.xlane.xlu0 %119
    %v121 = vsel %vm108, %v90, -inf
    %122 = vmax.xlane.f32.xlu0 %v121
    %v123 = vpop.xlane.xlu0 %122
    %v124 = vsel %vm108, %v91, -inf
    %125 = vmax.xlane.f32.xlu0 %v124
    %v126 = vpop.xlane.xlu0 %125
    %v127 = vsel %vm108, %v92, -inf
    %128 = vmax.xlane.f32.xlu0 %v127
    %v129 = vpop.xlane.xlu0 %128
    %v130 = vsel %vm108, %v93, -inf
    %131 = vmax.xlane.f32.xlu0 %v130
    %v132 = vpop.xlane.xlu0 %131
    %v133 = vsel %vm108, %v94, -inf
    %134 = vmax.xlane.f32.xlu0 %v133
    %v135 = vpop.xlane.xlu0 %134
    %v136 = vsel %vm108, %v95, -inf
    %137 = vmax.xlane.f32.xlu0 %v136
    %v138 = vpop.xlane.xlu0 %137
    %v139 = vsel %vm108, %v96, -inf
    %140 = vmax.xlane.f32.xlu0 %v139
    %v141 = vpop.xlane.xlu0 %140
    %v142 = vsel %vm108, %v97, -inf
    %143 = vmax.xlane.f32.xlu0 %v142
    %v144 = vpop.xlane.xlu0 %143
    %v145 = vsel %vm108, %v98, -inf
    %146 = vmax.xlane.f32.xlu0 %v145
    %v147 = vpop.xlane.xlu0 %146
    %v148 = vsel %vm108, %v99, -inf
    %149 = vmax.xlane.f32.xlu0 %v148
    %v150 = vpop.xlane.xlu0 %149
    %v151 = vsel %vm108, %v100, -inf
    %152 = vmax.xlane.f32.xlu0 %v151
    %v153 = vpop.xlane.xlu0 %152
    %v154 = vsel %vm108, %v101, -inf
    %155 = vmax.xlane.f32.xlu0 %v154
    %v156 = vpop.xlane.xlu0 %155
    %v157 = vsel %vm108, %v102, -inf
    %158 = vmax.xlane.f32.xlu0 %v157
    %v159 = vpop.xlane.xlu0 %158
    %v160 = vsel %vm108, %v103, -inf
    %161 = vmax.xlane.f32.xlu0 %v160
    %v162 = vpop.xlane.xlu0 %161
    %v163 = vsel %vm108, %v104, -inf
    %164 = vmax.xlane.f32.xlu0 %v163
    %v165 = vpop.xlane.xlu0 %164
    %v166 = vsel %vm108, %v105, -inf
    %167 = vmax.xlane.f32.xlu0 %v166
    %v168 = vpop.xlane.xlu0 %167
    %vm169 = vcmp.eq.f32.partialorder %v86, %v111
    %vm170 = vcmp.eq.f32.partialorder %v87, %v114
    %vm171 = vcmp.eq.f32.partialorder %v88, %v117
    %vm172 = vcmp.eq.f32.partialorder %v89, %v120
    %vm173 = vcmp.eq.f32.partialorder %v90, %v123
    %vm174 = vcmp.eq.f32.partialorder %v91, %v126
    %vm175 = vcmp.eq.f32.partialorder %v92, %v129
    %vm176 = vcmp.eq.f32.partialorder %v93, %v132
    %vm177 = vcmp.eq.f32.partialorder %v94, %v135
    %vm178 = vcmp.eq.f32.partialorder %v95, %v138
    %vm179 = vcmp.eq.f32.partialorder %v96, %v141
    %vm180 = vcmp.eq.f32.partialorder %v97, %v144
    %vm181 = vcmp.eq.f32.partialorder %v98, %v147
    %vm182 = vcmp.eq.f32.partialorder %v99, %v150
    %vm183 = vcmp.eq.f32.partialorder %v100, %v153
    %vm184 = vcmp.eq.f32.partialorder %v101, %v156
    %vm185 = vcmp.eq.f32.partialorder %v102, %v159
    %vm186 = vcmp.eq.f32.partialorder %v103, %v162
    %vm187 = vcmp.eq.f32.partialorder %v104, %v165
    %vm188 = vcmp.eq.f32.partialorder %v105, %v168
    %v189 = vsel %vm169, %v107, 27
    %v190 = vsel %vm170, %v107, 27
    %v191 = vsel %vm171, %v107, 27
    %v192 = vsel %vm172, %v107, 27
    %v193 = vsel %vm173, %v107, 27
    %v194 = vsel %vm174, %v107, 27
    %v195 = vsel %vm175, %v107, 27
    %v196 = vsel %vm176, %v107, 27
    %v197 = vsel %vm177, %v107, 27
    %v198 = vsel %vm178, %v107, 27
    %v199 = vsel %vm179, %v107, 27
    %v200 = vsel %vm180, %v107, 27
    %v201 = vsel %vm181, %v107, 27
    %v202 = vsel %vm182, %v107, 27
    %v203 = vsel %vm183, %v107, 27
    %v204 = vsel %vm184, %v107, 27
    %v205 = vsel %vm185, %v107, 27
    %v206 = vsel %vm186, %v107, 27
    %v207 = vsel %vm187, %v107, 27
    %v208 = vsel %vm188, %v107, 27
    %v209 = vsel %vm108, %v189, 2147483647
    %v210 = vand.u32 %v209, 65535
    %v211 = vshra.s32 %v209, 16
    %v212 = vcvt.s32.f32 %v210
    %v213 = vcvt.s32.f32 %v211
    %214 = vmin.xlane.f32.xlu0 %v213
    %v215 = vpop.xlane.xlu0 %214
    %vm216 = vcmp.eq.f32.partialorder %v213, %v215
    %v217 = vsel %vm216, %v212, inf
    %218 = vmin.xlane.f32.xlu0 %v217
    %v219 = vpop.xlane.xlu0 %218
    %v220 = vcvt.f32.s32 %v219
    %v221 = vcvt.f32.s32 %v215
    %v222 = vshll.u32 %v221, 16
    %v223 = vadd.s32 %v222, %v220
    %v224 = vsel %vm108, %v190, 2147483647
    %v225 = vand.u32 %v224, 65535
    %v226 = vshra.s32 %v224, 16
    %v227 = vcvt.s32.f32 %v225
    %v228 = vcvt.s32.f32 %v226
    %229 = vmin.xlane.f32.xlu0 %v228
    %v230 = vpop.xlane.xlu0 %229
    %vm231 = vcmp.eq.f32.partialorder %v228, %v230
    %v232 = vsel %vm231, %v227, inf
    %233 = vmin.xlane.f32.xlu0 %v232
    %v234 = vpop.xlane.xlu0 %233
    %v235 = vcvt.f32.s32 %v234
    %v236 = vcvt.f32.s32 %v230
    %v237 = vshll.u32 %v236, 16
    %v238 = vadd.s32 %v237, %v235
    %v239 = vsel %vm108, %v191, 2147483647
    %v240 = vand.u32 %v239, 65535
    %v241 = vshra.s32 %v239, 16
    %v242 = vcvt.s32.f32 %v240
    %v243 = vcvt.s32.f32 %v241
    %244 = vmin.xlane.f32.xlu0 %v243
    %v245 = vpop.xlane.xlu0 %244
    %vm246 = vcmp.eq.f32.partialorder %v243, %v245
    %v247 = vsel %vm246, %v242, inf
    %248 = vmin.xlane.f32.xlu0 %v247
    %v249 = vpop.xlane.xlu0 %248
    %v250 = vcvt.f32.s32 %v249
    %v251 = vcvt.f32.s32 %v245
    %v252 = vshll.u32 %v251, 16
    %v253 = vadd.s32 %v252, %v250
    %v254 = vsel %vm108, %v192, 2147483647
    %v255 = vand.u32 %v254, 65535
    %v256 = vshra.s32 %v254, 16
    %v257 = vcvt.s32.f32 %v255
    %v258 = vcvt.s32.f32 %v256
    %259 = vmin.xlane.f32.xlu0 %v258
    %v260 = vpop.xlane.xlu0 %259
    %vm261 = vcmp.eq.f32.partialorder %v258, %v260
    %v262 = vsel %vm261, %v257, inf
    %263 = vmin.xlane.f32.xlu0 %v262
    %v264 = vpop.xlane.xlu0 %263
    %v265 = vcvt.f32.s32 %v264
    %v266 = vcvt.f32.s32 %v260
    %v267 = vshll.u32 %v266, 16
    %v268 = vadd.s32 %v267, %v265
    %v269 = vsel %vm108, %v193, 2147483647
    %v270 = vand.u32 %v269, 65535
    %v271 = vshra.s32 %v269, 16
    %v272 = vcvt.s32.f32 %v270
    %v273 = vcvt.s32.f32 %v271
    %274 = vmin.xlane.f32.xlu0 %v273
    %v275 = vpop.xlane.xlu0 %274
    %vm276 = vcmp.eq.f32.partialorder %v273, %v275
    %v277 = vsel %vm276, %v272, inf
    %278 = vmin.xlane.f32.xlu0 %v277
    %v279 = vpop.xlane.xlu0 %278
    %v280 = vcvt.f32.s32 %v279
    %v281 = vcvt.f32.s32 %v275
    %v282 = vshll.u32 %v281, 16
    %v283 = vadd.s32 %v282, %v280
    %v284 = vsel %vm108, %v194, 2147483647
    %v285 = vand.u32 %v284, 65535
    %v286 = vshra.s32 %v284, 16
    %v287 = vcvt.s32.f32 %v285
    %v288 = vcvt.s32.f32 %v286
    %289 = vmin.xlane.f32.xlu0 %v288
    %v290 = vpop.xlane.xlu0 %289
    %vm291 = vcmp.eq.f32.partialorder %v288, %v290
    %v292 = vsel %vm291, %v287, inf
    %293 = vmin.xlane.f32.xlu0 %v292
    %v294 = vpop.xlane.xlu0 %293
    %v295 = vcvt.f32.s32 %v294
    %v296 = vcvt.f32.s32 %v290
    %v297 = vshll.u32 %v296, 16
    %v298 = vadd.s32 %v297, %v295
    %v299 = vsel %vm108, %v195, 2147483647
    %v300 = vand.u32 %v299, 65535
    %v301 = vshra.s32 %v299, 16
    %v302 = vcvt.s32.f32 %v300
    %v303 = vcvt.s32.f32 %v301
    %304 = vmin.xlane.f32.xlu0 %v303
    %v305 = vpop.xlane.xlu0 %304
    %vm306 = vcmp.eq.f32.partialorder %v303, %v305
    %v307 = vsel %vm306, %v302, inf
    %308 = vmin.xlane.f32.xlu0 %v307
    %v309 = vpop.xlane.xlu0 %308
    %v310 = vcvt.f32.s32 %v309
    %v311 = vcvt.f32.s32 %v305
    %v312 = vshll.u32 %v311, 16
    %v313 = vadd.s32 %v312, %v310
    %v314 = vsel %vm108, %v196, 2147483647
    %v315 = vand.u32 %v314, 65535
    %v316 = vshra.s32 %v314, 16
    %v317 = vcvt.s32.f32 %v315
    %v318 = vcvt.s32.f32 %v316
    %319 = vmin.xlane.f32.xlu0 %v318
    %v320 = vpop.xlane.xlu0 %319
    %vm321 = vcmp.eq.f32.partialorder %v318, %v320
    %v322 = vsel %vm321, %v317, inf
    %323 = vmin.xlane.f32.xlu0 %v322
    %v324 = vpop.xlane.xlu0 %323
    %v325 = vcvt.f32.s32 %v324
    %v326 = vcvt.f32.s32 %v320
    %v327 = vshll.u32 %v326, 16
    %v328 = vadd.s32 %v327, %v325
    %v329 = vsel %vm108, %v197, 2147483647
    %v330 = vand.u32 %v329, 65535
    %v331 = vshra.s32 %v329, 16
    %v332 = vcvt.s32.f32 %v330
    %v333 = vcvt.s32.f32 %v331
    %334 = vmin.xlane.f32.xlu0 %v333
    %v335 = vpop.xlane.xlu0 %334
    %vm336 = vcmp.eq.f32.partialorder %v333, %v335
    %v337 = vsel %vm336, %v332, inf
    %338 = vmin.xlane.f32.xlu0 %v337
    %v339 = vpop.xlane.xlu0 %338
    %v340 = vcvt.f32.s32 %v339
    %v341 = vcvt.f32.s32 %v335
    %v342 = vshll.u32 %v341, 16
    %v343 = vadd.s32 %v342, %v340
    %v344 = vsel %vm108, %v198, 2147483647
    %v345 = vand.u32 %v344, 65535
    %v346 = vshra.s32 %v344, 16
    %v347 = vcvt.s32.f32 %v345
    %v348 = vcvt.s32.f32 %v346
    %349 = vmin.xlane.f32.xlu0 %v348
    %v350 = vpop.xlane.xlu0 %349
    %vm351 = vcmp.eq.f32.partialorder %v348, %v350
    %v352 = vsel %vm351, %v347, inf
    %353 = vmin.xlane.f32.xlu0 %v352
    %v354 = vpop.xlane.xlu0 %353
    %v355 = vcvt.f32.s32 %v354
    %v356 = vcvt.f32.s32 %v350
    %v357 = vshll.u32 %v356, 16
    %v358 = vadd.s32 %v357, %v355
    %v359 = vsel %vm108, %v199, 2147483647
    %v360 = vand.u32 %v359, 65535
    %v361 = vshra.s32 %v359, 16
    %v362 = vcvt.s32.f32 %v360
    %v363 = vcvt.s32.f32 %v361
    %364 = vmin.xlane.f32.xlu0 %v363
    %v365 = vpop.xlane.xlu0 %364
    %vm366 = vcmp.eq.f32.partialorder %v363, %v365
    %v367 = vsel %vm366, %v362, inf
    %368 = vmin.xlane.f32.xlu0 %v367
    %v369 = vpop.xlane.xlu0 %368
    %v370 = vcvt.f32.s32 %v369
    %v371 = vcvt.f32.s32 %v365
    %v372 = vshll.u32 %v371, 16
    %v373 = vadd.s32 %v372, %v370
    %v374 = vsel %vm108, %v200, 2147483647
    %v375 = vand.u32 %v374, 65535
    %v376 = vshra.s32 %v374, 16
    %v377 = vcvt.s32.f32 %v375
    %v378 = vcvt.s32.f32 %v376
    %379 = vmin.xlane.f32.xlu0 %v378
    %v380 = vpop.xlane.xlu0 %379
    %vm381 = vcmp.eq.f32.partialorder %v378, %v380
    %v382 = vsel %vm381, %v377, inf
    %383 = vmin.xlane.f32.xlu0 %v382
    %v384 = vpop.xlane.xlu0 %383
    %v385 = vcvt.f32.s32 %v384
    %v386 = vcvt.f32.s32 %v380
    %v387 = vshll.u32 %v386, 16
    %v388 = vadd.s32 %v387, %v385
    %v389 = vsel %vm108, %v201, 2147483647
    %v390 = vand.u32 %v389, 65535
    %v391 = vshra.s32 %v389, 16
    %v392 = vcvt.s32.f32 %v390
    %v393 = vcvt.s32.f32 %v391
    %394 = vmin.xlane.f32.xlu0 %v393
    %v395 = vpop.xlane.xlu0 %394
    %vm396 = vcmp.eq.f32.partialorder %v393, %v395
    %v397 = vsel %vm396, %v392, inf
    %398 = vmin.xlane.f32.xlu0 %v397
    %v399 = vpop.xlane.xlu0 %398
    %v400 = vcvt.f32.s32 %v399
    %v401 = vcvt.f32.s32 %v395
    %v402 = vshll.u32 %v401, 16
    %v403 = vadd.s32 %v402, %v400
    %v404 = vsel %vm108, %v202, 2147483647
    %v405 = vand.u32 %v404, 65535
    %v406 = vshra.s32 %v404, 16
    %v407 = vcvt.s32.f32 %v405
    %v408 = vcvt.s32.f32 %v406
    %409 = vmin.xlane.f32.xlu0 %v408
    %v410 = vpop.xlane.xlu0 %409
    %vm411 = vcmp.eq.f32.partialorder %v408, %v410
    %v412 = vsel %vm411, %v407, inf
    %413 = vmin.xlane.f32.xlu0 %v412
    %v414 = vpop.xlane.xlu0 %413
    %v415 = vcvt.f32.s32 %v414
    %v416 = vcvt.f32.s32 %v410
    %v417 = vshll.u32 %v416, 16
    %v418 = vadd.s32 %v417, %v415
    %v419 = vsel %vm108, %v203, 2147483647
    %v420 = vand.u32 %v419, 65535
    %v421 = vshra.s32 %v419, 16
    %v422 = vcvt.s32.f32 %v420
    %v423 = vcvt.s32.f32 %v421
    %424 = vmin.xlane.f32.xlu0 %v423
    %v425 = vpop.xlane.xlu0 %424
    %vm426 = vcmp.eq.f32.partialorder %v423, %v425
    %v427 = vsel %vm426, %v422, inf
    %428 = vmin.xlane.f32.xlu0 %v427
    %v429 = vpop.xlane.xlu0 %428
    %v430 = vcvt.f32.s32 %v429
    %v431 = vcvt.f32.s32 %v425
    %v432 = vshll.u32 %v431, 16
    %v433 = vadd.s32 %v432, %v430
    %v434 = vsel %vm108, %v204, 2147483647
    %v435 = vand.u32 %v434, 65535
    %v436 = vshra.s32 %v434, 16
    %v437 = vcvt.s32.f32 %v435
    %v438 = vcvt.s32.f32 %v436
    %439 = vmin.xlane.f32.xlu0 %v438
    %v440 = vpop.xlane.xlu0 %439
    %vm441 = vcmp.eq.f32.partialorder %v438, %v440
    %v442 = vsel %vm441, %v437, inf
    %443 = vmin.xlane.f32.xlu0 %v442
    %v444 = vpop.xlane.xlu0 %443
    %v445 = vcvt.f32.s32 %v444
    %v446 = vcvt.f32.s32 %v440
    %v447 = vshll.u32 %v446, 16
    %v448 = vadd.s32 %v447, %v445
    %v449 = vsel %vm108, %v205, 2147483647
    %v450 = vand.u32 %v449, 65535
    %v451 = vshra.s32 %v449, 16
    %v452 = vcvt.s32.f32 %v450
    %v453 = vcvt.s32.f32 %v451
    %454 = vmin.xlane.f32.xlu0 %v453
    %v455 = vpop.xlane.xlu0 %454
    %vm456 = vcmp.eq.f32.partialorder %v453, %v455
    %v457 = vsel %vm456, %v452, inf
    %458 = vmin.xlane.f32.xlu0 %v457
    %v459 = vpop.xlane.xlu0 %458
    %v460 = vcvt.f32.s32 %v459
    %v461 = vcvt.f32.s32 %v455
    %v462 = vshll.u32 %v461, 16
    %v463 = vadd.s32 %v462, %v460
    %v464 = vsel %vm108, %v206, 2147483647
    %v465 = vand.u32 %v464, 65535
    %v466 = vshra.s32 %v464, 16
    %v467 = vcvt.s32.f32 %v465
    %v468 = vcvt.s32.f32 %v466
    %469 = vmin.xlane.f32.xlu0 %v468
    %v470 = vpop.xlane.xlu0 %469
    %vm471 = vcmp.eq.f32.partialorder %v468, %v470
    %v472 = vsel %vm471, %v467, inf
    %473 = vmin.xlane.f32.xlu0 %v472
    %v474 = vpop.xlane.xlu0 %473
    %v475 = vcvt.f32.s32 %v474
    %v476 = vcvt.f32.s32 %v470
    %v477 = vshll.u32 %v476, 16
    %v478 = vadd.s32 %v477, %v475
    %v479 = vsel %vm108, %v207, 2147483647
    %v480 = vand.u32 %v479, 65535
    %v481 = vshra.s32 %v479, 16
    %v482 = vcvt.s32.f32 %v480
    %v483 = vcvt.s32.f32 %v481
    %484 = vmin.xlane.f32.xlu0 %v483
    %v485 = vpop.xlane.xlu0 %484
    %vm486 = vcmp.eq.f32.partialorder %v483, %v485
    %v487 = vsel %vm486, %v482, inf
    %488 = vmin.xlane.f32.xlu0 %v487
    %v489 = vpop.xlane.xlu0 %488
    %v490 = vcvt.f32.s32 %v489
    %v491 = vcvt.f32.s32 %v485
    %v492 = vshll.u32 %v491, 16
    %v493 = vadd.s32 %v492, %v490
    %v494 = vsel %vm108, %v208, 2147483647
    %v495 = vand.u32 %v494, 65535
    %v496 = vshra.s32 %v494, 16
    %v497 = vcvt.s32.f32 %v495
    %v498 = vcvt.s32.f32 %v496
    %499 = vmin.xlane.f32.xlu0 %v498
    %v500 = vpop.xlane.xlu0 %499
    %vm501 = vcmp.eq.f32.partialorder %v498, %v500
    %v502 = vsel %vm501, %v497, inf
    %503 = vmin.xlane.f32.xlu0 %v502
    %v504 = vpop.xlane.xlu0 %503
    %v505 = vcvt.f32.s32 %v504
    %v506 = vcvt.f32.s32 %v500
    %v507 = vshll.u32 %v506, 16
    %v508 = vadd.s32 %v507, %v505
    %vm509 = vcmp.eq.s32.totalorder %v107, %v223
    %vm510 = vcmp.eq.s32.totalorder %v107, %v238
    %vm511 = vcmp.eq.s32.totalorder %v107, %v253
    %vm512 = vcmp.eq.s32.totalorder %v107, %v268
    %vm513 = vcmp.eq.s32.totalorder %v107, %v283
    %vm514 = vcmp.eq.s32.totalorder %v107, %v298
    %vm515 = vcmp.eq.s32.totalorder %v107, %v313
    %vm516 = vcmp.eq.s32.totalorder %v107, %v328
    %vm517 = vcmp.eq.s32.totalorder %v107, %v343
    %vm518 = vcmp.eq.s32.totalorder %v107, %v358
    %vm519 = vcmp.eq.s32.totalorder %v107, %v373
    %vm520 = vcmp.eq.s32.totalorder %v107, %v388
    %vm521 = vcmp.eq.s32.totalorder %v107, %v403
    %vm522 = vcmp.eq.s32.totalorder %v107, %v418
    %vm523 = vcmp.eq.s32.totalorder %v107, %v433
    %vm524 = vcmp.eq.s32.totalorder %v107, %v448
    %vm525 = vcmp.eq.s32.totalorder %v107, %v463
    %vm526 = vcmp.eq.s32.totalorder %v107, %v478
    %vm527 = vcmp.eq.s32.totalorder %v107, %v493
    %vm528 = vcmp.eq.s32.totalorder %v107, %v508
    %v529 = vsel %vm509, 1, 0
    %v530 = vsel %vm510, 1, 0
    %v531 = vsel %vm511, 1, 0
    %v532 = vsel %vm512, 1, 0
    %v533 = vsel %vm513, 1, 0
    %v534 = vsel %vm514, 1, 0
    %v535 = vsel %vm515, 1, 0
    %v536 = vsel %vm516, 1, 0
    %v537 = vsel %vm517, 1, 0
    %v538 = vsel %vm518, 1, 0
    %v539 = vsel %vm519, 1, 0
    %v540 = vsel %vm520, 1, 0
    %v541 = vsel %vm521, 1, 0
    %v542 = vsel %vm522, 1, 0
    %v543 = vsel %vm523, 1, 0
    %v544 = vsel %vm524, 1, 0
    %v545 = vsel %vm525, 1, 0
    %v546 = vsel %vm526, 1, 0
    %v547 = vsel %vm527, 1, 0
    %v548 = vsel %vm528, 1, 0
    %v549 = vcvt.s32.f32 %v529
    %v550 = vcvt.s32.f32 %v530
    %v551 = vcvt.s32.f32 %v531
    %v552 = vcvt.s32.f32 %v532
    %v553 = vcvt.s32.f32 %v533
    %v554 = vcvt.s32.f32 %v534
    %v555 = vcvt.s32.f32 %v535
    %v556 = vcvt.s32.f32 %v536
    %v557 = vcvt.s32.f32 %v537
    %v558 = vcvt.s32.f32 %v538
    %v559 = vcvt.s32.f32 %v539
    %v560 = vcvt.s32.f32 %v540
    %v561 = vcvt.s32.f32 %v541
    %v562 = vcvt.s32.f32 %v542
    %v563 = vcvt.s32.f32 %v543
    %v564 = vcvt.s32.f32 %v544
    %v565 = vcvt.s32.f32 %v545
    %v566 = vcvt.s32.f32 %v546
    %v567 = vcvt.s32.f32 %v547
    %v568 = vcvt.s32.f32 %v548
    %v569 = vld [vmem:[#allocation5] sm:$0xff]
    %v570 = vld [vmem:[#allocation5 + $0x8] sm:$0xff]
    %v571 = vld [vmem:[#allocation5 + $0x10] sm:$0xff]
    %v572 = vld [vmem:[#allocation5 + $0x18] sm:$0xff]
    %v573 = vld [vmem:[#allocation5 + $0x20] sm:$0xff]
    %v574 = vld [vmem:[#allocation5 + $0x28] sm:$0xff]
    %v575 = vld [vmem:[#allocation5 + $0x30] sm:$0x7]
    %v576 = vld [vmem:[#allocation5 + $0x38] sm:$0x7]
    %v578 = vsel %vm108, %v549, 0
    %v581 = vsel %vm108, %v550, 0
    %v584 = vsel %vm108, %v551, 0
    %v587 = vsel %vm108, %v552, 0
    %v590 = vsel %vm108, %v553, 0
    %v593 = vsel %vm108, %v554, 0
    %v596 = vsel %vm108, %v555, 0
    %v599 = vsel %vm108, %v556, 0
    %v602 = vsel %vm108, %v557, 0
    %v605 = vsel %vm108, %v558, 0
    %v608 = vsel %vm108, %v559, 0
    %v611 = vsel %vm108, %v560, 0
    %v614 = vsel %vm108, %v561, 0
    %v617 = vsel %vm108, %v562, 0
    %v620 = vsel %vm108, %v563, 0
    %v623 = vsel %vm108, %v564, 0
    %v626 = vsel %vm108, %v565, 0
    %v629 = vsel %vm108, %v566, 0
    %v632 = vsel %vm108, %v567, 0
    %v635 = vsel %vm108, %v568, 0
    %vm637 = vcmask 1042432
    %v639 = vsel %vm637, %v575, 0
    %v642 = vsel %vm637, %v576, 0
    %644 = vmatprep.subr.mxu0 0.0
    %645 = vmatpush1.msra.mxu0 0.0
    %646 = vmatprep.subr.mxu0 0.0
    %647 = vmatpush1.msra.mxu0 0.0
    %648 = vmatprep.subr.mxu0 0.0
    %649 = vmatpush1.msra.mxu0 0.0
    %650 = vmatprep.subr.mxu0 0.0
    %651 = vmatpush1.msra.mxu0 0.0
    %652 = vmatprep.subr.mxu0 0.0
    %653 = vmatpush1.msra.mxu0 0.0
    %654 = vmatprep.subr.mxu0 0.0
    %655 = vmatpush1.msra.mxu0 0.0
    %656 = vmatprep.subr.mxu0 0.0
    %657 = vmatpush1.msra.mxu0 0.0
    %658 = vmatprep.subr.mxu0 0.0
    %659 = vmatpush1.msra.mxu0 0.0
    %660 = vmatprep.subr.mxu0 0.0
    %661 = vmatpush1.msra.mxu0 0.0
    %662 = vmatprep.subr.mxu0 0.0
    %663 = vmatpush1.msra.mxu0 0.0
    %664 = vmatprep.subr.mxu0 0.0
    %665 = vmatpush1.msra.mxu0 0.0
    %666 = vmatprep.subr.mxu0 0.0
    %667 = vmatpush1.msra.mxu0 0.0
    %668 = vmatprep.subr.mxu0 %v642
    %669 = vmatpush1.msra.mxu0 %v639
    %670 = vmatprep.subr.mxu0 %v574
    %671 = vmatpush1.msra.mxu0 %v573
    %672 = vmatprep.subr.mxu0 %v572
    %673 = vmatpush1.msra.mxu0 %v571
    %674 = vmatprep.subr.mxu0 %v570
    %675 = vmatpush1.msra.mxu0 %v569
    %676 = vmatprep.subr.mxu0 0.0
    %677 = vmatpush2.msra.mxu0 0.0
    %678 = vmatprep.subr.mxu0 0.0
    %679 = vmatpush2.msra.mxu0 0.0
    %680 = vmatprep.subr.mxu0 0.0
    %681 = vmatpush2.msra.mxu0 0.0
    %682 = vmatprep.subr.mxu0 0.0
    %683 = vmatpush2.msra.mxu0 0.0
    %684 = vmatprep.subr.mxu0 0.0
    %685 = vmatpush2.msra.mxu0 0.0
    %686 = vmatprep.subr.mxu0 0.0
    %687 = vmatpush2.msra.mxu0 0.0
    %688 = vmatprep.subr.mxu0 0.0
    %689 = vmatpush2.msra.mxu0 0.0
    %690 = vmatprep.subr.mxu0 0.0
    %691 = vmatpush2.msra.mxu0 0.0
    %692 = vmatprep.subr.mxu0 0.0
    %693 = vmatpush2.msra.mxu0 0.0
    %694 = vmatprep.subr.mxu0 0.0
    %695 = vmatpush2.msra.mxu0 0.0
    %696 = vmatprep.subr.mxu0 0.0
    %697 = vmatpush2.msra.mxu0 0.0
    %698 = vmatprep.subr.mxu0 0.0
    %699 = vmatpush2.msra.mxu0 0.0
    %700 = vmatprep.subr.mxu0 0.0
    %701 = vmatpush2.msra.mxu0 0.0
    %702 = vmatprep.subr.mxu0 0.0
    %703 = vmatpush2.msra.mxu0 0.0
    %704 = vmatprep.subr.mxu0 0.0
    %705 = vmatpush2.msra.mxu0 0.0
    %706 = vmatprep.subr.mxu0 0.0
    %707 = vmatpush2.msra.mxu0 0.0
    %708 = vmatprep.mubr.f32.mxu0 0.0
    %709 = vmatmul.mubr.f32.gmra.mxu0 %v578
    %v710 = vpop.f32.mrf.mxu0
    %v711 = vadd.f32 0.0, %v710
    %v712 = vpop.f32.mrf.mxu0
    %v713 = vadd.f32 0.0, %v712
    %714 = vmatprep.mubr.f32.mxu0 0.0
    %715 = vmatmul.mubr.f32.gmra.mxu0 %v581
    %v716 = vpop.f32.mrf.mxu0
    %v717 = vadd.f32 0.0, %v716
    %v718 = vpop.f32.mrf.mxu0
    %v719 = vadd.f32 0.0, %v718
    %720 = vmatprep.mubr.f32.mxu0 0.0
    %721 = vmatmul.mubr.f32.gmra.mxu0 %v584
    %v722 = vpop.f32.mrf.mxu0
    %v723 = vadd.f32 0.0, %v722
    %v724 = vpop.f32.mrf.mxu0
    %v725 = vadd.f32 0.0, %v724
    %726 = vmatprep.mubr.f32.mxu0 0.0
    %727 = vmatmul.mubr.f32.gmra.mxu0 %v587
    %v728 = vpop.f32.mrf.mxu0
    %v729 = vadd.f32 0.0, %v728
    %v730 = vpop.f32.mrf.mxu0
    %v731 = vadd.f32 0.0, %v730
    %732 = vmatprep.mubr.f32.mxu0 0.0
    %733 = vmatmul.mubr.f32.gmra.mxu0 %v590
    %v734 = vpop.f32.mrf.mxu0
    %v735 = vadd.f32 0.0, %v734
    %v736 = vpop.f32.mrf.mxu0
    %v737 = vadd.f32 0.0, %v736
    %738 = vmatprep.mubr.f32.mxu0 0.0
    %739 = vmatmul.mubr.f32.gmra.mxu0 %v593
    %v740 = vpop.f32.mrf.mxu0
    %v741 = vadd.f32 0.0, %v740
    %v742 = vpop.f32.mrf.mxu0
    %v743 = vadd.f32 0.0, %v742
    %744 = vmatprep.mubr.f32.mxu0 0.0
    %745 = vmatmul.mubr.f32.gmra.mxu0 %v596
    %v746 = vpop.f32.mrf.mxu0
    %v747 = vadd.f32 0.0, %v746
    %v748 = vpop.f32.mrf.mxu0
    %v749 = vadd.f32 0.0, %v748
    %750 = vmatprep.mubr.f32.mxu0 0.0
    %751 = vmatmul.mubr.f32.gmra.mxu0 %v599
    %v752 = vpop.f32.mrf.mxu0
    %v753 = vadd.f32 0.0, %v752
    %v754 = vpop.f32.mrf.mxu0
    %v755 = vadd.f32 0.0, %v754
    %756 = vmatprep.mubr.f32.mxu0 0.0
    %757 = vmatmul.mubr.f32.gmra.mxu0 %v602
    %v758 = vpop.f32.mrf.mxu0
    %v759 = vadd.f32 0.0, %v758
    %v760 = vpop.f32.mrf.mxu0
    %v761 = vadd.f32 0.0, %v760
    %762 = vmatprep.mubr.f32.mxu0 0.0
    %763 = vmatmul.mubr.f32.gmra.mxu0 %v605
    %v764 = vpop.f32.mrf.mxu0
    %v765 = vadd.f32 0.0, %v764
    %v766 = vpop.f32.mrf.mxu0
    %v767 = vadd.f32 0.0, %v766
    %768 = vmatprep.mubr.f32.mxu0 0.0
    %769 = vmatmul.mubr.f32.gmra.mxu0 %v608
    %v770 = vpop.f32.mrf.mxu0
    %v771 = vadd.f32 0.0, %v770
    %v772 = vpop.f32.mrf.mxu0
    %v773 = vadd.f32 0.0, %v772
    %774 = vmatprep.mubr.f32.mxu0 0.0
    %775 = vmatmul.mubr.f32.gmra.mxu0 %v611
    %v776 = vpop.f32.mrf.mxu0
    %v777 = vadd.f32 0.0, %v776
    %v778 = vpop.f32.mrf.mxu0
    %v779 = vadd.f32 0.0, %v778
    %780 = vmatprep.mubr.f32.mxu0 0.0
    %781 = vmatmul.mubr.f32.gmra.mxu0 %v614
    %v782 = vpop.f32.mrf.mxu0
    %v783 = vadd.f32 0.0, %v782
    %v784 = vpop.f32.mrf.mxu0
    %v785 = vadd.f32 0.0, %v784
    %786 = vmatprep.mubr.f32.mxu0 0.0
    %787 = vmatmul.mubr.f32.gmra.mxu0 %v617
    %v788 = vpop.f32.mrf.mxu0
    %v789 = vadd.f32 0.0, %v788
    %v790 = vpop.f32.mrf.mxu0
    %v791 = vadd.f32 0.0, %v790
    %792 = vmatprep.mubr.f32.mxu0 0.0
    %793 = vmatmul.mubr.f32.gmra.mxu0 %v620
    %v794 = vpop.f32.mrf.mxu0
    %v795 = vadd.f32 0.0, %v794
    %v796 = vpop.f32.mrf.mxu0
    %v797 = vadd.f32 0.0, %v796
    %798 = vmatprep.mubr.f32.mxu0 0.0
    %799 = vmatmul.mubr.f32.gmra.mxu0 %v623
    %v800 = vpop.f32.mrf.mxu0
    %v801 = vadd.f32 0.0, %v800
    %v802 = vpop.f32.mrf.mxu0
    %v803 = vadd.f32 0.0, %v802
    %804 = vmatprep.mubr.f32.mxu0 0.0
    %805 = vmatmul.mubr.f32.gmra.mxu0 %v626
    %v806 = vpop.f32.mrf.mxu0
    %v807 = vadd.f32 0.0, %v806
    %v808 = vpop.f32.mrf.mxu0
    %v809 = vadd.f32 0.0, %v808
    %810 = vmatprep.mubr.f32.mxu0 0.0
    %811 = vmatmul.mubr.f32.gmra.mxu0 %v629
    %v812 = vpop.f32.mrf.mxu0
    %v813 = vadd.f32 0.0, %v812
    %v814 = vpop.f32.mrf.mxu0
    %v815 = vadd.f32 0.0, %v814
    %816 = vmatprep.mubr.f32.mxu0 0.0
    %817 = vmatmul.mubr.f32.gmra.mxu0 %v632
    %v818 = vpop.f32.mrf.mxu0
    %v819 = vadd.f32 0.0, %v818
    %v820 = vpop.f32.mrf.mxu0
    %v821 = vadd.f32 0.0, %v820
    %822 = vmatprep.mubr.f32.mxu0 0.0
    %823 = vmatmul.mubr.f32.gmra.mxu0 %v635
    %v824 = vpop.f32.mrf.mxu0
    %v825 = vadd.f32 0.0, %v824
    %v826 = vpop.f32.mrf.mxu0
    %v827 = vadd.f32 0.0, %v826
    %828 = vdwg.mxu0
    %v829 = vld [vmem:[#allocation7] sm:$0xff]
    %v830 = vld [vmem:[#allocation7 + $0x8] sm:$0xff]
    %v831 = vld [vmem:[#allocation7 + $0x10] sm:$0xff]
    %v832 = vld [vmem:[#allocation7 + $0x18] sm:$0xff]
    %v833 = vld [vmem:[#allocation7 + $0x20] sm:$0xff]
    %v834 = vld [vmem:[#allocation7 + $0x28] sm:$0xff]
    %v835 = vld [vmem:[#allocation7 + $0x30] sm:$0x7]
    %v836 = vld [vmem:[#allocation7 + $0x38] sm:$0x7]
    %v838 = vsel %vm637, %v835, 0
    %v841 = vsel %vm637, %v836, 0
    %843 = vmatprep.subr.mxu0 0.0
    %844 = vmatpush1.msra.mxu0 0.0
    %845 = vmatprep.subr.mxu0 0.0
    %846 = vmatpush1.msra.mxu0 0.0
    %847 = vmatprep.subr.mxu0 0.0
    %848 = vmatpush1.msra.mxu0 0.0
    %849 = vmatprep.subr.mxu0 0.0
    %850 = vmatpush1.msra.mxu0 0.0
    %851 = vmatprep.subr.mxu0 0.0
    %852 = vmatpush1.msra.mxu0 0.0
    %853 = vmatprep.subr.mxu0 0.0
    %854 = vmatpush1.msra.mxu0 0.0
    %855 = vmatprep.subr.mxu0 0.0
    %856 = vmatpush1.msra.mxu0 0.0
    %857 = vmatprep.subr.mxu0 0.0
    %858 = vmatpush1.msra.mxu0 0.0
    %859 = vmatprep.subr.mxu0 0.0
    %860 = vmatpush1.msra.mxu0 0.0
    %861 = vmatprep.subr.mxu0 0.0
    %862 = vmatpush1.msra.mxu0 0.0
    %863 = vmatprep.subr.mxu0 0.0
    %864 = vmatpush1.msra.mxu0 0.0
    %865 = vmatprep.subr.mxu0 0.0
    %866 = vmatpush1.msra.mxu0 0.0
    %867 = vmatprep.subr.mxu0 %v841
    %868 = vmatpush1.msra.mxu0 %v838
    %869 = vmatprep.subr.mxu0 %v834
    %870 = vmatpush1.msra.mxu0 %v833
    %871 = vmatprep.subr.mxu0 %v832
    %872 = vmatpush1.msra.mxu0 %v831
    %873 = vmatprep.subr.mxu0 %v830
    %874 = vmatpush1.msra.mxu0 %v829
    %875 = vmatprep.subr.mxu0 0.0
    %876 = vmatpush2.msra.mxu0 0.0
    %877 = vmatprep.subr.mxu0 0.0
    %878 = vmatpush2.msra.mxu0 0.0
    %879 = vmatprep.subr.mxu0 0.0
    %880 = vmatpush2.msra.mxu0 0.0
    %881 = vmatprep.subr.mxu0 0.0
    %882 = vmatpush2.msra.mxu0 0.0
    %883 = vmatprep.subr.mxu0 0.0
    %884 = vmatpush2.msra.mxu0 0.0
    %885 = vmatprep.subr.mxu0 0.0
    %886 = vmatpush2.msra.mxu0 0.0
    %887 = vmatprep.subr.mxu0 0.0
    %888 = vmatpush2.msra.mxu0 0.0
    %889 = vmatprep.subr.mxu0 0.0
    %890 = vmatpush2.msra.mxu0 0.0
    %891 = vmatprep.subr.mxu0 0.0
    %892 = vmatpush2.msra.mxu0 0.0
    %893 = vmatprep.subr.mxu0 0.0
    %894 = vmatpush2.msra.mxu0 0.0
    %895 = vmatprep.subr.mxu0 0.0
    %896 = vmatpush2.msra.mxu0 0.0
    %897 = vmatprep.subr.mxu0 0.0
    %898 = vmatpush2.msra.mxu0 0.0
    %899 = vmatprep.subr.mxu0 0.0
    %900 = vmatpush2.msra.mxu0 0.0
    %901 = vmatprep.subr.mxu0 0.0
    %902 = vmatpush2.msra.mxu0 0.0
    %903 = vmatprep.subr.mxu0 0.0
    %904 = vmatpush2.msra.mxu0 0.0
    %905 = vmatprep.subr.mxu0 0.0
    %906 = vmatpush2.msra.mxu0 0.0
    %907 = vmatprep.mubr.f32.mxu0 0.0
    %908 = vmatmul.mubr.f32.gmra.mxu0 %v635
    %v909 = vpop.f32.mrf.mxu0
    %v910 = vadd.f32 0.0, %v909
    %v911 = vpop.f32.mrf.mxu0
    %v912 = vadd.f32 0.0, %v911
    %913 = vdwg.mxu0
    %v914 = vld [vmem:[%s4] sm:$0xff]
    %v915 = vld [vmem:[%s4 + $0x8] sm:$0xff]
    %v916 = vld [vmem:[%s4 + $0x10] sm:$0xff]
    %v917 = vld [vmem:[%s4 + $0x18] sm:$0xff]
    %v918 = vld [vmem:[%s4 + $0x20] sm:$0xff]
    %v919 = vld [vmem:[%s4 + $0x28] sm:$0xff]
    %v920 = vld [vmem:[%s4 + $0x30] sm:$0xff]
    %v921 = vld [vmem:[%s4 + $0x38] sm:$0xff]
    %v922 = vld [vmem:[%s4 + $0x40] sm:$0xff]
    %v923 = vld [vmem:[%s4 + $0x48] sm:$0xff]
    %v924 = vld [vmem:[%s4 + $0x50] sm:$0xff]
    %v925 = vld [vmem:[%s4 + $0x58] sm:$0xff]
    %v926 = vld [vmem:[%s4 + $0x60] sm:$0xff]
    %v927 = vld [vmem:[%s4 + $0x68] sm:$0xff]
    %v928 = vld [vmem:[%s4 + $0x70] sm:$0xff]
    %v929 = vld [vmem:[%s4 + $0x78] sm:$0xff]
    %v930 = vxor.u32 %v711, 2147483648
    %v931 = vmul.f32 %v930, 1.442695
    %v932 = vpow.pop %v931
    %v933 = vadd.f32 %v932, 1.0
    %v934 = vrcp.pop %v933
    %v935 = vmul.f32 1.0, %v934
    %v936 = vtanh.pop %v713
    %v937 = vxor.u32 %v713, 2147483648
    %v938 = vmul.f32 %v937, 1.442695
    %v939 = vpow.pop %v938
    %v940 = vadd.f32 %v939, 1.0
    %v941 = vrcp.pop %v940
    %v942 = vmul.f32 1.0, %v941
    %v943 = vmul.f32 %v935, %v936
    %v944 = vtanh.pop %v943
    %946 = vrot.lane.b32.xlu0 %v944, 64
    %v947 = vpop.permute.xlu0 %946
    %v949 = vmul.f32 %v942, %v947
    %951 = vrot.lane.b32.xlu0 %v949, 64
    %v952 = vpop.permute.xlu0 %951
    %vm953 = vcmask 523264
    %v954 = vsel %vm953, %v952, 0
    %956 = vmatprep.subr.mxu0 0.0
    %957 = vmatpush1.msra.mxu0 0.0
    %958 = vmatprep.subr.mxu0 0.0
    %959 = vmatpush1.msra.mxu0 0.0
    %960 = vmatprep.subr.mxu0 0.0
    %961 = vmatpush1.msra.mxu0 0.0
    %962 = vmatprep.subr.mxu0 0.0
    %963 = vmatpush1.msra.mxu0 0.0
    %964 = vmatprep.subr.mxu0 0.0
    %965 = vmatpush1.msra.mxu0 0.0
    %966 = vmatprep.subr.mxu0 0.0
    %967 = vmatpush1.msra.mxu0 0.0
    %968 = vmatprep.subr.mxu0 0.0
    %969 = vmatpush1.msra.mxu0 0.0
    %970 = vmatprep.subr.mxu0 0.0
    %971 = vmatpush1.msra.mxu0 0.0
    %972 = vmatprep.subr.mxu0 %v929
    %973 = vmatpush1.msra.mxu0 %v928
    %974 = vmatprep.subr.mxu0 %v927
    %975 = vmatpush1.msra.mxu0 %v926
    %976 = vmatprep.subr.mxu0 %v925
    %977 = vmatpush1.msra.mxu0 %v924
    %978 = vmatprep.subr.mxu0 %v923
    %979 = vmatpush1.msra.mxu0 %v922
    %980 = vmatprep.subr.mxu0 %v921
    %981 = vmatpush1.msra.mxu0 %v920
    %982 = vmatprep.subr.mxu0 %v919
    %983 = vmatpush1.msra.mxu0 %v918
    %984 = vmatprep.subr.mxu0 %v917
    %985 = vmatpush1.msra.mxu0 %v916
    %986 = vmatprep.subr.mxu0 %v915
    %987 = vmatpush1.msra.mxu0 %v914
    %988 = vmatprep.subr.mxu0 0.0
    %989 = vmatpush2.msra.mxu0 0.0
    %990 = vmatprep.subr.mxu0 0.0
    %991 = vmatpush2.msra.mxu0 0.0
    %992 = vmatprep.subr.mxu0 0.0
    %993 = vmatpush2.msra.mxu0 0.0
    %994 = vmatprep.subr.mxu0 0.0
    %995 = vmatpush2.msra.mxu0 0.0
    %996 = vmatprep.subr.mxu0 0.0
    %997 = vmatpush2.msra.mxu0 0.0
    %998 = vmatprep.subr.mxu0 0.0
    %999 = vmatpush2.msra.mxu0 0.0
    %1000 = vmatprep.subr.mxu0 0.0
    %1001 = vmatpush2.msra.mxu0 0.0
    %1002 = vmatprep.subr.mxu0 0.0
    %1003 = vmatpush2.msra.mxu0 0.0
    %1004 = vmatprep.subr.mxu0 0.0
    %1005 = vmatpush2.msra.mxu0 0.0
    %1006 = vmatprep.subr.mxu0 0.0
    %1007 = vmatpush2.msra.mxu0 0.0
    %1008 = vmatprep.subr.mxu0 0.0
    %1009 = vmatpush2.msra.mxu0 0.0
    %1010 = vmatprep.subr.mxu0 0.0
    %1011 = vmatpush2.msra.mxu0 0.0
    %1012 = vmatprep.subr.mxu0 0.0
    %1013 = vmatpush2.msra.mxu0 0.0
    %1014 = vmatprep.subr.mxu0 0.0
    %1015 = vmatpush2.msra.mxu0 0.0
    %1016 = vmatprep.subr.mxu0 0.0
    %1017 = vmatpush2.msra.mxu0 0.0
    %1018 = vmatprep.subr.mxu0 0.0
    %1019 = vmatpush2.msra.mxu0 0.0
    %1020 = vmatprep.mubr.f32.mxu0 0.0
    %1021 = vmatmul.mubr.f32.gmra.mxu0 %v954
    %v1022 = vpop.f32.mrf.mxu0
    %v1023 = vadd.f32 0.0, %v1022
    %v1024 = vpop.f32.mrf.mxu0
    %v1025 = vadd.f32 0.0, %v1024
    %1026 = vdwg.mxu0
    %v1027 = vadd.f32 %v717, %v1023
    %v1028 = vadd.f32 %v719, %v1025
    %v1029 = vxor.u32 %v1027, 2147483648
    %v1030 = vmul.f32 %v1029, 1.442695
    %v1031 = vpow.pop %v1030
    %v1032 = vadd.f32 %v1031, 1.0
    %v1033 = vrcp.pop %v1032
    %v1034 = vmul.f32 1.0, %v1033
    %v1035 = vtanh.pop %v1028
    %v1036 = vxor.u32 %v1028, 2147483648
    %v1037 = vmul.f32 %v1036, 1.442695
    %v1038 = vpow.pop %v1037
    %v1039 = vadd.f32 %v1038, 1.0
    %v1040 = vrcp.pop %v1039
    %v1041 = vmul.f32 1.0, %v1040
    %1043 = vrot.lane.b32.xlu0 %v943, 64
    %v1044 = vpop.permute.xlu0 %1043
    %v1046 = vmul.f32 %v1034, %v1044
    %v1047 = vmul.f32 %v1034, %v1035
    %1049 = vrot.lane.b32.xlu0 %v1047, 64
    %v1050 = vpop.permute.xlu0 %1049
    %v1052 = vadd.f32 %v1046, %v1050
    %v1053 = vtanh.pop %v1052
    %v1054 = vmul.f32 %v1041, %v1053
    %1056 = vrot.lane.b32.xlu0 %v1054, 64
    %v1057 = vpop.permute.xlu0 %1056
    %v1058 = vsel %vm953, %v1057, 0
    %1060 = vmatprep.subr.mxu0 0.0
    %1061 = vmatpush1.msra.mxu0 0.0
    %1062 = vmatprep.subr.mxu0 0.0
    %1063 = vmatpush1.msra.mxu0 0.0
    %1064 = vmatprep.subr.mxu0 0.0
    %1065 = vmatpush1.msra.mxu0 0.0
    %1066 = vmatprep.subr.mxu0 0.0
    %1067 = vmatpush1.msra.mxu0 0.0
    %1068 = vmatprep.subr.mxu0 0.0
    %1069 = vmatpush1.msra.mxu0 0.0
    %1070 = vmatprep.subr.mxu0 0.0
    %1071 = vmatpush1.msra.mxu0 0.0
    %1072 = vmatprep.subr.mxu0 0.0
    %1073 = vmatpush1.msra.mxu0 0.0
    %1074 = vmatprep.subr.mxu0 0.0
    %1075 = vmatpush1.msra.mxu0 0.0
    %1076 = vmatprep.subr.mxu0 %v929
    %1077 = vmatpush1.msra.mxu0 %v928
    %1078 = vmatprep.subr.mxu0 %v927
    %1079 = vmatpush1.msra.mxu0 %v926
    %1080 = vmatprep.subr.mxu0 %v925
    %1081 = vmatpush1.msra.mxu0 %v924
    %1082 = vmatprep.subr.mxu0 %v923
    %1083 = vmatpush1.msra.mxu0 %v922
    %1084 = vmatprep.subr.mxu0 %v921
    %1085 = vmatpush1.msra.mxu0 %v920
    %1086 = vmatprep.subr.mxu0 %v919
    %1087 = vmatpush1.msra.mxu0 %v918
    %1088 = vmatprep.subr.mxu0 %v917
    %1089 = vmatpush1.msra.mxu0 %v916
    %1090 = vmatprep.subr.mxu0 %v915
    %1091 = vmatpush1.msra.mxu0 %v914
    %1092 = vmatprep.subr.mxu0 0.0
    %1093 = vmatpush2.msra.mxu0 0.0
    %1094 = vmatprep.subr.mxu0 0.0
    %1095 = vmatpush2.msra.mxu0 0.0
    %1096 = vmatprep.subr.mxu0 0.0
    %1097 = vmatpush2.msra.mxu0 0.0
    %1098 = vmatprep.subr.mxu0 0.0
    %1099 = vmatpush2.msra.mxu0 0.0
    %1100 = vmatprep.subr.mxu0 0.0
    %1101 = vmatpush2.msra.mxu0 0.0
    %1102 = vmatprep.subr.mxu0 0.0
    %1103 = vmatpush2.msra.mxu0 0.0
    %1104 = vmatprep.subr.mxu0 0.0
    %1105 = vmatpush2.msra.mxu0 0.0
    %1106 = vmatprep.subr.mxu0 0.0
    %1107 = vmatpush2.msra.mxu0 0.0
    %1108 = vmatprep.subr.mxu0 0.0
    %1109 = vmatpush2.msra.mxu0 0.0
    %1110 = vmatprep.subr.mxu0 0.0
    %1111 = vmatpush2.msra.mxu0 0.0
    %1112 = vmatprep.subr.mxu0 0.0
    %1113 = vmatpush2.msra.mxu0 0.0
    %1114 = vmatprep.subr.mxu0 0.0
    %1115 = vmatpush2.msra.mxu0 0.0
    %1116 = vmatprep.subr.mxu0 0.0
    %1117 = vmatpush2.msra.mxu0 0.0
    %1118 = vmatprep.subr.mxu0 0.0
    %1119 = vmatpush2.msra.mxu0 0.0
    %1120 = vmatprep.subr.mxu0 0.0
    %1121 = vmatpush2.msra.mxu0 0.0
    %1122 = vmatprep.subr.mxu0 0.0
    %1123 = vmatpush2.msra.mxu0 0.0
    %1124 = vmatprep.mubr.f32.mxu0 0.0
    %1125 = vmatmul.mubr.f32.gmra.mxu0 %v1058
    %v1126 = vpop.f32.mrf.mxu0
    %v1127 = vadd.f32 0.0, %v1126
    %v1128 = vpop.f32.mrf.mxu0
    %v1129 = vadd.f32 0.0, %v1128
    %1130 = vdwg.mxu0
    %v1131 = vadd.f32 %v723, %v1127
    %v1132 = vadd.f32 %v725, %v1129
    %v1133 = vxor.u32 %v1131, 2147483648
    %v1134 = vmul.f32 %v1133, 1.442695
    %v1135 = vpow.pop %v1134
    %v1136 = vadd.f32 %v1135, 1.0
    %v1137 = vrcp.pop %v1136
    %v1138 = vmul.f32 1.0, %v1137
    %v1139 = vtanh.pop %v1132
    %v1140 = vxor.u32 %v1132, 2147483648
    %v1141 = vmul.f32 %v1140, 1.442695
    %v1142 = vpow.pop %v1141
    %v1143 = vadd.f32 %v1142, 1.0
    %v1144 = vrcp.pop %v1143
    %v1145 = vmul.f32 1.0, %v1144
    %v1146 = vmul.f32 %v1138, %v1052
    %v1147 = vmul.f32 %v1138, %v1139
    %1149 = vrot.lane.b32.xlu0 %v1147, 64
    %v1150 = vpop.permute.xlu0 %1149
    %v1152 = vadd.f32 %v1146, %v1150
    %v1153 = vtanh.pop %v1152
    %v1154 = vmul.f32 %v1145, %v1153
    %1156 = vrot.lane.b32.xlu0 %v1154, 64
    %v1157 = vpop.permute.xlu0 %1156
    %v1158 = vsel %vm953, %v1157, 0
    %1160 = vmatprep.subr.mxu0 0.0
    %1161 = vmatpush1.msra.mxu0 0.0
    %1162 = vmatprep.subr.mxu0 0.0
    %1163 = vmatpush1.msra.mxu0 0.0
    %1164 = vmatprep.subr.mxu0 0.0
    %1165 = vmatpush1.msra.mxu0 0.0
    %1166 = vmatprep.subr.mxu0 0.0
    %1167 = vmatpush1.msra.mxu0 0.0
    %1168 = vmatprep.subr.mxu0 0.0
    %1169 = vmatpush1.msra.mxu0 0.0
    %1170 = vmatprep.subr.mxu0 0.0
    %1171 = vmatpush1.msra.mxu0 0.0
    %1172 = vmatprep.subr.mxu0 0.0
    %1173 = vmatpush1.msra.mxu0 0.0
    %1174 = vmatprep.subr.mxu0 0.0
    %1175 = vmatpush1.msra.mxu0 0.0
    %1176 = vmatprep.subr.mxu0 %v929
    %1177 = vmatpush1.msra.mxu0 %v928
    %1178 = vmatprep.subr.mxu0 %v927
    %1179 = vmatpush1.msra.mxu0 %v926
    %1180 = vmatprep.subr.mxu0 %v925
    %1181 = vmatpush1.msra.mxu0 %v924
    %1182 = vmatprep.subr.mxu0 %v923
    %1183 = vmatpush1.msra.mxu0 %v922
    %1184 = vmatprep.subr.mxu0 %v921
    %1185 = vmatpush1.msra.mxu0 %v920
    %1186 = vmatprep.subr.mxu0 %v919
    %1187 = vmatpush1.msra.mxu0 %v918
    %1188 = vmatprep.subr.mxu0 %v917
    %1189 = vmatpush1.msra.mxu0 %v916
    %1190 = vmatprep.subr.mxu0 %v915
    %1191 = vmatpush1.msra.mxu0 %v914
    %1192 = vmatprep.subr.mxu0 0.0
    %1193 = vmatpush2.msra.mxu0 0.0
    %1194 = vmatprep.subr.mxu0 0.0
    %1195 = vmatpush2.msra.mxu0 0.0
    %1196 = vmatprep.subr.mxu0 0.0
    %1197 = vmatpush2.msra.mxu0 0.0
    %1198 = vmatprep.subr.mxu0 0.0
    %1199 = vmatpush2.msra.mxu0 0.0
    %1200 = vmatprep.subr.mxu0 0.0
    %1201 = vmatpush2.msra.mxu0 0.0
    %1202 = vmatprep.subr.mxu0 0.0
    %1203 = vmatpush2.msra.mxu0 0.0
    %1204 = vmatprep.subr.mxu0 0.0
    %1205 = vmatpush2.msra.mxu0 0.0
    %1206 = vmatprep.subr.mxu0 0.0
    %1207 = vmatpush2.msra.mxu0 0.0
    %1208 = vmatprep.subr.mxu0 0.0
    %1209 = vmatpush2.msra.mxu0 0.0
    %1210 = vmatprep.subr.mxu0 0.0
    %1211 = vmatpush2.msra.mxu0 0.0
    %1212 = vmatprep.subr.mxu0 0.0
    %1213 = vmatpush2.msra.mxu0 0.0
    %1214 = vmatprep.subr.mxu0 0.0
    %1215 = vmatpush2.msra.mxu0 0.0
    %1216 = vmatprep.subr.mxu0 0.0
    %1217 = vmatpush2.msra.mxu0 0.0
    %1218 = vmatprep.subr.mxu0 0.0
    %1219 = vmatpush2.msra.mxu0 0.0
    %1220 = vmatprep.subr.mxu0 0.0
    %1221 = vmatpush2.msra.mxu0 0.0
    %1222 = vmatprep.subr.mxu0 0.0
    %1223 = vmatpush2.msra.mxu0 0.0
    %1224 = vmatprep.mubr.f32.mxu0 0.0
    %1225 = vmatmul.mubr.f32.gmra.mxu0 %v1158
    %v1226 = vpop.f32.mrf.mxu0
    %v1227 = vadd.f32 0.0, %v1226
    %v1228 = vpop.f32.mrf.mxu0
    %v1229 = vadd.f32 0.0, %v1228
    %1230 = vdwg.mxu0
    %v1231 = vadd.f32 %v729, %v1227
    %v1232 = vadd.f32 %v731, %v1229
    %v1233 = vxor.u32 %v1231, 2147483648
    %v1234 = vmul.f32 %v1233, 1.442695
    %v1235 = vpow.pop %v1234
    %v1236 = vadd.f32 %v1235, 1.0
    %v1237 = vrcp.pop %v1236
    %v1238 = vmul.f32 1.0, %v1237
    %v1239 = vtanh.pop %v1232
    %v1240 = vxor.u32 %v1232, 2147483648
    %v1241 = vmul.f32 %v1240, 1.442695
    %v1242 = vpow.pop %v1241
    %v1243 = vadd.f32 %v1242, 1.0
    %v1244 = vrcp.pop %v1243
    %v1245 = vmul.f32 1.0, %v1244
    %v1246 = vmul.f32 %v1238, %v1152
    %v1247 = vmul.f32 %v1238, %v1239
    %1249 = vrot.lane.b32.xlu0 %v1247, 64
    %v1250 = vpop.permute.xlu0 %1249
    %v1252 = vadd.f32 %v1246, %v1250
    %v1253 = vtanh.pop %v1252
    %v1254 = vmul.f32 %v1245, %v1253
    %1256 = vrot.lane.b32.xlu0 %v1254, 64
    %v1257 = vpop.permute.xlu0 %1256
    %v1258 = vsel %vm953, %v1257, 0
    %1260 = vmatprep.subr.mxu0 0.0
    %1261 = vmatpush1.msra.mxu0 0.0
    %1262 = vmatprep.subr.mxu0 0.0
    %1263 = vmatpush1.msra.mxu0 0.0
    %1264 = vmatprep.subr.mxu0 0.0
    %1265 = vmatpush1.msra.mxu0 0.0
    %1266 = vmatprep.subr.mxu0 0.0
    %1267 = vmatpush1.msra.mxu0 0.0
    %1268 = vmatprep.subr.mxu0 0.0
    %1269 = vmatpush1.msra.mxu0 0.0
    %1270 = vmatprep.subr.mxu0 0.0
    %1271 = vmatpush1.msra.mxu0 0.0
    %1272 = vmatprep.subr.mxu0 0.0
    %1273 = vmatpush1.msra.mxu0 0.0
    %1274 = vmatprep.subr.mxu0 0.0
    %1275 = vmatpush1.msra.mxu0 0.0
    %1276 = vmatprep.subr.mxu0 %v929
    %1277 = vmatpush1.msra.mxu0 %v928
    %1278 = vmatprep.subr.mxu0 %v927
    %1279 = vmatpush1.msra.mxu0 %v926
    %1280 = vmatprep.subr.mxu0 %v925
    %1281 = vmatpush1.msra.mxu0 %v924
    %1282 = vmatprep.subr.mxu0 %v923
    %1283 = vmatpush1.msra.mxu0 %v922
    %1284 = vmatprep.subr.mxu0 %v921
    %1285 = vmatpush1.msra.mxu0 %v920
    %1286 = vmatprep.subr.mxu0 %v919
    %1287 = vmatpush1.msra.mxu0 %v918
    %1288 = vmatprep.subr.mxu0 %v917
    %1289 = vmatpush1.msra.mxu0 %v916
    %1290 = vmatprep.subr.mxu0 %v915
    %1291 = vmatpush1.msra.mxu0 %v914
    %1292 = vmatprep.subr.mxu0 0.0
    %1293 = vmatpush2.msra.mxu0 0.0
    %1294 = vmatprep.subr.mxu0 0.0
    %1295 = vmatpush2.msra.mxu0 0.0
    %1296 = vmatprep.subr.mxu0 0.0
    %1297 = vmatpush2.msra.mxu0 0.0
    %1298 = vmatprep.subr.mxu0 0.0
    %1299 = vmatpush2.msra.mxu0 0.0
    %1300 = vmatprep.subr.mxu0 0.0
    %1301 = vmatpush2.msra.mxu0 0.0
    %1302 = vmatprep.subr.mxu0 0.0
    %1303 = vmatpush2.msra.mxu0 0.0
    %1304 = vmatprep.subr.mxu0 0.0
    %1305 = vmatpush2.msra.mxu0 0.0
    %1306 = vmatprep.subr.mxu0 0.0
    %1307 = vmatpush2.msra.mxu0 0.0
    %1308 = vmatprep.subr.mxu0 0.0
    %1309 = vmatpush2.msra.mxu0 0.0
    %1310 = vmatprep.subr.mxu0 0.0
    %1311 = vmatpush2.msra.mxu0 0.0
    %1312 = vmatprep.subr.mxu0 0.0
    %1313 = vmatpush2.msra.mxu0 0.0
    %1314 = vmatprep.subr.mxu0 0.0
    %1315 = vmatpush2.msra.mxu0 0.0
    %1316 = vmatprep.subr.mxu0 0.0
    %1317 = vmatpush2.msra.mxu0 0.0
    %1318 = vmatprep.subr.mxu0 0.0
    %1319 = vmatpush2.msra.mxu0 0.0
    %1320 = vmatprep.subr.mxu0 0.0
    %1321 = vmatpush2.msra.mxu0 0.0
    %1322 = vmatprep.subr.mxu0 0.0
    %1323 = vmatpush2.msra.mxu0 0.0
    %1324 = vmatprep.mubr.f32.mxu0 0.0
    %1325 = vmatmul.mubr.f32.gmra.mxu0 %v1258
    %v1326 = vpop.f32.mrf.mxu0
    %v1327 = vadd.f32 0.0, %v1326
    %v1328 = vpop.f32.mrf.mxu0
    %v1329 = vadd.f32 0.0, %v1328
    %1330 = vdwg.mxu0
    %v1331 = vadd.f32 %v735, %v1327
    %v1332 = vadd.f32 %v737, %v1329
    %v1333 = vxor.u32 %v1331, 2147483648
    %v1334 = vmul.f32 %v1333, 1.442695
    %v1335 = vpow.pop %v1334
    %v1336 = vadd.f32 %v1335, 1.0
    %v1337 = vrcp.pop %v1336
    %v1338 = vmul.f32 1.0, %v1337
    %v1339 = vtanh.pop %v1332
    %v1340 = vxor.u32 %v1332, 2147483648
    %v1341 = vmul.f32 %v1340, 1.442695
    %v1342 = vpow.pop %v1341
    %v1343 = vadd.f32 %v1342, 1.0
    %v1344 = vrcp.pop %v1343
    %v1345 = vmul.f32 1.0, %v1344
    %v1346 = vmul.f32 %v1338, %v1252
    %v1347 = vmul.f32 %v1338, %v1339
    %1349 = vrot.lane.b32.xlu0 %v1347, 64
    %v1350 = vpop.permute.xlu0 %1349
    %v1352 = vadd.f32 %v1346, %v1350
    %v1353 = vtanh.pop %v1352
    %v1354 = vmul.f32 %v1345, %v1353
    %1356 = vrot.lane.b32.xlu0 %v1354, 64
    %v1357 = vpop.permute.xlu0 %1356
    %v1358 = vsel %vm953, %v1357, 0
    %1360 = vmatprep.subr.mxu0 0.0
    %1361 = vmatpush1.msra.mxu0 0.0
    %1362 = vmatprep.subr.mxu0 0.0
    %1363 = vmatpush1.msra.mxu0 0.0
    %1364 = vmatprep.subr.mxu0 0.0
    %1365 = vmatpush1.msra.mxu0 0.0
    %1366 = vmatprep.subr.mxu0 0.0
    %1367 = vmatpush1.msra.mxu0 0.0
    %1368 = vmatprep.subr.mxu0 0.0
    %1369 = vmatpush1.msra.mxu0 0.0
    %1370 = vmatprep.subr.mxu0 0.0
    %1371 = vmatpush1.msra.mxu0 0.0
    %1372 = vmatprep.subr.mxu0 0.0
    %1373 = vmatpush1.msra.mxu0 0.0
    %1374 = vmatprep.subr.mxu0 0.0
    %1375 = vmatpush1.msra.mxu0 0.0
    %1376 = vmatprep.subr.mxu0 %v929
    %1377 = vmatpush1.msra.mxu0 %v928
    %1378 = vmatprep.subr.mxu0 %v927
    %1379 = vmatpush1.msra.mxu0 %v926
    %1380 = vmatprep.subr.mxu0 %v925
    %1381 = vmatpush1.msra.mxu0 %v924
    %1382 = vmatprep.subr.mxu0 %v923
    %1383 = vmatpush1.msra.mxu0 %v922
    %1384 = vmatprep.subr.mxu0 %v921
    %1385 = vmatpush1.msra.mxu0 %v920
    %1386 = vmatprep.subr.mxu0 %v919
    %1387 = vmatpush1.msra.mxu0 %v918
    %1388 = vmatprep.subr.mxu0 %v917
    %1389 = vmatpush1.msra.mxu0 %v916
    %1390 = vmatprep.subr.mxu0 %v915
    %1391 = vmatpush1.msra.mxu0 %v914
    %1392 = vmatprep.subr.mxu0 0.0
    %1393 = vmatpush2.msra.mxu0 0.0
    %1394 = vmatprep.subr.mxu0 0.0
    %1395 = vmatpush2.msra.mxu0 0.0
    %1396 = vmatprep.subr.mxu0 0.0
    %1397 = vmatpush2.msra.mxu0 0.0
    %1398 = vmatprep.subr.mxu0 0.0
    %1399 = vmatpush2.msra.mxu0 0.0
    %1400 = vmatprep.subr.mxu0 0.0
    %1401 = vmatpush2.msra.mxu0 0.0
    %1402 = vmatprep.subr.mxu0 0.0
    %1403 = vmatpush2.msra.mxu0 0.0
    %1404 = vmatprep.subr.mxu0 0.0
    %1405 = vmatpush2.msra.mxu0 0.0
    %1406 = vmatprep.subr.mxu0 0.0
    %1407 = vmatpush2.msra.mxu0 0.0
    %1408 = vmatprep.subr.mxu0 0.0
    %1409 = vmatpush2.msra.mxu0 0.0
    %1410 = vmatprep.subr.mxu0 0.0
    %1411 = vmatpush2.msra.mxu0 0.0
    %1412 = vmatprep.subr.mxu0 0.0
    %1413 = vmatpush2.msra.mxu0 0.0
    %1414 = vmatprep.subr.mxu0 0.0
    %1415 = vmatpush2.msra.mxu0 0.0
    %1416 = vmatprep.subr.mxu0 0.0
    %1417 = vmatpush2.msra.mxu0 0.0
    %1418 = vmatprep.subr.mxu0 0.0
    %1419 = vmatpush2.msra.mxu0 0.0
    %1420 = vmatprep.subr.mxu0 0.0
    %1421 = vmatpush2.msra.mxu0 0.0
    %1422 = vmatprep.subr.mxu0 0.0
    %1423 = vmatpush2.msra.mxu0 0.0
    %1424 = vmatprep.mubr.f32.mxu0 0.0
    %1425 = vmatmul.mubr.f32.gmra.mxu0 %v1358
    %v1426 = vpop.f32.mrf.mxu0
    %v1427 = vadd.f32 0.0, %v1426
    %v1428 = vpop.f32.mrf.mxu0
    %v1429 = vadd.f32 0.0, %v1428
    %1430 = vdwg.mxu0
    %v1431 = vadd.f32 %v741, %v1427
    %v1432 = vadd.f32 %v743, %v1429
    %v1433 = vxor.u32 %v1431, 2147483648
    %v1434 = vmul.f32 %v1433, 1.442695
    %v1435 = vpow.pop %v1434
    %v1436 = vadd.f32 %v1435, 1.0
    %v1437 = vrcp.pop %v1436
    %v1438 = vmul.f32 1.0, %v1437
    %v1439 = vtanh.pop %v1432
    %v1440 = vxor.u32 %v1432, 2147483648
    %v1441 = vmul.f32 %v1440, 1.442695
    %v1442 = vpow.pop %v1441
    %v1443 = vadd.f32 %v1442, 1.0
    %v1444 = vrcp.pop %v1443
    %v1445 = vmul.f32 1.0, %v1444
    %v1446 = vmul.f32 %v1438, %v1352
    %v1447 = vmul.f32 %v1438, %v1439
    %1449 = vrot.lane.b32.xlu0 %v1447, 64
    %v1450 = vpop.permute.xlu0 %1449
    %v1452 = vadd.f32 %v1446, %v1450
    %v1453 = vtanh.pop %v1452
    %v1454 = vmul.f32 %v1445, %v1453
    %1456 = vrot.lane.b32.xlu0 %v1454, 64
    %v1457 = vpop.permute.xlu0 %1456
    %v1458 = vsel %vm953, %v1457, 0
    %1460 = vmatprep.subr.mxu0 0.0
    %1461 = vmatpush1.msra.mxu0 0.0
    %1462 = vmatprep.subr.mxu0 0.0
    %1463 = vmatpush1.msra.mxu0 0.0
    %1464 = vmatprep.subr.mxu0 0.0
    %1465 = vmatpush1.msra.mxu0 0.0
    %1466 = vmatprep.subr.mxu0 0.0
    %1467 = vmatpush1.msra.mxu0 0.0
    %1468 = vmatprep.subr.mxu0 0.0
    %1469 = vmatpush1.msra.mxu0 0.0
    %1470 = vmatprep.subr.mxu0 0.0
    %1471 = vmatpush1.msra.mxu0 0.0
    %1472 = vmatprep.subr.mxu0 0.0
    %1473 = vmatpush1.msra.mxu0 0.0
    %1474 = vmatprep.subr.mxu0 0.0
    %1475 = vmatpush1.msra.mxu0 0.0
    %1476 = vmatprep.subr.mxu0 %v929
    %1477 = vmatpush1.msra.mxu0 %v928
    %1478 = vmatprep.subr.mxu0 %v927
    %1479 = vmatpush1.msra.mxu0 %v926
    %1480 = vmatprep.subr.mxu0 %v925
    %1481 = vmatpush1.msra.mxu0 %v924
    %1482 = vmatprep.subr.mxu0 %v923
    %1483 = vmatpush1.msra.mxu0 %v922
    %1484 = vmatprep.subr.mxu0 %v921
    %1485 = vmatpush1.msra.mxu0 %v920
    %1486 = vmatprep.subr.mxu0 %v919
    %1487 = vmatpush1.msra.mxu0 %v918
    %1488 = vmatprep.subr.mxu0 %v917
    %1489 = vmatpush1.msra.mxu0 %v916
    %1490 = vmatprep.subr.mxu0 %v915
    %1491 = vmatpush1.msra.mxu0 %v914
    %1492 = vmatprep.subr.mxu0 0.0
    %1493 = vmatpush2.msra.mxu0 0.0
    %1494 = vmatprep.subr.mxu0 0.0
    %1495 = vmatpush2.msra.mxu0 0.0
    %1496 = vmatprep.subr.mxu0 0.0
    %1497 = vmatpush2.msra.mxu0 0.0
    %1498 = vmatprep.subr.mxu0 0.0
    %1499 = vmatpush2.msra.mxu0 0.0
    %1500 = vmatprep.subr.mxu0 0.0
    %1501 = vmatpush2.msra.mxu0 0.0
    %1502 = vmatprep.subr.mxu0 0.0
    %1503 = vmatpush2.msra.mxu0 0.0
    %1504 = vmatprep.subr.mxu0 0.0
    %1505 = vmatpush2.msra.mxu0 0.0
    %1506 = vmatprep.subr.mxu0 0.0
    %1507 = vmatpush2.msra.mxu0 0.0
    %1508 = vmatprep.subr.mxu0 0.0
    %1509 = vmatpush2.msra.mxu0 0.0
    %1510 = vmatprep.subr.mxu0 0.0
    %1511 = vmatpush2.msra.mxu0 0.0
    %1512 = vmatprep.subr.mxu0 0.0
    %1513 = vmatpush2.msra.mxu0 0.0
    %1514 = vmatprep.subr.mxu0 0.0
    %1515 = vmatpush2.msra.mxu0 0.0
    %1516 = vmatprep.subr.mxu0 0.0
    %1517 = vmatpush2.msra.mxu0 0.0
    %1518 = vmatprep.subr.mxu0 0.0
    %1519 = vmatpush2.msra.mxu0 0.0
    %1520 = vmatprep.subr.mxu0 0.0
    %1521 = vmatpush2.msra.mxu0 0.0
    %1522 = vmatprep.subr.mxu0 0.0
    %1523 = vmatpush2.msra.mxu0 0.0
    %1524 = vmatprep.mubr.f32.mxu0 0.0
    %1525 = vmatmul.mubr.f32.gmra.mxu0 %v1458
    %v1526 = vpop.f32.mrf.mxu0
    %v1527 = vadd.f32 0.0, %v1526
    %v1528 = vpop.f32.mrf.mxu0
    %v1529 = vadd.f32 0.0, %v1528
    %1530 = vdwg.mxu0
    %v1531 = vadd.f32 %v747, %v1527
    %v1532 = vadd.f32 %v749, %v1529
    %v1533 = vxor.u32 %v1531, 2147483648
    %v1534 = vmul.f32 %v1533, 1.442695
    %v1535 = vpow.pop %v1534
    %v1536 = vadd.f32 %v1535, 1.0
    %v1537 = vrcp.pop %v1536
    %v1538 = vmul.f32 1.0, %v1537
    %v1539 = vtanh.pop %v1532
    %v1540 = vxor.u32 %v1532, 2147483648
    %v1541 = vmul.f32 %v1540, 1.442695
    %v1542 = vpow.pop %v1541
    %v1543 = vadd.f32 %v1542, 1.0
    %v1544 = vrcp.pop %v1543
    %v1545 = vmul.f32 1.0, %v1544
    %v1546 = vmul.f32 %v1538, %v1452
    %v1547 = vmul.f32 %v1538, %v1539
    %1549 = vrot.lane.b32.xlu0 %v1547, 64
    %v1550 = vpop.permute.xlu0 %1549
    %v1552 = vadd.f32 %v1546, %v1550
    %v1553 = vtanh.pop %v1552
    %v1554 = vmul.f32 %v1545, %v1553
    %1556 = vrot.lane.b32.xlu0 %v1554, 64
    %v1557 = vpop.permute.xlu0 %1556
    %v1558 = vsel %vm953, %v1557, 0
    %1560 = vmatprep.subr.mxu0 0.0
    %1561 = vmatpush1.msra.mxu0 0.0
    %1562 = vmatprep.subr.mxu0 0.0
    %1563 = vmatpush1.msra.mxu0 0.0
    %1564 = vmatprep.subr.mxu0 0.0
    %1565 = vmatpush1.msra.mxu0 0.0
    %1566 = vmatprep.subr.mxu0 0.0
    %1567 = vmatpush1.msra.mxu0 0.0
    %1568 = vmatprep.subr.mxu0 0.0
    %1569 = vmatpush1.msra.mxu0 0.0
    %1570 = vmatprep.subr.mxu0 0.0
    %1571 = vmatpush1.msra.mxu0 0.0
    %1572 = vmatprep.subr.mxu0 0.0
    %1573 = vmatpush1.msra.mxu0 0.0
    %1574 = vmatprep.subr.mxu0 0.0
    %1575 = vmatpush1.msra.mxu0 0.0
    %1576 = vmatprep.subr.mxu0 %v929
    %1577 = vmatpush1.msra.mxu0 %v928
    %1578 = vmatprep.subr.mxu0 %v927
    %1579 = vmatpush1.msra.mxu0 %v926
    %1580 = vmatprep.subr.mxu0 %v925
    %1581 = vmatpush1.msra.mxu0 %v924
    %1582 = vmatprep.subr.mxu0 %v923
    %1583 = vmatpush1.msra.mxu0 %v922
    %1584 = vmatprep.subr.mxu0 %v921
    %1585 = vmatpush1.msra.mxu0 %v920
    %1586 = vmatprep.subr.mxu0 %v919
    %1587 = vmatpush1.msra.mxu0 %v918
    %1588 = vmatprep.subr.mxu0 %v917
    %1589 = vmatpush1.msra.mxu0 %v916
    %1590 = vmatprep.subr.mxu0 %v915
    %1591 = vmatpush1.msra.mxu0 %v914
    %1592 = vmatprep.subr.mxu0 0.0
    %1593 = vmatpush2.msra.mxu0 0.0
    %1594 = vmatprep.subr.mxu0 0.0
    %1595 = vmatpush2.msra.mxu0 0.0
    %1596 = vmatprep.subr.mxu0 0.0
    %1597 = vmatpush2.msra.mxu0 0.0
    %1598 = vmatprep.subr.mxu0 0.0
    %1599 = vmatpush2.msra.mxu0 0.0
    %1600 = vmatprep.subr.mxu0 0.0
    %1601 = vmatpush2.msra.mxu0 0.0
    %1602 = vmatprep.subr.mxu0 0.0
    %1603 = vmatpush2.msra.mxu0 0.0
    %1604 = vmatprep.subr.mxu0 0.0
    %1605 = vmatpush2.msra.mxu0 0.0
    %1606 = vmatprep.subr.mxu0 0.0
    %1607 = vmatpush2.msra.mxu0 0.0
    %1608 = vmatprep.subr.mxu0 0.0
    %1609 = vmatpush2.msra.mxu0 0.0
    %1610 = vmatprep.subr.mxu0 0.0
    %1611 = vmatpush2.msra.mxu0 0.0
    %1612 = vmatprep.subr.mxu0 0.0
    %1613 = vmatpush2.msra.mxu0 0.0
    %1614 = vmatprep.subr.mxu0 0.0
    %1615 = vmatpush2.msra.mxu0 0.0
    %1616 = vmatprep.subr.mxu0 0.0
    %1617 = vmatpush2.msra.mxu0 0.0
    %1618 = vmatprep.subr.mxu0 0.0
    %1619 = vmatpush2.msra.mxu0 0.0
    %1620 = vmatprep.subr.mxu0 0.0
    %1621 = vmatpush2.msra.mxu0 0.0
    %1622 = vmatprep.subr.mxu0 0.0
    %1623 = vmatpush2.msra.mxu0 0.0
    %1624 = vmatprep.mubr.f32.mxu0 0.0
    %1625 = vmatmul.mubr.f32.gmra.mxu0 %v1558
    %v1626 = vpop.f32.mrf.mxu0
    %v1627 = vadd.f32 0.0, %v1626
    %v1628 = vpop.f32.mrf.mxu0
    %v1629 = vadd.f32 0.0, %v1628
    %1630 = vdwg.mxu0
    %v1631 = vadd.f32 %v753, %v1627
    %v1632 = vadd.f32 %v755, %v1629
    %v1633 = vxor.u32 %v1631, 2147483648
    %v1634 = vmul.f32 %v1633, 1.442695
    %v1635 = vpow.pop %v1634
    %v1636 = vadd.f32 %v1635, 1.0
    %v1637 = vrcp.pop %v1636
    %v1638 = vmul.f32 1.0, %v1637
    %v1639 = vtanh.pop %v1632
    %v1640 = vxor.u32 %v1632, 2147483648
    %v1641 = vmul.f32 %v1640, 1.442695
    %v1642 = vpow.pop %v1641
    %v1643 = vadd.f32 %v1642, 1.0
    %v1644 = vrcp.pop %v1643
    %v1645 = vmul.f32 1.0, %v1644
    %v1646 = vmul.f32 %v1638, %v1552
    %v1647 = vmul.f32 %v1638, %v1639
    %1649 = vrot.lane.b32.xlu0 %v1647, 64
    %v1650 = vpop.permute.xlu0 %1649
    %v1652 = vadd.f32 %v1646, %v1650
    %v1653 = vtanh.pop %v1652
    %v1654 = vmul.f32 %v1645, %v1653
    %1656 = vrot.lane.b32.xlu0 %v1654, 64
    %v1657 = vpop.permute.xlu0 %1656
    %v1658 = vsel %vm953, %v1657, 0
    %1660 = vmatprep.subr.mxu0 0.0
    %1661 = vmatpush1.msra.mxu0 0.0
    %1662 = vmatprep.subr.mxu0 0.0
    %1663 = vmatpush1.msra.mxu0 0.0
    %1664 = vmatprep.subr.mxu0 0.0
    %1665 = vmatpush1.msra.mxu0 0.0
    %1666 = vmatprep.subr.mxu0 0.0
    %1667 = vmatpush1.msra.mxu0 0.0
    %1668 = vmatprep.subr.mxu0 0.0
    %1669 = vmatpush1.msra.mxu0 0.0
    %1670 = vmatprep.subr.mxu0 0.0
    %1671 = vmatpush1.msra.mxu0 0.0
    %1672 = vmatprep.subr.mxu0 0.0
    %1673 = vmatpush1.msra.mxu0 0.0
    %1674 = vmatprep.subr.mxu0 0.0
    %1675 = vmatpush1.msra.mxu0 0.0
    %1676 = vmatprep.subr.mxu0 %v929
    %1677 = vmatpush1.msra.mxu0 %v928
    %1678 = vmatprep.subr.mxu0 %v927
    %1679 = vmatpush1.msra.mxu0 %v926
    %1680 = vmatprep.subr.mxu0 %v925
    %1681 = vmatpush1.msra.mxu0 %v924
    %1682 = vmatprep.subr.mxu0 %v923
    %1683 = vmatpush1.msra.mxu0 %v922
    %1684 = vmatprep.subr.mxu0 %v921
    %1685 = vmatpush1.msra.mxu0 %v920
    %1686 = vmatprep.subr.mxu0 %v919
    %1687 = vmatpush1.msra.mxu0 %v918
    %1688 = vmatprep.subr.mxu0 %v917
    %1689 = vmatpush1.msra.mxu0 %v916
    %1690 = vmatprep.subr.mxu0 %v915
    %1691 = vmatpush1.msra.mxu0 %v914
    %1692 = vmatprep.subr.mxu0 0.0
    %1693 = vmatpush2.msra.mxu0 0.0
    %1694 = vmatprep.subr.mxu0 0.0
    %1695 = vmatpush2.msra.mxu0 0.0
    %1696 = vmatprep.subr.mxu0 0.0
    %1697 = vmatpush2.msra.mxu0 0.0
    %1698 = vmatprep.subr.mxu0 0.0
    %1699 = vmatpush2.msra.mxu0 0.0
    %1700 = vmatprep.subr.mxu0 0.0
    %1701 = vmatpush2.msra.mxu0 0.0
    %1702 = vmatprep.subr.mxu0 0.0
    %1703 = vmatpush2.msra.mxu0 0.0
    %1704 = vmatprep.subr.mxu0 0.0
    %1705 = vmatpush2.msra.mxu0 0.0
    %1706 = vmatprep.subr.mxu0 0.0
    %1707 = vmatpush2.msra.mxu0 0.0
    %1708 = vmatprep.subr.mxu0 0.0
    %1709 = vmatpush2.msra.mxu0 0.0
    %1710 = vmatprep.subr.mxu0 0.0
    %1711 = vmatpush2.msra.mxu0 0.0
    %1712 = vmatprep.subr.mxu0 0.0
    %1713 = vmatpush2.msra.mxu0 0.0
    %1714 = vmatprep.subr.mxu0 0.0
    %1715 = vmatpush2.msra.mxu0 0.0
    %1716 = vmatprep.subr.mxu0 0.0
    %1717 = vmatpush2.msra.mxu0 0.0
    %1718 = vmatprep.subr.mxu0 0.0
    %1719 = vmatpush2.msra.mxu0 0.0
    %1720 = vmatprep.subr.mxu0 0.0
    %1721 = vmatpush2.msra.mxu0 0.0
    %1722 = vmatprep.subr.mxu0 0.0
    %1723 = vmatpush2.msra.mxu0 0.0
    %1724 = vmatprep.mubr.f32.mxu0 0.0
    %1725 = vmatmul.mubr.f32.gmra.mxu0 %v1658
    %v1726 = vpop.f32.mrf.mxu0
    %v1727 = vadd.f32 0.0, %v1726
    %v1728 = vpop.f32.mrf.mxu0
    %v1729 = vadd.f32 0.0, %v1728
    %1730 = vdwg.mxu0
    %v1731 = vadd.f32 %v759, %v1727
    %v1732 = vadd.f32 %v761, %v1729
    %v1733 = vxor.u32 %v1731, 2147483648
    %v1734 = vmul.f32 %v1733, 1.442695
    %v1735 = vpow.pop %v1734
    %v1736 = vadd.f32 %v1735, 1.0
    %v1737 = vrcp.pop %v1736
    %v1738 = vmul.f32 1.0, %v1737
    %v1739 = vtanh.pop %v1732
    %v1740 = vxor.u32 %v1732, 2147483648
    %v1741 = vmul.f32 %v1740, 1.442695
    %v1742 = vpow.pop %v1741
    %v1743 = vadd.f32 %v1742, 1.0
    %v1744 = vrcp.pop %v1743
    %v1745 = vmul.f32 1.0, %v1744
    %v1746 = vmul.f32 %v1738, %v1652
    %v1747 = vmul.f32 %v1738, %v1739
    %1749 = vrot.lane.b32.xlu0 %v1747, 64
    %v1750 = vpop.permute.xlu0 %1749
    %v1752 = vadd.f32 %v1746, %v1750
    %v1753 = vtanh.pop %v1752
    %v1754 = vmul.f32 %v1745, %v1753
    %1756 = vrot.lane.b32.xlu0 %v1754, 64
    %v1757 = vpop.permute.xlu0 %1756
    %v1758 = vsel %vm953, %v1757, 0
    %1760 = vmatprep.subr.mxu0 0.0
    %1761 = vmatpush1.msra.mxu0 0.0
    %1762 = vmatprep.subr.mxu0 0.0
    %1763 = vmatpush1.msra.mxu0 0.0
    %1764 = vmatprep.subr.mxu0 0.0
    %1765 = vmatpush1.msra.mxu0 0.0
    %1766 = vmatprep.subr.mxu0 0.0
    %1767 = vmatpush1.msra.mxu0 0.0
    %1768 = vmatprep.subr.mxu0 0.0
    %1769 = vmatpush1.msra.mxu0 0.0
    %1770 = vmatprep.subr.mxu0 0.0
    %1771 = vmatpush1.msra.mxu0 0.0
    %1772 = vmatprep.subr.mxu0 0.0
    %1773 = vmatpush1.msra.mxu0 0.0
    %1774 = vmatprep.subr.mxu0 0.0
    %1775 = vmatpush1.msra.mxu0 0.0
    %1776 = vmatprep.subr.mxu0 %v929
    %1777 = vmatpush1.msra.mxu0 %v928
    %1778 = vmatprep.subr.mxu0 %v927
    %1779 = vmatpush1.msra.mxu0 %v926
    %1780 = vmatprep.subr.mxu0 %v925
    %1781 = vmatpush1.msra.mxu0 %v924
    %1782 = vmatprep.subr.mxu0 %v923
    %1783 = vmatpush1.msra.mxu0 %v922
    %1784 = vmatprep.subr.mxu0 %v921
    %1785 = vmatpush1.msra.mxu0 %v920
    %1786 = vmatprep.subr.mxu0 %v919
    %1787 = vmatpush1.msra.mxu0 %v918
    %1788 = vmatprep.subr.mxu0 %v917
    %1789 = vmatpush1.msra.mxu0 %v916
    %1790 = vmatprep.subr.mxu0 %v915
    %1791 = vmatpush1.msra.mxu0 %v914
    %1792 = vmatprep.subr.mxu0 0.0
    %1793 = vmatpush2.msra.mxu0 0.0
    %1794 = vmatprep.subr.mxu0 0.0
    %1795 = vmatpush2.msra.mxu0 0.0
    %1796 = vmatprep.subr.mxu0 0.0
    %1797 = vmatpush2.msra.mxu0 0.0
    %1798 = vmatprep.subr.mxu0 0.0
    %1799 = vmatpush2.msra.mxu0 0.0
    %1800 = vmatprep.subr.mxu0 0.0
    %1801 = vmatpush2.msra.mxu0 0.0
    %1802 = vmatprep.subr.mxu0 0.0
    %1803 = vmatpush2.msra.mxu0 0.0
    %1804 = vmatprep.subr.mxu0 0.0
    %1805 = vmatpush2.msra.mxu0 0.0
    %1806 = vmatprep.subr.mxu0 0.0
    %1807 = vmatpush2.msra.mxu0 0.0
    %1808 = vmatprep.subr.mxu0 0.0
    %1809 = vmatpush2.msra.mxu0 0.0
    %1810 = vmatprep.subr.mxu0 0.0
    %1811 = vmatpush2.msra.mxu0 0.0
    %1812 = vmatprep.subr.mxu0 0.0
    %1813 = vmatpush2.msra.mxu0 0.0
    %1814 = vmatprep.subr.mxu0 0.0
    %1815 = vmatpush2.msra.mxu0 0.0
    %1816 = vmatprep.subr.mxu0 0.0
    %1817 = vmatpush2.msra.mxu0 0.0
    %1818 = vmatprep.subr.mxu0 0.0
    %1819 = vmatpush2.msra.mxu0 0.0
    %1820 = vmatprep.subr.mxu0 0.0
    %1821 = vmatpush2.msra.mxu0 0.0
    %1822 = vmatprep.subr.mxu0 0.0
    %1823 = vmatpush2.msra.mxu0 0.0
    %1824 = vmatprep.mubr.f32.mxu0 0.0
    %1825 = vmatmul.mubr.f32.gmra.mxu0 %v1758
    %v1826 = vpop.f32.mrf.mxu0
    %v1827 = vadd.f32 0.0, %v1826
    %v1828 = vpop.f32.mrf.mxu0
    %v1829 = vadd.f32 0.0, %v1828
    %1830 = vdwg.mxu0
    %v1831 = vadd.f32 %v765, %v1827
    %v1832 = vadd.f32 %v767, %v1829
    %v1833 = vxor.u32 %v1831, 2147483648
    %v1834 = vmul.f32 %v1833, 1.442695
    %v1835 = vpow.pop %v1834
    %v1836 = vadd.f32 %v1835, 1.0
    %v1837 = vrcp.pop %v1836
    %v1838 = vmul.f32 1.0, %v1837
    %v1839 = vtanh.pop %v1832
    %v1840 = vxor.u32 %v1832, 2147483648
    %v1841 = vmul.f32 %v1840, 1.442695
    %v1842 = vpow.pop %v1841
    %v1843 = vadd.f32 %v1842, 1.0
    %v1844 = vrcp.pop %v1843
    %v1845 = vmul.f32 1.0, %v1844
    %v1846 = vmul.f32 %v1838, %v1752
    %v1847 = vmul.f32 %v1838, %v1839
    %1849 = vrot.lane.b32.xlu0 %v1847, 64
    %v1850 = vpop.permute.xlu0 %1849
    %v1852 = vadd.f32 %v1846, %v1850
    %v1853 = vtanh.pop %v1852
    %v1854 = vmul.f32 %v1845, %v1853
    %1856 = vrot.lane.b32.xlu0 %v1854, 64
    %v1857 = vpop.permute.xlu0 %1856
    %v1858 = vsel %vm953, %v1857, 0
    %1860 = vmatprep.subr.mxu0 0.0
    %1861 = vmatpush1.msra.mxu0 0.0
    %1862 = vmatprep.subr.mxu0 0.0
    %1863 = vmatpush1.msra.mxu0 0.0
    %1864 = vmatprep.subr.mxu0 0.0
    %1865 = vmatpush1.msra.mxu0 0.0
    %1866 = vmatprep.subr.mxu0 0.0
    %1867 = vmatpush1.msra.mxu0 0.0
    %1868 = vmatprep.subr.mxu0 0.0
    %1869 = vmatpush1.msra.mxu0 0.0
    %1870 = vmatprep.subr.mxu0 0.0
    %1871 = vmatpush1.msra.mxu0 0.0
    %1872 = vmatprep.subr.mxu0 0.0
    %1873 = vmatpush1.msra.mxu0 0.0
    %1874 = vmatprep.subr.mxu0 0.0
    %1875 = vmatpush1.msra.mxu0 0.0
    %1876 = vmatprep.subr.mxu0 %v929
    %1877 = vmatpush1.msra.mxu0 %v928
    %1878 = vmatprep.subr.mxu0 %v927
    %1879 = vmatpush1.msra.mxu0 %v926
    %1880 = vmatprep.subr.mxu0 %v925
    %1881 = vmatpush1.msra.mxu0 %v924
    %1882 = vmatprep.subr.mxu0 %v923
    %1883 = vmatpush1.msra.mxu0 %v922
    %1884 = vmatprep.subr.mxu0 %v921
    %1885 = vmatpush1.msra.mxu0 %v920
    %1886 = vmatprep.subr.mxu0 %v919
    %1887 = vmatpush1.msra.mxu0 %v918
    %1888 = vmatprep.subr.mxu0 %v917
    %1889 = vmatpush1.msra.mxu0 %v916
    %1890 = vmatprep.subr.mxu0 %v915
    %1891 = vmatpush1.msra.mxu0 %v914
    %1892 = vmatprep.subr.mxu0 0.0
    %1893 = vmatpush2.msra.mxu0 0.0
    %1894 = vmatprep.subr.mxu0 0.0
    %1895 = vmatpush2.msra.mxu0 0.0
    %1896 = vmatprep.subr.mxu0 0.0
    %1897 = vmatpush2.msra.mxu0 0.0
    %1898 = vmatprep.subr.mxu0 0.0
    %1899 = vmatpush2.msra.mxu0 0.0
    %1900 = vmatprep.subr.mxu0 0.0
    %1901 = vmatpush2.msra.mxu0 0.0
    %1902 = vmatprep.subr.mxu0 0.0
    %1903 = vmatpush2.msra.mxu0 0.0
    %1904 = vmatprep.subr.mxu0 0.0
    %1905 = vmatpush2.msra.mxu0 0.0
    %1906 = vmatprep.subr.mxu0 0.0
    %1907 = vmatpush2.msra.mxu0 0.0
    %1908 = vmatprep.subr.mxu0 0.0
    %1909 = vmatpush2.msra.mxu0 0.0
    %1910 = vmatprep.subr.mxu0 0.0
    %1911 = vmatpush2.msra.mxu0 0.0
    %1912 = vmatprep.subr.mxu0 0.0
    %1913 = vmatpush2.msra.mxu0 0.0
    %1914 = vmatprep.subr.mxu0 0.0
    %1915 = vmatpush2.msra.mxu0 0.0
    %1916 = vmatprep.subr.mxu0 0.0
    %1917 = vmatpush2.msra.mxu0 0.0
    %1918 = vmatprep.subr.mxu0 0.0
    %1919 = vmatpush2.msra.mxu0 0.0
    %1920 = vmatprep.subr.mxu0 0.0
    %1921 = vmatpush2.msra.mxu0 0.0
    %1922 = vmatprep.subr.mxu0 0.0
    %1923 = vmatpush2.msra.mxu0 0.0
    %1924 = vmatprep.mubr.f32.mxu0 0.0
    %1925 = vmatmul.mubr.f32.gmra.mxu0 %v1858
    %v1926 = vpop.f32.mrf.mxu0
    %v1927 = vadd.f32 0.0, %v1926
    %v1928 = vpop.f32.mrf.mxu0
    %v1929 = vadd.f32 0.0, %v1928
    %1930 = vdwg.mxu0
    %v1931 = vadd.f32 %v771, %v1927
    %v1932 = vadd.f32 %v773, %v1929
    %v1933 = vxor.u32 %v1931, 2147483648
    %v1934 = vmul.f32 %v1933, 1.442695
    %v1935 = vpow.pop %v1934
    %v1936 = vadd.f32 %v1935, 1.0
    %v1937 = vrcp.pop %v1936
    %v1938 = vmul.f32 1.0, %v1937
    %v1939 = vtanh.pop %v1932
    %v1940 = vxor.u32 %v1932, 2147483648
    %v1941 = vmul.f32 %v1940, 1.442695
    %v1942 = vpow.pop %v1941
    %v1943 = vadd.f32 %v1942, 1.0
    %v1944 = vrcp.pop %v1943
    %v1945 = vmul.f32 1.0, %v1944
    %v1946 = vmul.f32 %v1938, %v1852
    %v1947 = vmul.f32 %v1938, %v1939
    %1949 = vrot.lane.b32.xlu0 %v1947, 64
    %v1950 = vpop.permute.xlu0 %1949
    %v1952 = vadd.f32 %v1946, %v1950
    %v1953 = vtanh.pop %v1952
    %v1954 = vmul.f32 %v1945, %v1953
    %1956 = vrot.lane.b32.xlu0 %v1954, 64
    %v1957 = vpop.permute.xlu0 %1956
    %v1958 = vsel %vm953, %v1957, 0
    %1960 = vmatprep.subr.mxu0 0.0
    %1961 = vmatpush1.msra.mxu0 0.0
    %1962 = vmatprep.subr.mxu0 0.0
    %1963 = vmatpush1.msra.mxu0 0.0
    %1964 = vmatprep.subr.mxu0 0.0
    %1965 = vmatpush1.msra.mxu0 0.0
    %1966 = vmatprep.subr.mxu0 0.0
    %1967 = vmatpush1.msra.mxu0 0.0
    %1968 = vmatprep.subr.mxu0 0.0
    %1969 = vmatpush1.msra.mxu0 0.0
    %1970 = vmatprep.subr.mxu0 0.0
    %1971 = vmatpush1.msra.mxu0 0.0
    %1972 = vmatprep.subr.mxu0 0.0
    %1973 = vmatpush1.msra.mxu0 0.0
    %1974 = vmatprep.subr.mxu0 0.0
    %1975 = vmatpush1.msra.mxu0 0.0
    %1976 = vmatprep.subr.mxu0 %v929
    %1977 = vmatpush1.msra.mxu0 %v928
    %1978 = vmatprep.subr.mxu0 %v927
    %1979 = vmatpush1.msra.mxu0 %v926
    %1980 = vmatprep.subr.mxu0 %v925
    %1981 = vmatpush1.msra.mxu0 %v924
    %1982 = vmatprep.subr.mxu0 %v923
    %1983 = vmatpush1.msra.mxu0 %v922
    %1984 = vmatprep.subr.mxu0 %v921
    %1985 = vmatpush1.msra.mxu0 %v920
    %1986 = vmatprep.subr.mxu0 %v919
    %1987 = vmatpush1.msra.mxu0 %v918
    %1988 = vmatprep.subr.mxu0 %v917
    %1989 = vmatpush1.msra.mxu0 %v916
    %1990 = vmatprep.subr.mxu0 %v915
    %1991 = vmatpush1.msra.mxu0 %v914
    %1992 = vmatprep.subr.mxu0 0.0
    %1993 = vmatpush2.msra.mxu0 0.0
    %1994 = vmatprep.subr.mxu0 0.0
    %1995 = vmatpush2.msra.mxu0 0.0
    %1996 = vmatprep.subr.mxu0 0.0
    %1997 = vmatpush2.msra.mxu0 0.0
    %1998 = vmatprep.subr.mxu0 0.0
    %1999 = vmatpush2.msra.mxu0 0.0
    %2000 = vmatprep.subr.mxu0 0.0
    %2001 = vmatpush2.msra.mxu0 0.0
    %2002 = vmatprep.subr.mxu0 0.0
    %2003 = vmatpush2.msra.mxu0 0.0
    %2004 = vmatprep.subr.mxu0 0.0
    %2005 = vmatpush2.msra.mxu0 0.0
    %2006 = vmatprep.subr.mxu0 0.0
    %2007 = vmatpush2.msra.mxu0 0.0
    %2008 = vmatprep.subr.mxu0 0.0
    %2009 = vmatpush2.msra.mxu0 0.0
    %2010 = vmatprep.subr.mxu0 0.0
    %2011 = vmatpush2.msra.mxu0 0.0
    %2012 = vmatprep.subr.mxu0 0.0
    %2013 = vmatpush2.msra.mxu0 0.0
    %2014 = vmatprep.subr.mxu0 0.0
    %2015 = vmatpush2.msra.mxu0 0.0
    %2016 = vmatprep.subr.mxu0 0.0
    %2017 = vmatpush2.msra.mxu0 0.0
    %2018 = vmatprep.subr.mxu0 0.0
    %2019 = vmatpush2.msra.mxu0 0.0
    %2020 = vmatprep.subr.mxu0 0.0
    %2021 = vmatpush2.msra.mxu0 0.0
    %2022 = vmatprep.subr.mxu0 0.0
    %2023 = vmatpush2.msra.mxu0 0.0
    %2024 = vmatprep.mubr.f32.mxu0 0.0
    %2025 = vmatmul.mubr.f32.gmra.mxu0 %v1958
    %v2026 = vpop.f32.mrf.mxu0
    %v2027 = vadd.f32 0.0, %v2026
    %v2028 = vpop.f32.mrf.mxu0
    %v2029 = vadd.f32 0.0, %v2028
    %2030 = vdwg.mxu0
    %v2031 = vadd.f32 %v777, %v2027
    %v2032 = vadd.f32 %v779, %v2029
    %v2033 = vxor.u32 %v2031, 2147483648
    %v2034 = vmul.f32 %v2033, 1.442695
    %v2035 = vpow.pop %v2034
    %v2036 = vadd.f32 %v2035, 1.0
    %v2037 = vrcp.pop %v2036
    %v2038 = vmul.f32 1.0, %v2037
    %v2039 = vtanh.pop %v2032
    %v2040 = vxor.u32 %v2032, 2147483648
    %v2041 = vmul.f32 %v2040, 1.442695
    %v2042 = vpow.pop %v2041
    %v2043 = vadd.f32 %v2042, 1.0
    %v2044 = vrcp.pop %v2043
    %v2045 = vmul.f32 1.0, %v2044
    %v2046 = vmul.f32 %v2038, %v1952
    %v2047 = vmul.f32 %v2038, %v2039
    %2049 = vrot.lane.b32.xlu0 %v2047, 64
    %v2050 = vpop.permute.xlu0 %2049
    %v2052 = vadd.f32 %v2046, %v2050
    %v2053 = vtanh.pop %v2052
    %v2054 = vmul.f32 %v2045, %v2053
    %2056 = vrot.lane.b32.xlu0 %v2054, 64
    %v2057 = vpop.permute.xlu0 %2056
    %v2058 = vsel %vm953, %v2057, 0
    %2060 = vmatprep.subr.mxu0 0.0
    %2061 = vmatpush1.msra.mxu0 0.0
    %2062 = vmatprep.subr.mxu0 0.0
    %2063 = vmatpush1.msra.mxu0 0.0
    %2064 = vmatprep.subr.mxu0 0.0
    %2065 = vmatpush1.msra.mxu0 0.0
    %2066 = vmatprep.subr.mxu0 0.0
    %2067 = vmatpush1.msra.mxu0 0.0
    %2068 = vmatprep.subr.mxu0 0.0
    %2069 = vmatpush1.msra.mxu0 0.0
    %2070 = vmatprep.subr.mxu0 0.0
    %2071 = vmatpush1.msra.mxu0 0.0
    %2072 = vmatprep.subr.mxu0 0.0
    %2073 = vmatpush1.msra.mxu0 0.0
    %2074 = vmatprep.subr.mxu0 0.0
    %2075 = vmatpush1.msra.mxu0 0.0
    %2076 = vmatprep.subr.mxu0 %v929
    %2077 = vmatpush1.msra.mxu0 %v928
    %2078 = vmatprep.subr.mxu0 %v927
    %2079 = vmatpush1.msra.mxu0 %v926
    %2080 = vmatprep.subr.mxu0 %v925
    %2081 = vmatpush1.msra.mxu0 %v924
    %2082 = vmatprep.subr.mxu0 %v923
    %2083 = vmatpush1.msra.mxu0 %v922
    %2084 = vmatprep.subr.mxu0 %v921
    %2085 = vmatpush1.msra.mxu0 %v920
    %2086 = vmatprep.subr.mxu0 %v919
    %2087 = vmatpush1.msra.mxu0 %v918
    %2088 = vmatprep.subr.mxu0 %v917
    %2089 = vmatpush1.msra.mxu0 %v916
    %2090 = vmatprep.subr.mxu0 %v915
    %2091 = vmatpush1.msra.mxu0 %v914
    %2092 = vmatprep.subr.mxu0 0.0
    %2093 = vmatpush2.msra.mxu0 0.0
    %2094 = vmatprep.subr.mxu0 0.0
    %2095 = vmatpush2.msra.mxu0 0.0
    %2096 = vmatprep.subr.mxu0 0.0
    %2097 = vmatpush2.msra.mxu0 0.0
    %2098 = vmatprep.subr.mxu0 0.0
    %2099 = vmatpush2.msra.mxu0 0.0
    %2100 = vmatprep.subr.mxu0 0.0
    %2101 = vmatpush2.msra.mxu0 0.0
    %2102 = vmatprep.subr.mxu0 0.0
    %2103 = vmatpush2.msra.mxu0 0.0
    %2104 = vmatprep.subr.mxu0 0.0
    %2105 = vmatpush2.msra.mxu0 0.0
    %2106 = vmatprep.subr.mxu0 0.0
    %2107 = vmatpush2.msra.mxu0 0.0
    %2108 = vmatprep.subr.mxu0 0.0
    %2109 = vmatpush2.msra.mxu0 0.0
    %2110 = vmatprep.subr.mxu0 0.0
    %2111 = vmatpush2.msra.mxu0 0.0
    %2112 = vmatprep.subr.mxu0 0.0
    %2113 = vmatpush2.msra.mxu0 0.0
    %2114 = vmatprep.subr.mxu0 0.0
    %2115 = vmatpush2.msra.mxu0 0.0
    %2116 = vmatprep.subr.mxu0 0.0
    %2117 = vmatpush2.msra.mxu0 0.0
    %2118 = vmatprep.subr.mxu0 0.0
    %2119 = vmatpush2.msra.mxu0 0.0
    %2120 = vmatprep.subr.mxu0 0.0
    %2121 = vmatpush2.msra.mxu0 0.0
    %2122 = vmatprep.subr.mxu0 0.0
    %2123 = vmatpush2.msra.mxu0 0.0
    %2124 = vmatprep.mubr.f32.mxu0 0.0
    %2125 = vmatmul.mubr.f32.gmra.mxu0 %v2058
    %v2126 = vpop.f32.mrf.mxu0
    %v2127 = vadd.f32 0.0, %v2126
    %v2128 = vpop.f32.mrf.mxu0
    %v2129 = vadd.f32 0.0, %v2128
    %2130 = vdwg.mxu0
    %v2131 = vadd.f32 %v783, %v2127
    %v2132 = vadd.f32 %v785, %v2129
    %v2133 = vxor.u32 %v2131, 2147483648
    %v2134 = vmul.f32 %v2133, 1.442695
    %v2135 = vpow.pop %v2134
    %v2136 = vadd.f32 %v2135, 1.0
    %v2137 = vrcp.pop %v2136
    %v2138 = vmul.f32 1.0, %v2137
    %v2139 = vtanh.pop %v2132
    %v2140 = vxor.u32 %v2132, 2147483648
    %v2141 = vmul.f32 %v2140, 1.442695
    %v2142 = vpow.pop %v2141
    %v2143 = vadd.f32 %v2142, 1.0
    %v2144 = vrcp.pop %v2143
    %v2145 = vmul.f32 1.0, %v2144
    %v2146 = vmul.f32 %v2138, %v2052
    %v2147 = vmul.f32 %v2138, %v2139
    %2149 = vrot.lane.b32.xlu0 %v2147, 64
    %v2150 = vpop.permute.xlu0 %2149
    %v2152 = vadd.f32 %v2146, %v2150
    %v2153 = vtanh.pop %v2152
    %v2154 = vmul.f32 %v2145, %v2153
    %2156 = vrot.lane.b32.xlu0 %v2154, 64
    %v2157 = vpop.permute.xlu0 %2156
    %v2158 = vsel %vm953, %v2157, 0
    %2160 = vmatprep.subr.mxu0 0.0
    %2161 = vmatpush1.msra.mxu0 0.0
    %2162 = vmatprep.subr.mxu0 0.0
    %2163 = vmatpush1.msra.mxu0 0.0
    %2164 = vmatprep.subr.mxu0 0.0
    %2165 = vmatpush1.msra.mxu0 0.0
    %2166 = vmatprep.subr.mxu0 0.0
    %2167 = vmatpush1.msra.mxu0 0.0
    %2168 = vmatprep.subr.mxu0 0.0
    %2169 = vmatpush1.msra.mxu0 0.0
    %2170 = vmatprep.subr.mxu0 0.0
    %2171 = vmatpush1.msra.mxu0 0.0
    %2172 = vmatprep.subr.mxu0 0.0
    %2173 = vmatpush1.msra.mxu0 0.0
    %2174 = vmatprep.subr.mxu0 0.0
    %2175 = vmatpush1.msra.mxu0 0.0
    %2176 = vmatprep.subr.mxu0 %v929
    %2177 = vmatpush1.msra.mxu0 %v928
    %2178 = vmatprep.subr.mxu0 %v927
    %2179 = vmatpush1.msra.mxu0 %v926
    %2180 = vmatprep.subr.mxu0 %v925
    %2181 = vmatpush1.msra.mxu0 %v924
    %2182 = vmatprep.subr.mxu0 %v923
    %2183 = vmatpush1.msra.mxu0 %v922
    %2184 = vmatprep.subr.mxu0 %v921
    %2185 = vmatpush1.msra.mxu0 %v920
    %2186 = vmatprep.subr.mxu0 %v919
    %2187 = vmatpush1.msra.mxu0 %v918
    %2188 = vmatprep.subr.mxu0 %v917
    %2189 = vmatpush1.msra.mxu0 %v916
    %2190 = vmatprep.subr.mxu0 %v915
    %2191 = vmatpush1.msra.mxu0 %v914
    %2192 = vmatprep.subr.mxu0 0.0
    %2193 = vmatpush2.msra.mxu0 0.0
    %2194 = vmatprep.subr.mxu0 0.0
    %2195 = vmatpush2.msra.mxu0 0.0
    %2196 = vmatprep.subr.mxu0 0.0
    %2197 = vmatpush2.msra.mxu0 0.0
    %2198 = vmatprep.subr.mxu0 0.0
    %2199 = vmatpush2.msra.mxu0 0.0
    %2200 = vmatprep.subr.mxu0 0.0
    %2201 = vmatpush2.msra.mxu0 0.0
    %2202 = vmatprep.subr.mxu0 0.0
    %2203 = vmatpush2.msra.mxu0 0.0
    %2204 = vmatprep.subr.mxu0 0.0
    %2205 = vmatpush2.msra.mxu0 0.0
    %2206 = vmatprep.subr.mxu0 0.0
    %2207 = vmatpush2.msra.mxu0 0.0
    %2208 = vmatprep.subr.mxu0 0.0
    %2209 = vmatpush2.msra.mxu0 0.0
    %2210 = vmatprep.subr.mxu0 0.0
    %2211 = vmatpush2.msra.mxu0 0.0
    %2212 = vmatprep.subr.mxu0 0.0
    %2213 = vmatpush2.msra.mxu0 0.0
    %2214 = vmatprep.subr.mxu0 0.0
    %2215 = vmatpush2.msra.mxu0 0.0
    %2216 = vmatprep.subr.mxu0 0.0
    %2217 = vmatpush2.msra.mxu0 0.0
    %2218 = vmatprep.subr.mxu0 0.0
    %2219 = vmatpush2.msra.mxu0 0.0
    %2220 = vmatprep.subr.mxu0 0.0
    %2221 = vmatpush2.msra.mxu0 0.0
    %2222 = vmatprep.subr.mxu0 0.0
    %2223 = vmatpush2.msra.mxu0 0.0
    %2224 = vmatprep.mubr.f32.mxu0 0.0
    %2225 = vmatmul.mubr.f32.gmra.mxu0 %v2158
    %v2226 = vpop.f32.mrf.mxu0
    %v2227 = vadd.f32 0.0, %v2226
    %v2228 = vpop.f32.mrf.mxu0
    %v2229 = vadd.f32 0.0, %v2228
    %2230 = vdwg.mxu0
    %v2231 = vadd.f32 %v789, %v2227
    %v2232 = vadd.f32 %v791, %v2229
    %v2233 = vxor.u32 %v2231, 2147483648
    %v2234 = vmul.f32 %v2233, 1.442695
    %v2235 = vpow.pop %v2234
    %v2236 = vadd.f32 %v2235, 1.0
    %v2237 = vrcp.pop %v2236
    %v2238 = vmul.f32 1.0, %v2237
    %v2239 = vtanh.pop %v2232
    %v2240 = vxor.u32 %v2232, 2147483648
    %v2241 = vmul.f32 %v2240, 1.442695
    %v2242 = vpow.pop %v2241
    %v2243 = vadd.f32 %v2242, 1.0
    %v2244 = vrcp.pop %v2243
    %v2245 = vmul.f32 1.0, %v2244
    %v2246 = vmul.f32 %v2238, %v2152
    %v2247 = vmul.f32 %v2238, %v2239
    %2249 = vrot.lane.b32.xlu0 %v2247, 64
    %v2250 = vpop.permute.xlu0 %2249
    %v2252 = vadd.f32 %v2246, %v2250
    %v2253 = vtanh.pop %v2252
    %v2254 = vmul.f32 %v2245, %v2253
    %2256 = vrot.lane.b32.xlu0 %v2254, 64
    %v2257 = vpop.permute.xlu0 %2256
    %v2258 = vsel %vm953, %v2257, 0
    %2260 = vmatprep.subr.mxu0 0.0
    %2261 = vmatpush1.msra.mxu0 0.0
    %2262 = vmatprep.subr.mxu0 0.0
    %2263 = vmatpush1.msra.mxu0 0.0
    %2264 = vmatprep.subr.mxu0 0.0
    %2265 = vmatpush1.msra.mxu0 0.0
    %2266 = vmatprep.subr.mxu0 0.0
    %2267 = vmatpush1.msra.mxu0 0.0
    %2268 = vmatprep.subr.mxu0 0.0
    %2269 = vmatpush1.msra.mxu0 0.0
    %2270 = vmatprep.subr.mxu0 0.0
    %2271 = vmatpush1.msra.mxu0 0.0
    %2272 = vmatprep.subr.mxu0 0.0
    %2273 = vmatpush1.msra.mxu0 0.0
    %2274 = vmatprep.subr.mxu0 0.0
    %2275 = vmatpush1.msra.mxu0 0.0
    %2276 = vmatprep.subr.mxu0 %v929
    %2277 = vmatpush1.msra.mxu0 %v928
    %2278 = vmatprep.subr.mxu0 %v927
    %2279 = vmatpush1.msra.mxu0 %v926
    %2280 = vmatprep.subr.mxu0 %v925
    %2281 = vmatpush1.msra.mxu0 %v924
    %2282 = vmatprep.subr.mxu0 %v923
    %2283 = vmatpush1.msra.mxu0 %v922
    %2284 = vmatprep.subr.mxu0 %v921
    %2285 = vmatpush1.msra.mxu0 %v920
    %2286 = vmatprep.subr.mxu0 %v919
    %2287 = vmatpush1.msra.mxu0 %v918
    %2288 = vmatprep.subr.mxu0 %v917
    %2289 = vmatpush1.msra.mxu0 %v916
    %2290 = vmatprep.subr.mxu0 %v915
    %2291 = vmatpush1.msra.mxu0 %v914
    %2292 = vmatprep.subr.mxu0 0.0
    %2293 = vmatpush2.msra.mxu0 0.0
    %2294 = vmatprep.subr.mxu0 0.0
    %2295 = vmatpush2.msra.mxu0 0.0
    %2296 = vmatprep.subr.mxu0 0.0
    %2297 = vmatpush2.msra.mxu0 0.0
    %2298 = vmatprep.subr.mxu0 0.0
    %2299 = vmatpush2.msra.mxu0 0.0
    %2300 = vmatprep.subr.mxu0 0.0
    %2301 = vmatpush2.msra.mxu0 0.0
    %2302 = vmatprep.subr.mxu0 0.0
    %2303 = vmatpush2.msra.mxu0 0.0
    %2304 = vmatprep.subr.mxu0 0.0
    %2305 = vmatpush2.msra.mxu0 0.0
    %2306 = vmatprep.subr.mxu0 0.0
    %2307 = vmatpush2.msra.mxu0 0.0
    %2308 = vmatprep.subr.mxu0 0.0
    %2309 = vmatpush2.msra.mxu0 0.0
    %2310 = vmatprep.subr.mxu0 0.0
    %2311 = vmatpush2.msra.mxu0 0.0
    %2312 = vmatprep.subr.mxu0 0.0
    %2313 = vmatpush2.msra.mxu0 0.0
    %2314 = vmatprep.subr.mxu0 0.0
    %2315 = vmatpush2.msra.mxu0 0.0
    %2316 = vmatprep.subr.mxu0 0.0
    %2317 = vmatpush2.msra.mxu0 0.0
    %2318 = vmatprep.subr.mxu0 0.0
    %2319 = vmatpush2.msra.mxu0 0.0
    %2320 = vmatprep.subr.mxu0 0.0
    %2321 = vmatpush2.msra.mxu0 0.0
    %2322 = vmatprep.subr.mxu0 0.0
    %2323 = vmatpush2.msra.mxu0 0.0
    %2324 = vmatprep.mubr.f32.mxu0 0.0
    %2325 = vmatmul.mubr.f32.gmra.mxu0 %v2258
    %v2326 = vpop.f32.mrf.mxu0
    %v2327 = vadd.f32 0.0, %v2326
    %v2328 = vpop.f32.mrf.mxu0
    %v2329 = vadd.f32 0.0, %v2328
    %2330 = vdwg.mxu0
    %v2331 = vadd.f32 %v795, %v2327
    %v2332 = vadd.f32 %v797, %v2329
    %v2333 = vxor.u32 %v2331, 2147483648
    %v2334 = vmul.f32 %v2333, 1.442695
    %v2335 = vpow.pop %v2334
    %v2336 = vadd.f32 %v2335, 1.0
    %v2337 = vrcp.pop %v2336
    %v2338 = vmul.f32 1.0, %v2337
    %v2339 = vtanh.pop %v2332
    %v2340 = vxor.u32 %v2332, 2147483648
    %v2341 = vmul.f32 %v2340, 1.442695
    %v2342 = vpow.pop %v2341
    %v2343 = vadd.f32 %v2342, 1.0
    %v2344 = vrcp.pop %v2343
    %v2345 = vmul.f32 1.0, %v2344
    %v2346 = vmul.f32 %v2338, %v2252
    %v2347 = vmul.f32 %v2338, %v2339
    %2349 = vrot.lane.b32.xlu0 %v2347, 64
    %v2350 = vpop.permute.xlu0 %2349
    %v2352 = vadd.f32 %v2346, %v2350
    %v2353 = vtanh.pop %v2352
    %v2354 = vmul.f32 %v2345, %v2353
    %2356 = vrot.lane.b32.xlu0 %v2354, 64
    %v2357 = vpop.permute.xlu0 %2356
    %v2358 = vsel %vm953, %v2357, 0
    %2360 = vmatprep.subr.mxu0 0.0
    %2361 = vmatpush1.msra.mxu0 0.0
    %2362 = vmatprep.subr.mxu0 0.0
    %2363 = vmatpush1.msra.mxu0 0.0
    %2364 = vmatprep.subr.mxu0 0.0
    %2365 = vmatpush1.msra.mxu0 0.0
    %2366 = vmatprep.subr.mxu0 0.0
    %2367 = vmatpush1.msra.mxu0 0.0
    %2368 = vmatprep.subr.mxu0 0.0
    %2369 = vmatpush1.msra.mxu0 0.0
    %2370 = vmatprep.subr.mxu0 0.0
    %2371 = vmatpush1.msra.mxu0 0.0
    %2372 = vmatprep.subr.mxu0 0.0
    %2373 = vmatpush1.msra.mxu0 0.0
    %2374 = vmatprep.subr.mxu0 0.0
    %2375 = vmatpush1.msra.mxu0 0.0
    %2376 = vmatprep.subr.mxu0 %v929
    %2377 = vmatpush1.msra.mxu0 %v928
    %2378 = vmatprep.subr.mxu0 %v927
    %2379 = vmatpush1.msra.mxu0 %v926
    %2380 = vmatprep.subr.mxu0 %v925
    %2381 = vmatpush1.msra.mxu0 %v924
    %2382 = vmatprep.subr.mxu0 %v923
    %2383 = vmatpush1.msra.mxu0 %v922
    %2384 = vmatprep.subr.mxu0 %v921
    %2385 = vmatpush1.msra.mxu0 %v920
    %2386 = vmatprep.subr.mxu0 %v919
    %2387 = vmatpush1.msra.mxu0 %v918
    %2388 = vmatprep.subr.mxu0 %v917
    %2389 = vmatpush1.msra.mxu0 %v916
    %2390 = vmatprep.subr.mxu0 %v915
    %2391 = vmatpush1.msra.mxu0 %v914
    %2392 = vmatprep.subr.mxu0 0.0
    %2393 = vmatpush2.msra.mxu0 0.0
    %2394 = vmatprep.subr.mxu0 0.0
    %2395 = vmatpush2.msra.mxu0 0.0
    %2396 = vmatprep.subr.mxu0 0.0
    %2397 = vmatpush2.msra.mxu0 0.0
    %2398 = vmatprep.subr.mxu0 0.0
    %2399 = vmatpush2.msra.mxu0 0.0
    %2400 = vmatprep.subr.mxu0 0.0
    %2401 = vmatpush2.msra.mxu0 0.0
    %2402 = vmatprep.subr.mxu0 0.0
    %2403 = vmatpush2.msra.mxu0 0.0
    %2404 = vmatprep.subr.mxu0 0.0
    %2405 = vmatpush2.msra.mxu0 0.0
    %2406 = vmatprep.subr.mxu0 0.0
    %2407 = vmatpush2.msra.mxu0 0.0
    %2408 = vmatprep.subr.mxu0 0.0
    %2409 = vmatpush2.msra.mxu0 0.0
    %2410 = vmatprep.subr.mxu0 0.0
    %2411 = vmatpush2.msra.mxu0 0.0
    %2412 = vmatprep.subr.mxu0 0.0
    %2413 = vmatpush2.msra.mxu0 0.0
    %2414 = vmatprep.subr.mxu0 0.0
    %2415 = vmatpush2.msra.mxu0 0.0
    %2416 = vmatprep.subr.mxu0 0.0
    %2417 = vmatpush2.msra.mxu0 0.0
    %2418 = vmatprep.subr.mxu0 0.0
    %2419 = vmatpush2.msra.mxu0 0.0
    %2420 = vmatprep.subr.mxu0 0.0
    %2421 = vmatpush2.msra.mxu0 0.0
    %2422 = vmatprep.subr.mxu0 0.0
    %2423 = vmatpush2.msra.mxu0 0.0
    %2424 = vmatprep.mubr.f32.mxu0 0.0
    %2425 = vmatmul.mubr.f32.gmra.mxu0 %v2358
    %v2426 = vpop.f32.mrf.mxu0
    %v2427 = vadd.f32 0.0, %v2426
    %v2428 = vpop.f32.mrf.mxu0
    %v2429 = vadd.f32 0.0, %v2428
    %2430 = vdwg.mxu0
    %v2431 = vadd.f32 %v801, %v2427
    %v2432 = vadd.f32 %v803, %v2429
    %v2433 = vxor.u32 %v2431, 2147483648
    %v2434 = vmul.f32 %v2433, 1.442695
    %v2435 = vpow.pop %v2434
    %v2436 = vadd.f32 %v2435, 1.0
    %v2437 = vrcp.pop %v2436
    %v2438 = vmul.f32 1.0, %v2437
    %v2439 = vtanh.pop %v2432
    %v2440 = vxor.u32 %v2432, 2147483648
    %v2441 = vmul.f32 %v2440, 1.442695
    %v2442 = vpow.pop %v2441
    %v2443 = vadd.f32 %v2442, 1.0
    %v2444 = vrcp.pop %v2443
    %v2445 = vmul.f32 1.0, %v2444
    %v2446 = vmul.f32 %v2438, %v2352
    %v2447 = vmul.f32 %v2438, %v2439
    %2449 = vrot.lane.b32.xlu0 %v2447, 64
    %v2450 = vpop.permute.xlu0 %2449
    %v2452 = vadd.f32 %v2446, %v2450
    %v2453 = vtanh.pop %v2452
    %v2454 = vmul.f32 %v2445, %v2453
    %2456 = vrot.lane.b32.xlu0 %v2454, 64
    %v2457 = vpop.permute.xlu0 %2456
    %v2458 = vsel %vm953, %v2457, 0
    %2460 = vmatprep.subr.mxu0 0.0
    %2461 = vmatpush1.msra.mxu0 0.0
    %2462 = vmatprep.subr.mxu0 0.0
    %2463 = vmatpush1.msra.mxu0 0.0
    %2464 = vmatprep.subr.mxu0 0.0
    %2465 = vmatpush1.msra.mxu0 0.0
    %2466 = vmatprep.subr.mxu0 0.0
    %2467 = vmatpush1.msra.mxu0 0.0
    %2468 = vmatprep.subr.mxu0 0.0
    %2469 = vmatpush1.msra.mxu0 0.0
    %2470 = vmatprep.subr.mxu0 0.0
    %2471 = vmatpush1.msra.mxu0 0.0
    %2472 = vmatprep.subr.mxu0 0.0
    %2473 = vmatpush1.msra.mxu0 0.0
    %2474 = vmatprep.subr.mxu0 0.0
    %2475 = vmatpush1.msra.mxu0 0.0
    %2476 = vmatprep.subr.mxu0 %v929
    %2477 = vmatpush1.msra.mxu0 %v928
    %2478 = vmatprep.subr.mxu0 %v927
    %2479 = vmatpush1.msra.mxu0 %v926
    %2480 = vmatprep.subr.mxu0 %v925
    %2481 = vmatpush1.msra.mxu0 %v924
    %2482 = vmatprep.subr.mxu0 %v923
    %2483 = vmatpush1.msra.mxu0 %v922
    %2484 = vmatprep.subr.mxu0 %v921
    %2485 = vmatpush1.msra.mxu0 %v920
    %2486 = vmatprep.subr.mxu0 %v919
    %2487 = vmatpush1.msra.mxu0 %v918
    %2488 = vmatprep.subr.mxu0 %v917
    %2489 = vmatpush1.msra.mxu0 %v916
    %2490 = vmatprep.subr.mxu0 %v915
    %2491 = vmatpush1.msra.mxu0 %v914
    %2492 = vmatprep.subr.mxu0 0.0
    %2493 = vmatpush2.msra.mxu0 0.0
    %2494 = vmatprep.subr.mxu0 0.0
    %2495 = vmatpush2.msra.mxu0 0.0
    %2496 = vmatprep.subr.mxu0 0.0
    %2497 = vmatpush2.msra.mxu0 0.0
    %2498 = vmatprep.subr.mxu0 0.0
    %2499 = vmatpush2.msra.mxu0 0.0
    %2500 = vmatprep.subr.mxu0 0.0
    %2501 = vmatpush2.msra.mxu0 0.0
    %2502 = vmatprep.subr.mxu0 0.0
    %2503 = vmatpush2.msra.mxu0 0.0
    %2504 = vmatprep.subr.mxu0 0.0
    %2505 = vmatpush2.msra.mxu0 0.0
    %2506 = vmatprep.subr.mxu0 0.0
    %2507 = vmatpush2.msra.mxu0 0.0
    %2508 = vmatprep.subr.mxu0 0.0
    %2509 = vmatpush2.msra.mxu0 0.0
    %2510 = vmatprep.subr.mxu0 0.0
    %2511 = vmatpush2.msra.mxu0 0.0
    %2512 = vmatprep.subr.mxu0 0.0
    %2513 = vmatpush2.msra.mxu0 0.0
    %2514 = vmatprep.subr.mxu0 0.0
    %2515 = vmatpush2.msra.mxu0 0.0
    %2516 = vmatprep.subr.mxu0 0.0
    %2517 = vmatpush2.msra.mxu0 0.0
    %2518 = vmatprep.subr.mxu0 0.0
    %2519 = vmatpush2.msra.mxu0 0.0
    %2520 = vmatprep.subr.mxu0 0.0
    %2521 = vmatpush2.msra.mxu0 0.0
    %2522 = vmatprep.subr.mxu0 0.0
    %2523 = vmatpush2.msra.mxu0 0.0
    %2524 = vmatprep.mubr.f32.mxu0 0.0
    %2525 = vmatmul.mubr.f32.gmra.mxu0 %v2458
    %v2526 = vpop.f32.mrf.mxu0
    %v2527 = vadd.f32 0.0, %v2526
    %v2528 = vpop.f32.mrf.mxu0
    %v2529 = vadd.f32 0.0, %v2528
    %2530 = vdwg.mxu0
    %v2531 = vadd.f32 %v807, %v2527
    %v2532 = vadd.f32 %v809, %v2529
    %v2533 = vxor.u32 %v2531, 2147483648
    %v2534 = vmul.f32 %v2533, 1.442695
    %v2535 = vpow.pop %v2534
    %v2536 = vadd.f32 %v2535, 1.0
    %v2537 = vrcp.pop %v2536
    %v2538 = vmul.f32 1.0, %v2537
    %v2539 = vtanh.pop %v2532
    %v2540 = vxor.u32 %v2532, 2147483648
    %v2541 = vmul.f32 %v2540, 1.442695
    %v2542 = vpow.pop %v2541
    %v2543 = vadd.f32 %v2542, 1.0
    %v2544 = vrcp.pop %v2543
    %v2545 = vmul.f32 1.0, %v2544
    %v2546 = vmul.f32 %v2538, %v2452
    %v2547 = vmul.f32 %v2538, %v2539
    %2549 = vrot.lane.b32.xlu0 %v2547, 64
    %v2550 = vpop.permute.xlu0 %2549
    %v2552 = vadd.f32 %v2546, %v2550
    %v2553 = vtanh.pop %v2552
    %v2554 = vmul.f32 %v2545, %v2553
    %2556 = vrot.lane.b32.xlu0 %v2554, 64
    %v2557 = vpop.permute.xlu0 %2556
    %v2558 = vsel %vm953, %v2557, 0
    %2560 = vmatprep.subr.mxu0 0.0
    %2561 = vmatpush1.msra.mxu0 0.0
    %2562 = vmatprep.subr.mxu0 0.0
    %2563 = vmatpush1.msra.mxu0 0.0
    %2564 = vmatprep.subr.mxu0 0.0
    %2565 = vmatpush1.msra.mxu0 0.0
    %2566 = vmatprep.subr.mxu0 0.0
    %2567 = vmatpush1.msra.mxu0 0.0
    %2568 = vmatprep.subr.mxu0 0.0
    %2569 = vmatpush1.msra.mxu0 0.0
    %2570 = vmatprep.subr.mxu0 0.0
    %2571 = vmatpush1.msra.mxu0 0.0
    %2572 = vmatprep.subr.mxu0 0.0
    %2573 = vmatpush1.msra.mxu0 0.0
    %2574 = vmatprep.subr.mxu0 0.0
    %2575 = vmatpush1.msra.mxu0 0.0
    %2576 = vmatprep.subr.mxu0 %v929
    %2577 = vmatpush1.msra.mxu0 %v928
    %2578 = vmatprep.subr.mxu0 %v927
    %2579 = vmatpush1.msra.mxu0 %v926
    %2580 = vmatprep.subr.mxu0 %v925
    %2581 = vmatpush1.msra.mxu0 %v924
    %2582 = vmatprep.subr.mxu0 %v923
    %2583 = vmatpush1.msra.mxu0 %v922
    %2584 = vmatprep.subr.mxu0 %v921
    %2585 = vmatpush1.msra.mxu0 %v920
    %2586 = vmatprep.subr.mxu0 %v919
    %2587 = vmatpush1.msra.mxu0 %v918
    %2588 = vmatprep.subr.mxu0 %v917
    %2589 = vmatpush1.msra.mxu0 %v916
    %2590 = vmatprep.subr.mxu0 %v915
    %2591 = vmatpush1.msra.mxu0 %v914
    %2592 = vmatprep.subr.mxu0 0.0
    %2593 = vmatpush2.msra.mxu0 0.0
    %2594 = vmatprep.subr.mxu0 0.0
    %2595 = vmatpush2.msra.mxu0 0.0
    %2596 = vmatprep.subr.mxu0 0.0
    %2597 = vmatpush2.msra.mxu0 0.0
    %2598 = vmatprep.subr.mxu0 0.0
    %2599 = vmatpush2.msra.mxu0 0.0
    %2600 = vmatprep.subr.mxu0 0.0
    %2601 = vmatpush2.msra.mxu0 0.0
    %2602 = vmatprep.subr.mxu0 0.0
    %2603 = vmatpush2.msra.mxu0 0.0
    %2604 = vmatprep.subr.mxu0 0.0
    %2605 = vmatpush2.msra.mxu0 0.0
    %2606 = vmatprep.subr.mxu0 0.0
    %2607 = vmatpush2.msra.mxu0 0.0
    %2608 = vmatprep.subr.mxu0 0.0
    %2609 = vmatpush2.msra.mxu0 0.0
    %2610 = vmatprep.subr.mxu0 0.0
    %2611 = vmatpush2.msra.mxu0 0.0
    %2612 = vmatprep.subr.mxu0 0.0
    %2613 = vmatpush2.msra.mxu0 0.0
    %2614 = vmatprep.subr.mxu0 0.0
    %2615 = vmatpush2.msra.mxu0 0.0
    %2616 = vmatprep.subr.mxu0 0.0
    %2617 = vmatpush2.msra.mxu0 0.0
    %2618 = vmatprep.subr.mxu0 0.0
    %2619 = vmatpush2.msra.mxu0 0.0
    %2620 = vmatprep.subr.mxu0 0.0
    %2621 = vmatpush2.msra.mxu0 0.0
    %2622 = vmatprep.subr.mxu0 0.0
    %2623 = vmatpush2.msra.mxu0 0.0
    %2624 = vmatprep.mubr.f32.mxu0 0.0
    %2625 = vmatmul.mubr.f32.gmra.mxu0 %v2558
    %v2626 = vpop.f32.mrf.mxu0
    %v2627 = vadd.f32 0.0, %v2626
    %v2628 = vpop.f32.mrf.mxu0
    %v2629 = vadd.f32 0.0, %v2628
    %2630 = vdwg.mxu0
    %v2631 = vadd.f32 %v813, %v2627
    %v2632 = vadd.f32 %v815, %v2629
    %v2633 = vxor.u32 %v2631, 2147483648
    %v2634 = vmul.f32 %v2633, 1.442695
    %v2635 = vpow.pop %v2634
    %v2636 = vadd.f32 %v2635, 1.0
    %v2637 = vrcp.pop %v2636
    %v2638 = vmul.f32 1.0, %v2637
    %v2639 = vtanh.pop %v2632
    %v2640 = vxor.u32 %v2632, 2147483648
    %v2641 = vmul.f32 %v2640, 1.442695
    %v2642 = vpow.pop %v2641
    %v2643 = vadd.f32 %v2642, 1.0
    %v2644 = vrcp.pop %v2643
    %v2645 = vmul.f32 1.0, %v2644
    %v2646 = vmul.f32 %v2638, %v2552
    %v2647 = vmul.f32 %v2638, %v2639
    %2649 = vrot.lane.b32.xlu0 %v2647, 64
    %v2650 = vpop.permute.xlu0 %2649
    %v2652 = vadd.f32 %v2646, %v2650
    %v2653 = vtanh.pop %v2652
    %v2654 = vmul.f32 %v2645, %v2653
    %2656 = vrot.lane.b32.xlu0 %v2654, 64
    %v2657 = vpop.permute.xlu0 %2656
    %v2658 = vsel %vm953, %v2657, 0
    %2660 = vmatprep.subr.mxu0 0.0
    %2661 = vmatpush1.msra.mxu0 0.0
    %2662 = vmatprep.subr.mxu0 0.0
    %2663 = vmatpush1.msra.mxu0 0.0
    %2664 = vmatprep.subr.mxu0 0.0
    %2665 = vmatpush1.msra.mxu0 0.0
    %2666 = vmatprep.subr.mxu0 0.0
    %2667 = vmatpush1.msra.mxu0 0.0
    %2668 = vmatprep.subr.mxu0 0.0
    %2669 = vmatpush1.msra.mxu0 0.0
    %2670 = vmatprep.subr.mxu0 0.0
    %2671 = vmatpush1.msra.mxu0 0.0
    %2672 = vmatprep.subr.mxu0 0.0
    %2673 = vmatpush1.msra.mxu0 0.0
    %2674 = vmatprep.subr.mxu0 0.0
    %2675 = vmatpush1.msra.mxu0 0.0
    %2676 = vmatprep.subr.mxu0 %v929
    %2677 = vmatpush1.msra.mxu0 %v928
    %2678 = vmatprep.subr.mxu0 %v927
    %2679 = vmatpush1.msra.mxu0 %v926
    %2680 = vmatprep.subr.mxu0 %v925
    %2681 = vmatpush1.msra.mxu0 %v924
    %2682 = vmatprep.subr.mxu0 %v923
    %2683 = vmatpush1.msra.mxu0 %v922
    %2684 = vmatprep.subr.mxu0 %v921
    %2685 = vmatpush1.msra.mxu0 %v920
    %2686 = vmatprep.subr.mxu0 %v919
    %2687 = vmatpush1.msra.mxu0 %v918
    %2688 = vmatprep.subr.mxu0 %v917
    %2689 = vmatpush1.msra.mxu0 %v916
    %2690 = vmatprep.subr.mxu0 %v915
    %2691 = vmatpush1.msra.mxu0 %v914
    %2692 = vmatprep.subr.mxu0 0.0
    %2693 = vmatpush2.msra.mxu0 0.0
    %2694 = vmatprep.subr.mxu0 0.0
    %2695 = vmatpush2.msra.mxu0 0.0
    %2696 = vmatprep.subr.mxu0 0.0
    %2697 = vmatpush2.msra.mxu0 0.0
    %2698 = vmatprep.subr.mxu0 0.0
    %2699 = vmatpush2.msra.mxu0 0.0
    %2700 = vmatprep.subr.mxu0 0.0
    %2701 = vmatpush2.msra.mxu0 0.0
    %2702 = vmatprep.subr.mxu0 0.0
    %2703 = vmatpush2.msra.mxu0 0.0
    %2704 = vmatprep.subr.mxu0 0.0
    %2705 = vmatpush2.msra.mxu0 0.0
    %2706 = vmatprep.subr.mxu0 0.0
    %2707 = vmatpush2.msra.mxu0 0.0
    %2708 = vmatprep.subr.mxu0 0.0
    %2709 = vmatpush2.msra.mxu0 0.0
    %2710 = vmatprep.subr.mxu0 0.0
    %2711 = vmatpush2.msra.mxu0 0.0
    %2712 = vmatprep.subr.mxu0 0.0
    %2713 = vmatpush2.msra.mxu0 0.0
    %2714 = vmatprep.subr.mxu0 0.0
    %2715 = vmatpush2.msra.mxu0 0.0
    %2716 = vmatprep.subr.mxu0 0.0
    %2717 = vmatpush2.msra.mxu0 0.0
    %2718 = vmatprep.subr.mxu0 0.0
    %2719 = vmatpush2.msra.mxu0 0.0
    %2720 = vmatprep.subr.mxu0 0.0
    %2721 = vmatpush2.msra.mxu0 0.0
    %2722 = vmatprep.subr.mxu0 0.0
    %2723 = vmatpush2.msra.mxu0 0.0
    %2724 = vmatprep.mubr.f32.mxu0 0.0
    %2725 = vmatmul.mubr.f32.gmra.mxu0 %v2658
    %v2726 = vpop.f32.mrf.mxu0
    %v2727 = vadd.f32 0.0, %v2726
    %v2728 = vpop.f32.mrf.mxu0
    %v2729 = vadd.f32 0.0, %v2728
    %2730 = vdwg.mxu0
    %v2731 = vadd.f32 %v819, %v2727
    %v2732 = vadd.f32 %v821, %v2729
    %v2733 = vxor.u32 %v2731, 2147483648
    %v2734 = vmul.f32 %v2733, 1.442695
    %v2735 = vpow.pop %v2734
    %v2736 = vadd.f32 %v2735, 1.0
    %v2737 = vrcp.pop %v2736
    %v2738 = vmul.f32 1.0, %v2737
    %v2739 = vtanh.pop %v2732
    %v2740 = vxor.u32 %v2732, 2147483648
    %v2741 = vmul.f32 %v2740, 1.442695
    %v2742 = vpow.pop %v2741
    %v2743 = vadd.f32 %v2742, 1.0
    %v2744 = vrcp.pop %v2743
    %v2745 = vmul.f32 1.0, %v2744
    %v2746 = vmul.f32 %v2738, %v2652
    %v2747 = vmul.f32 %v2738, %v2739
    %2749 = vrot.lane.b32.xlu0 %v2747, 64
    %v2750 = vpop.permute.xlu0 %2749
    %v2752 = vadd.f32 %v2746, %v2750
    %v2753 = vtanh.pop %v2752
    %v2754 = vmul.f32 %v2745, %v2753
    %2756 = vrot.lane.b32.xlu0 %v2754, 64
    %v2757 = vpop.permute.xlu0 %2756
    %v2758 = vsel %vm953, %v2757, 0
    %2760 = vmatprep.subr.mxu0 0.0
    %2761 = vmatpush1.msra.mxu0 0.0
    %2762 = vmatprep.subr.mxu0 0.0
    %2763 = vmatpush1.msra.mxu0 0.0
    %2764 = vmatprep.subr.mxu0 0.0
    %2765 = vmatpush1.msra.mxu0 0.0
    %2766 = vmatprep.subr.mxu0 0.0
    %2767 = vmatpush1.msra.mxu0 0.0
    %2768 = vmatprep.subr.mxu0 0.0
    %2769 = vmatpush1.msra.mxu0 0.0
    %2770 = vmatprep.subr.mxu0 0.0
    %2771 = vmatpush1.msra.mxu0 0.0
    %2772 = vmatprep.subr.mxu0 0.0
    %2773 = vmatpush1.msra.mxu0 0.0
    %2774 = vmatprep.subr.mxu0 0.0
    %2775 = vmatpush1.msra.mxu0 0.0
    %2776 = vmatprep.subr.mxu0 %v929
    %2777 = vmatpush1.msra.mxu0 %v928
    %2778 = vmatprep.subr.mxu0 %v927
    %2779 = vmatpush1.msra.mxu0 %v926
    %2780 = vmatprep.subr.mxu0 %v925
    %2781 = vmatpush1.msra.mxu0 %v924
    %2782 = vmatprep.subr.mxu0 %v923
    %2783 = vmatpush1.msra.mxu0 %v922
    %2784 = vmatprep.subr.mxu0 %v921
    %2785 = vmatpush1.msra.mxu0 %v920
    %2786 = vmatprep.subr.mxu0 %v919
    %2787 = vmatpush1.msra.mxu0 %v918
    %2788 = vmatprep.subr.mxu0 %v917
    %2789 = vmatpush1.msra.mxu0 %v916
    %2790 = vmatprep.subr.mxu0 %v915
    %2791 = vmatpush1.msra.mxu0 %v914
    %2792 = vmatprep.subr.mxu0 0.0
    %2793 = vmatpush2.msra.mxu0 0.0
    %2794 = vmatprep.subr.mxu0 0.0
    %2795 = vmatpush2.msra.mxu0 0.0
    %2796 = vmatprep.subr.mxu0 0.0
    %2797 = vmatpush2.msra.mxu0 0.0
    %2798 = vmatprep.subr.mxu0 0.0
    %2799 = vmatpush2.msra.mxu0 0.0
    %2800 = vmatprep.subr.mxu0 0.0
    %2801 = vmatpush2.msra.mxu0 0.0
    %2802 = vmatprep.subr.mxu0 0.0
    %2803 = vmatpush2.msra.mxu0 0.0
    %2804 = vmatprep.subr.mxu0 0.0
    %2805 = vmatpush2.msra.mxu0 0.0
    %2806 = vmatprep.subr.mxu0 0.0
    %2807 = vmatpush2.msra.mxu0 0.0
    %2808 = vmatprep.subr.mxu0 0.0
    %2809 = vmatpush2.msra.mxu0 0.0
    %2810 = vmatprep.subr.mxu0 0.0
    %2811 = vmatpush2.msra.mxu0 0.0
    %2812 = vmatprep.subr.mxu0 0.0
    %2813 = vmatpush2.msra.mxu0 0.0
    %2814 = vmatprep.subr.mxu0 0.0
    %2815 = vmatpush2.msra.mxu0 0.0
    %2816 = vmatprep.subr.mxu0 0.0
    %2817 = vmatpush2.msra.mxu0 0.0
    %2818 = vmatprep.subr.mxu0 0.0
    %2819 = vmatpush2.msra.mxu0 0.0
    %2820 = vmatprep.subr.mxu0 0.0
    %2821 = vmatpush2.msra.mxu0 0.0
    %2822 = vmatprep.subr.mxu0 0.0
    %2823 = vmatpush2.msra.mxu0 0.0
    %2824 = vmatprep.mubr.f32.mxu0 0.0
    %2825 = vmatmul.mubr.f32.gmra.mxu0 %v2758
    %v2826 = vpop.f32.mrf.mxu0
    %v2827 = vadd.f32 0.0, %v2826
    %v2828 = vpop.f32.mrf.mxu0
    %v2829 = vadd.f32 0.0, %v2828
    %2830 = vdwg.mxu0
    %v2831 = vadd.f32 %v825, %v2827
    %v2832 = vadd.f32 %v827, %v2829
    %v2833 = vxor.u32 %v2831, 2147483648
    %v2834 = vmul.f32 %v2833, 1.442695
    %v2835 = vpow.pop %v2834
    %v2836 = vadd.f32 %v2835, 1.0
    %v2837 = vrcp.pop %v2836
    %v2838 = vmul.f32 1.0, %v2837
    %v2839 = vtanh.pop %v2832
    %v2840 = vxor.u32 %v2832, 2147483648
    %v2841 = vmul.f32 %v2840, 1.442695
    %v2842 = vpow.pop %v2841
    %v2843 = vadd.f32 %v2842, 1.0
    %v2844 = vrcp.pop %v2843
    %v2845 = vmul.f32 1.0, %v2844
    %v2846 = vmul.f32 %v2838, %v2752
    %v2847 = vmul.f32 %v2838, %v2839
    %2849 = vrot.lane.b32.xlu0 %v2847, 64
    %v2850 = vpop.permute.xlu0 %2849
    %v2852 = vadd.f32 %v2846, %v2850
    %v2853 = vtanh.pop %v2852
    %v2854 = vmul.f32 %v2845, %v2853
    %v2855 = vxor.u32 %v910, 2147483648
    %v2856 = vmul.f32 %v2855, 1.442695
    %v2857 = vpow.pop %v2856
    %v2858 = vadd.f32 %v2857, 1.0
    %v2859 = vrcp.pop %v2858
    %v2860 = vmul.f32 1.0, %v2859
    %v2861 = vtanh.pop %v912
    %v2862 = vxor.u32 %v912, 2147483648
    %v2863 = vmul.f32 %v2862, 1.442695
    %v2864 = vpow.pop %v2863
    %v2865 = vadd.f32 %v2864, 1.0
    %v2866 = vrcp.pop %v2865
    %v2867 = vmul.f32 1.0, %v2866
    %v2868 = vmul.f32 %v2860, %v2861
    %v2869 = vtanh.pop %v2868
    %2871 = vrot.lane.b32.xlu0 %v2869, 64
    %v2872 = vpop.permute.xlu0 %2871
    %v2874 = vmul.f32 %v2867, %v2872
    %v2875 = vld [vmem:[%s5] sm:$0xff]
    %v2876 = vld [vmem:[%s5 + $0x8] sm:$0xff]
    %v2877 = vld [vmem:[%s5 + $0x10] sm:$0xff]
    %v2878 = vld [vmem:[%s5 + $0x18] sm:$0xff]
    %v2879 = vld [vmem:[%s5 + $0x20] sm:$0xff]
    %v2880 = vld [vmem:[%s5 + $0x28] sm:$0xff]
    %v2881 = vld [vmem:[%s5 + $0x30] sm:$0xff]
    %v2882 = vld [vmem:[%s5 + $0x38] sm:$0xff]
    %v2883 = vld [vmem:[%s5 + $0x40] sm:$0xff]
    %v2884 = vld [vmem:[%s5 + $0x48] sm:$0xff]
    %v2885 = vld [vmem:[%s5 + $0x50] sm:$0xff]
    %v2886 = vld [vmem:[%s5 + $0x58] sm:$0xff]
    %v2887 = vld [vmem:[%s5 + $0x60] sm:$0xff]
    %v2888 = vld [vmem:[%s5 + $0x68] sm:$0xff]
    %v2889 = vld [vmem:[%s5 + $0x70] sm:$0xff]
    %v2890 = vld [vmem:[%s5 + $0x78] sm:$0xff]
    %2892 = vrot.lane.b32.xlu0 %v2874, 64
    %v2893 = vpop.permute.xlu0 %2892
    %v2894 = vsel %vm953, %v2893, 0
    %2896 = vmatprep.subr.mxu0 0.0
    %2897 = vmatpush1.msra.mxu0 0.0
    %2898 = vmatprep.subr.mxu0 0.0
    %2899 = vmatpush1.msra.mxu0 0.0
    %2900 = vmatprep.subr.mxu0 0.0
    %2901 = vmatpush1.msra.mxu0 0.0
    %2902 = vmatprep.subr.mxu0 0.0
    %2903 = vmatpush1.msra.mxu0 0.0
    %2904 = vmatprep.subr.mxu0 0.0
    %2905 = vmatpush1.msra.mxu0 0.0
    %2906 = vmatprep.subr.mxu0 0.0
    %2907 = vmatpush1.msra.mxu0 0.0
    %2908 = vmatprep.subr.mxu0 0.0
    %2909 = vmatpush1.msra.mxu0 0.0
    %2910 = vmatprep.subr.mxu0 0.0
    %2911 = vmatpush1.msra.mxu0 0.0
    %2912 = vmatprep.subr.mxu0 0.0
    %2913 = vmatpush1.msra.mxu0 %v2890
    %2914 = vmatprep.subr.mxu0 0.0
    %2915 = vmatpush1.msra.mxu0 %v2889
    %2916 = vmatprep.subr.mxu0 0.0
    %2917 = vmatpush1.msra.mxu0 %v2888
    %2918 = vmatprep.subr.mxu0 0.0
    %2919 = vmatpush1.msra.mxu0 %v2887
    %2920 = vmatprep.subr.mxu0 0.0
    %2921 = vmatpush1.msra.mxu0 %v2886
    %2922 = vmatprep.subr.mxu0 0.0
    %2923 = vmatpush1.msra.mxu0 %v2885
    %2924 = vmatprep.subr.mxu0 0.0
    %2925 = vmatpush1.msra.mxu0 %v2884
    %2926 = vmatprep.subr.mxu0 0.0
    %2927 = vmatpush1.msra.mxu0 %v2883
    %2928 = vmatprep.subr.mxu0 0.0
    %2929 = vmatpush2.msra.mxu0 0.0
    %2930 = vmatprep.subr.mxu0 0.0
    %2931 = vmatpush2.msra.mxu0 0.0
    %2932 = vmatprep.subr.mxu0 0.0
    %2933 = vmatpush2.msra.mxu0 0.0
    %2934 = vmatprep.subr.mxu0 0.0
    %2935 = vmatpush2.msra.mxu0 0.0
    %2936 = vmatprep.subr.mxu0 0.0
    %2937 = vmatpush2.msra.mxu0 0.0
    %2938 = vmatprep.subr.mxu0 0.0
    %2939 = vmatpush2.msra.mxu0 0.0
    %2940 = vmatprep.subr.mxu0 0.0
    %2941 = vmatpush2.msra.mxu0 0.0
    %2942 = vmatprep.subr.mxu0 0.0
    %2943 = vmatpush2.msra.mxu0 0.0
    %2944 = vmatprep.subr.mxu0 0.0
    %2945 = vmatpush2.msra.mxu0 0.0
    %2946 = vmatprep.subr.mxu0 0.0
    %2947 = vmatpush2.msra.mxu0 0.0
    %2948 = vmatprep.subr.mxu0 0.0
    %2949 = vmatpush2.msra.mxu0 0.0
    %2950 = vmatprep.subr.mxu0 0.0
    %2951 = vmatpush2.msra.mxu0 0.0
    %2952 = vmatprep.subr.mxu0 0.0
    %2953 = vmatpush2.msra.mxu0 0.0
    %2954 = vmatprep.subr.mxu0 0.0
    %2955 = vmatpush2.msra.mxu0 0.0
    %2956 = vmatprep.subr.mxu0 0.0
    %2957 = vmatpush2.msra.mxu0 0.0
    %2958 = vmatprep.subr.mxu0 0.0
    %2959 = vmatpush2.msra.mxu0 0.0
    %2960 = vmatprep.mubr.f32.mxu0 0.0
    %2961 = vmatmul.mubr.f32.gmra.mxu0 %v2894
    %v2962 = vpop.f32.mrf.mxu0
    %v2963 = vadd.f32 0.0, %v2962
    %v2964 = vpop.f32.mrf.mxu0
    %2965 = vdwg.mxu0
    %2967 = vrot.lane.b32.xlu0 %v2854, 64
    %v2968 = vpop.permute.xlu0 %2967
    %v2969 = vsel %vm953, %v2968, 0
    %2971 = vmatprep.subr.mxu0 0.0
    %2972 = vmatpush1.msra.mxu0 0.0
    %2973 = vmatprep.subr.mxu0 0.0
    %2974 = vmatpush1.msra.mxu0 0.0
    %2975 = vmatprep.subr.mxu0 0.0
    %2976 = vmatpush1.msra.mxu0 0.0
    %2977 = vmatprep.subr.mxu0 0.0
    %2978 = vmatpush1.msra.mxu0 0.0
    %2979 = vmatprep.subr.mxu0 0.0
    %2980 = vmatpush1.msra.mxu0 0.0
    %2981 = vmatprep.subr.mxu0 0.0
    %2982 = vmatpush1.msra.mxu0 0.0
    %2983 = vmatprep.subr.mxu0 0.0
    %2984 = vmatpush1.msra.mxu0 0.0
    %2985 = vmatprep.subr.mxu0 0.0
    %2986 = vmatpush1.msra.mxu0 0.0
    %2987 = vmatprep.subr.mxu0 0.0
    %2988 = vmatpush1.msra.mxu0 %v2882
    %2989 = vmatprep.subr.mxu0 0.0
    %2990 = vmatpush1.msra.mxu0 %v2881
    %2991 = vmatprep.subr.mxu0 0.0
    %2992 = vmatpush1.msra.mxu0 %v2880
    %2993 = vmatprep.subr.mxu0 0.0
    %2994 = vmatpush1.msra.mxu0 %v2879
    %2995 = vmatprep.subr.mxu0 0.0
    %2996 = vmatpush1.msra.mxu0 %v2878
    %2997 = vmatprep.subr.mxu0 0.0
    %2998 = vmatpush1.msra.mxu0 %v2877
    %2999 = vmatprep.subr.mxu0 0.0
    %3000 = vmatpush1.msra.mxu0 %v2876
    %3001 = vmatprep.subr.mxu0 0.0
    %3002 = vmatpush1.msra.mxu0 %v2875
    %3003 = vmatprep.subr.mxu0 0.0
    %3004 = vmatpush2.msra.mxu0 0.0
    %3005 = vmatprep.subr.mxu0 0.0
    %3006 = vmatpush2.msra.mxu0 0.0
    %3007 = vmatprep.subr.mxu0 0.0
    %3008 = vmatpush2.msra.mxu0 0.0
    %3009 = vmatprep.subr.mxu0 0.0
    %3010 = vmatpush2.msra.mxu0 0.0
    %3011 = vmatprep.subr.mxu0 0.0
    %3012 = vmatpush2.msra.mxu0 0.0
    %3013 = vmatprep.subr.mxu0 0.0
    %3014 = vmatpush2.msra.mxu0 0.0
    %3015 = vmatprep.subr.mxu0 0.0
    %3016 = vmatpush2.msra.mxu0 0.0
    %3017 = vmatprep.subr.mxu0 0.0
    %3018 = vmatpush2.msra.mxu0 0.0
    %3019 = vmatprep.subr.mxu0 0.0
    %3020 = vmatpush2.msra.mxu0 0.0
    %3021 = vmatprep.subr.mxu0 0.0
    %3022 = vmatpush2.msra.mxu0 0.0
    %3023 = vmatprep.subr.mxu0 0.0
    %3024 = vmatpush2.msra.mxu0 0.0
    %3025 = vmatprep.subr.mxu0 0.0
    %3026 = vmatpush2.msra.mxu0 0.0
    %3027 = vmatprep.subr.mxu0 0.0
    %3028 = vmatpush2.msra.mxu0 0.0
    %3029 = vmatprep.subr.mxu0 0.0
    %3030 = vmatpush2.msra.mxu0 0.0
    %3031 = vmatprep.subr.mxu0 0.0
    %3032 = vmatpush2.msra.mxu0 0.0
    %3033 = vmatprep.subr.mxu0 0.0
    %3034 = vmatpush2.msra.mxu0 0.0
    %3035 = vmatprep.mubr.f32.mxu0 0.0
    %3036 = vmatmul.mubr.f32.gmra.mxu0 %v2969
    %v3037 = vpop.f32.mrf.mxu0
    %v3038 = vadd.f32 %v2963, %v3037
    %v3039 = vpop.f32.mrf.mxu0
    %3040 = vdwg.mxu0
    %v3041 = vld [vmem:[#allocation2] sm:$0xff]
    %v3042 = vld [vmem:[%s5 + $0x80] sm:$0xff]
    %v3043 = vld [vmem:[%s5 + $0x88] sm:$0xff]
    %v3044 = vld [vmem:[%s5 + $0x90] sm:$0xff]
    %v3045 = vld [vmem:[%s5 + $0x98] sm:$0x3]
    %vm3046 = vcmask 211968
    %v3048 = vsel %vm3046, %v3041, 0
    %vm3050 = vcmask 1041408
    %v3052 = vsel %vm3050, %v3045, 0
    %3054 = vmatprep.subr.mxu0 0.0
    %3055 = vmatpush1.msra.mxu0 0.0
    %3056 = vmatprep.subr.mxu0 0.0
    %3057 = vmatpush1.msra.mxu0 0.0
    %3058 = vmatprep.subr.mxu0 0.0
    %3059 = vmatpush1.msra.mxu0 0.0
    %3060 = vmatprep.subr.mxu0 0.0
    %3061 = vmatpush1.msra.mxu0 0.0
    %3062 = vmatprep.subr.mxu0 0.0
    %3063 = vmatpush1.msra.mxu0 0.0
    %3064 = vmatprep.subr.mxu0 0.0
    %3065 = vmatpush1.msra.mxu0 0.0
    %3066 = vmatprep.subr.mxu0 0.0
    %3067 = vmatpush1.msra.mxu0 0.0
    %3068 = vmatprep.subr.mxu0 0.0
    %3069 = vmatpush1.msra.mxu0 0.0
    %3070 = vmatprep.subr.mxu0 0.0
    %3071 = vmatpush1.msra.mxu0 0.0
    %3072 = vmatprep.subr.mxu0 0.0
    %3073 = vmatpush1.msra.mxu0 0.0
    %3074 = vmatprep.subr.mxu0 0.0
    %3075 = vmatpush1.msra.mxu0 0.0
    %3076 = vmatprep.subr.mxu0 0.0
    %3077 = vmatpush1.msra.mxu0 0.0
    %3078 = vmatprep.subr.mxu0 0.0
    %3079 = vmatpush1.msra.mxu0 %v3052
    %3080 = vmatprep.subr.mxu0 0.0
    %3081 = vmatpush1.msra.mxu0 %v3044
    %3082 = vmatprep.subr.mxu0 0.0
    %3083 = vmatpush1.msra.mxu0 %v3043
    %3084 = vmatprep.subr.mxu0 0.0
    %3085 = vmatpush1.msra.mxu0 %v3042
    %3086 = vmatprep.subr.mxu0 0.0
    %3087 = vmatpush2.msra.mxu0 0.0
    %3088 = vmatprep.subr.mxu0 0.0
    %3089 = vmatpush2.msra.mxu0 0.0
    %3090 = vmatprep.subr.mxu0 0.0
    %3091 = vmatpush2.msra.mxu0 0.0
    %3092 = vmatprep.subr.mxu0 0.0
    %3093 = vmatpush2.msra.mxu0 0.0
    %3094 = vmatprep.subr.mxu0 0.0
    %3095 = vmatpush2.msra.mxu0 0.0
    %3096 = vmatprep.subr.mxu0 0.0
    %3097 = vmatpush2.msra.mxu0 0.0
    %3098 = vmatprep.subr.mxu0 0.0
    %3099 = vmatpush2.msra.mxu0 0.0
    %3100 = vmatprep.subr.mxu0 0.0
    %3101 = vmatpush2.msra.mxu0 0.0
    %3102 = vmatprep.subr.mxu0 0.0
    %3103 = vmatpush2.msra.mxu0 0.0
    %3104 = vmatprep.subr.mxu0 0.0
    %3105 = vmatpush2.msra.mxu0 0.0
    %3106 = vmatprep.subr.mxu0 0.0
    %3107 = vmatpush2.msra.mxu0 0.0
    %3108 = vmatprep.subr.mxu0 0.0
    %3109 = vmatpush2.msra.mxu0 0.0
    %3110 = vmatprep.subr.mxu0 0.0
    %3111 = vmatpush2.msra.mxu0 0.0
    %3112 = vmatprep.subr.mxu0 0.0
    %3113 = vmatpush2.msra.mxu0 0.0
    %3114 = vmatprep.subr.mxu0 0.0
    %3115 = vmatpush2.msra.mxu0 0.0
    %3116 = vmatprep.subr.mxu0 0.0
    %3117 = vmatpush2.msra.mxu0 0.0
    %3118 = vmatprep.mubr.f32.mxu0 0.0
    %3119 = vmatmul.mubr.f32.gmra.mxu0 %v3048
    %v3120 = vpop.f32.mrf.mxu0
    %v3121 = vadd.f32 0.0, %v3120
    %v3122 = vpop.f32.mrf.mxu0
    %3123 = vdwg.mxu0
    %v3124 = vadd.f32 %v3038, %v3121
    %v3125 = vld [vmem:[%s6] sm:$0x1]
    %v3127 = vlaneseq
    %v3128 = vshrl.u32 %v3127, 7
    %v3129 = vsub.s32 0, %v3128
    %v3130 = vrot.slane %v3125, %v3129
    %v3132 = vadd.f32 %v3124, %v3130
    %v3133 = vmax.f32 %v3132, 0.0
    %v3134 = vld [vmem:[#allocation8] sm:$0xff]
    %v3135 = vld [vmem:[#allocation8 + $0x8] sm:$0xff]
    %v3136 = vld [vmem:[#allocation8 + $0x10] sm:$0xff]
    %v3137 = vld [vmem:[#allocation8 + $0x18] sm:$0xff]
    %v3138 = vld [vmem:[#allocation8 + $0x20] sm:$0xff]
    %v3139 = vld [vmem:[#allocation8 + $0x28] sm:$0xff]
    %v3140 = vld [vmem:[#allocation8 + $0x30] sm:$0xff]
    %v3141 = vld [vmem:[#allocation8 + $0x38] sm:$0xff]
    %v3142 = vld [vmem:[%s8] sm:$0x1]
    %v3144 = vlaneseq
    %v3145 = vshrl.u32 %v3144, 7
    %v3146 = vsub.s32 0, %v3145
    %v3147 = vrot.slane %v3142, %v3146
    %v3150 = vsel %vm953, %v3133, 0
    %3152 = vmatprep.subr.mxu0 0.0
    %3153 = vmatpush1.msra.mxu0 0.0
    %3154 = vmatprep.subr.mxu0 0.0
    %3155 = vmatpush1.msra.mxu0 0.0
    %3156 = vmatprep.subr.mxu0 0.0
    %3157 = vmatpush1.msra.mxu0 0.0
    %3158 = vmatprep.subr.mxu0 0.0
    %3159 = vmatpush1.msra.mxu0 0.0
    %3160 = vmatprep.subr.mxu0 0.0
    %3161 = vmatpush1.msra.mxu0 0.0
    %3162 = vmatprep.subr.mxu0 0.0
    %3163 = vmatpush1.msra.mxu0 0.0
    %3164 = vmatprep.subr.mxu0 0.0
    %3165 = vmatpush1.msra.mxu0 0.0
    %3166 = vmatprep.subr.mxu0 0.0
    %3167 = vmatpush1.msra.mxu0 0.0
    %3168 = vmatprep.subr.mxu0 0.0
    %3169 = vmatpush1.msra.mxu0 %v3141
    %3170 = vmatprep.subr.mxu0 0.0
    %3171 = vmatpush1.msra.mxu0 %v3140
    %3172 = vmatprep.subr.mxu0 0.0
    %3173 = vmatpush1.msra.mxu0 %v3139
    %3174 = vmatprep.subr.mxu0 0.0
    %3175 = vmatpush1.msra.mxu0 %v3138
    %3176 = vmatprep.subr.mxu0 0.0
    %3177 = vmatpush1.msra.mxu0 %v3137
    %3178 = vmatprep.subr.mxu0 0.0
    %3179 = vmatpush1.msra.mxu0 %v3136
    %3180 = vmatprep.subr.mxu0 0.0
    %3181 = vmatpush1.msra.mxu0 %v3135
    %3182 = vmatprep.subr.mxu0 0.0
    %3183 = vmatpush1.msra.mxu0 %v3134
    %3184 = vmatprep.subr.mxu0 0.0
    %3185 = vmatpush2.msra.mxu0 0.0
    %3186 = vmatprep.subr.mxu0 0.0
    %3187 = vmatpush2.msra.mxu0 0.0
    %3188 = vmatprep.subr.mxu0 0.0
    %3189 = vmatpush2.msra.mxu0 0.0
    %3190 = vmatprep.subr.mxu0 0.0
    %3191 = vmatpush2.msra.mxu0 0.0
    %3192 = vmatprep.subr.mxu0 0.0
    %3193 = vmatpush2.msra.mxu0 0.0
    %3194 = vmatprep.subr.mxu0 0.0
    %3195 = vmatpush2.msra.mxu0 0.0
    %3196 = vmatprep.subr.mxu0 0.0
    %3197 = vmatpush2.msra.mxu0 0.0
    %3198 = vmatprep.subr.mxu0 0.0
    %3199 = vmatpush2.msra.mxu0 0.0
    %3200 = vmatprep.subr.mxu0 0.0
    %3201 = vmatpush2.msra.mxu0 0.0
    %3202 = vmatprep.subr.mxu0 0.0
    %3203 = vmatpush2.msra.mxu0 0.0
    %3204 = vmatprep.subr.mxu0 0.0
    %3205 = vmatpush2.msra.mxu0 0.0
    %3206 = vmatprep.subr.mxu0 0.0
    %3207 = vmatpush2.msra.mxu0 0.0
    %3208 = vmatprep.subr.mxu0 0.0
    %3209 = vmatpush2.msra.mxu0 0.0
    %3210 = vmatprep.subr.mxu0 0.0
    %3211 = vmatpush2.msra.mxu0 0.0
    %3212 = vmatprep.subr.mxu0 0.0
    %3213 = vmatpush2.msra.mxu0 0.0
    %3214 = vmatprep.subr.mxu0 0.0
    %3215 = vmatpush2.msra.mxu0 0.0
    %3216 = vmatprep.mubr.f32.mxu0 0.0
    %3217 = vmatmul.mubr.f32.gmra.mxu0 %v3150
    %v3218 = vpop.f32.mrf.mxu0
    %v3219 = vadd.f32 %v3147, %v3218
    %v3220 = vpop.f32.mrf.mxu0
    %3221 = vdwg.mxu0
    %3222 = vst [vmem:[#allocation10] sm:$0xff] %v3219
    // Predicated region
    $region54: #{tpu_custom_call.1} parent=1 // pred_check
      _
    $region55: #{tpu_custom_call.1} parent=1 // pred_check_branch
      %3224 = sbr.rel (0) target = $region57
    $region56: #{tpu_custom_call.1} parent=1 // pred_region
      %s3226 = ssub.s32 128, 128
      %3227 = vsyncadd [#allocation4], %s3226
      %s3229 = sshll.u32 [#allocation10], 4
      %s3230 = int_to_ptr.vmem [resolvable:$true] %s3229
      %3232 = dma.vmem_to_hbm [thread:$0]  %s3230, 128, %s9, [#allocation4]
    $region57: #{tpu_custom_call.1} parent=1 // pred_fallthru
      _
    // Predicated region
    $region58: #{tpu_custom_call.1} parent=1 // pred_check
      _
    $region59: #{tpu_custom_call.1} parent=1 // pred_check_branch
      %3234 = sbr.rel (0) target = $region61
    $region60: #{tpu_custom_call.1} parent=1 // pred_region
      %3235 = dma.done [#allocation4], 128
    $region61: #{tpu_custom_call.1} parent=1 // pred_fallthru
      _
    %3236 = vsyncpa [#allocation3], 1
    %3237 = vsyncpa [#allocation6], 1
    %3238 = vsyncpa [#allocation9], 1
    %3239 = vsyncpa [#allocation4], 1

</llo_original>
